<compile_context>
chip_gen: v5e
topology: v5e:2x2
jax: 0.10.0
libtpu: 0.0.40
codegen_flags: <defaults>
</compile_context>

<pallas_src>
import math

import jax
import jax.numpy as jnp
import numpy as np
from jax.experimental import pallas as pl
from jax.experimental.pallas import tpu as pltpu

# ----- model_conf (small synthetic config) -----
ID_VOCAB = 64     # model_conf.id_vocab
ID_DIM = 32       # model_conf.id_dimension
NHEAD = 2         # model_conf.nhead
MLP_LAYERS = 2    # model_conf.mlp_layers
BATCH = 2
SEQ_LEN = 8


# --------------------------------------------------------------------------
# Pallas kernel: one grid step == one batch tile of BT samples.
# --------------------------------------------------------------------------
def make_kernel(BT, L, D, H, NL):
    DH = D // H
    scale = 1.0 / math.sqrt(DH)
    f32 = jnp.float32
    bf16 = jnp.bfloat16

    # slab indices (static -> free ref views)
    I_WSEQ, I_WT1, I_WT2 = 0, 1, 2
    I_BGW = 3                      # bgW[l] at I_BGW + l
    I_BG = 3 + NL                  # Bg[l]  at I_BG + l
    J_BSEQ, J_BT1, J_BT2, J_BO = 0, 1, 2, 3
    J_LN1G, J_LN1B, J_B2, J_LN2G, J_LN2B = 4, 5, 6, 7, 8
    J_BB = 9                       # bb[l] at J_BB + l

    def mm(a, w):
        # bf16 operands, f32 accumulation on the MXU (weights already bf16).
        return jnp.dot(a.astype(bf16), w, preferred_element_type=f32)

    def bmm(a, b, contract):
        # batched (over dim 0) matmul, bf16 operands, f32 accumulation.
        return jax.lax.dot_general(
            a.astype(bf16), b.astype(bf16),
            (contract, ((0,), (0,))), preferred_element_type=f32)

    def ln(x, g, b):
        mu = jnp.mean(x, axis=-1, keepdims=True)
        xc = x - mu
        var = jnp.mean(xc * xc, axis=-1, keepdims=True)
        return xc * jax.lax.rsqrt(var + 1e-5) * g + b

    def kernel(x_ref, tgt_ref, seqlen_ref,
               w_dd, bias_d, w_ah, b_ah, w_ao,
               w_ff1, b_ff1, w_ff2, h_wgt,
               out_ref):
        # ---- _seq_trans(id_emb + pos_emb): Dense + Tanh on (BT*L, D) ----
        x_in = x_ref[...].reshape(BT * L, D)                  # bf16
        hseq = jnp.tanh(mm(x_in, w_dd[I_WSEQ]) + bias_d[J_BSEQ])   # f32

        # ---- _target_trans: Dense+Tanh, Dense (no activation) on (BT, D) ----
        tgt = jnp.tanh(mm(tgt_ref[...], w_dd[I_WT1]) + bias_d[J_BT1])
        tgt = mm(tgt, w_dd[I_WT2]) + bias_d[J_BT2]

        # ---- nn.TransformerEncoderLayer (post-norm, relu FFN, dropout=0) ----
        # Head-major weights: each head's q/k/v projection lands directly in a
        # (BT*L, DH) tensor (no lane slicing); out_proj is accumulated per head
        # against contiguous Wo row-slices (no concatenate).
        attn = None
        for h in range(H):
            q = (mm(hseq, w_ah[3 * h + 0]) + b_ah[3 * h + 0]).reshape(BT, L, DH)
            k = (mm(hseq, w_ah[3 * h + 1]) + b_ah[3 * h + 1]).reshape(BT, L, DH)
            v = (mm(hseq, w_ah[3 * h + 2]) + b_ah[3 * h + 2]).reshape(BT, L, DH)
            s = bmm(q, k, ((2,), (2,))) * scale               # (BT, L, L)
            s = s - jnp.max(s, axis=-1, keepdims=True)
            p = jnp.exp(s)
            p = p * pl.reciprocal(jnp.sum(p, axis=-1, keepdims=True),
                                  approx=True)                # softmax
            ctx = bmm(p, v, ((2,), (1,))).reshape(BT * L, DH) # (BT*L, DH)
            part = mm(ctx, w_ao[h])                           # (BT*L, D)
            attn = part if attn is None else attn + part
        attn = attn + bias_d[J_BO]

        x1 = ln(hseq + attn, bias_d[J_LN1G], bias_d[J_LN1B])
        ff = jnp.maximum(mm(x1, w_ff1[...]) + b_ff1[...], 0.0)
        ff = mm(ff, w_ff2[...]) + bias_d[J_B2]
        x2 = ln(x1 + ff, bias_d[J_LN2G], bias_d[J_LN2B])

        # ---- user_state / hist_state gather at seq_length (vectorized) ----
        sl = seqlen_ref[...][:, :, None]                      # (BT, 1, 1) int32
        iota = jax.lax.broadcasted_iota(jnp.int32, (BT, L, D), 1)
        sel = iota == sl                                      # (BT, L, D) bool
        user = jnp.sum(jnp.where(sel, x2.reshape(BT, L, D), 0.0), axis=1)
        z = jnp.sum(jnp.where(sel, hseq.reshape(BT, L, D), 0.0), axis=1)

        # ---- HyperNetwork_FC (batch=True): per-sample generated MLP ----
        # gen[b,e] = sum_{i,d} z[b,i] * u[b,d] * Wg[l,i,d,e]
        # Build the per-sample outer product with i on the leading (batch) axis
        # and contract d on the MXU with a single batched dot_general, then sum
        # the i axis (leading-axis reduce).  Only leading-dim reshapes /
        # broadcasts and one small 2-D transpose are used.
        zT = z.T                                              # (D, BT), reused for all layers
        u = user
        for l in range(NL):
            lhs = zT[:, :, None] * u[None, :, :]              # (D_i, BT, D_d) f32
            gen = jnp.sum(bmm(lhs, h_wgt[l], ((2,), (1,))), axis=0)   # (BT, D)
            u = (gen
                 + mm(u, w_dd[I_BGW + l])
                 + mm(z, w_dd[I_BG + l])
                 + bias_d[J_BB + l])
            if l < NL - 1:
                u = jnp.tanh(u)                               # Tanh except last layer

        # output = sum(user_embedding * target_embed, dim=1, keepdim=True)
        out_ref[...] = jnp.sum(u * tgt, axis=-1, keepdims=True)   # (BT, 1)

    return kernel


# --------------------------------------------------------------------------
# Deterministic parameter construction (synthetic init, no checkpoint).
# --------------------------------------------------------------------------
def build_params(key, V=ID_VOCAB, D=ID_DIM, NL=MLP_LAYERS):
    ks = iter(jax.random.split(key, 32))

    def nrm(shape, scale=0.1):
        return scale * jax.random.normal(next(ks), shape, dtype=jnp.float32)

    return {
        "id_table": nrm((V, D)),               # _id_encoder embedding
        "pos_table": nrm((V, D)),              # _position_embedding embedding
        "W_seq": nrm((D, D)), "b_seq": nrm((1, D), 0.01),      # _seq_trans
        "Wt1": nrm((D, D)), "bt1": nrm((1, D), 0.01),          # _target_trans L1
        "Wt2": nrm((D, D)), "bt2": nrm((1, D), 0.01),          # _target_trans L2
        "Wq": nrm((D, D)), "bq": nrm((1, D), 0.01),            # MHA in_proj (q)
        "Wk": nrm((D, D)), "bk": nrm((1, D), 0.01),            # MHA in_proj (k)
        "Wv": nrm((D, D)), "bv": nrm((1, D), 0.01),            # MHA in_proj (v)
        "Wo": nrm((D, D)), "bo": nrm((1, D), 0.01),            # MHA out_proj
        "ln1_g": jnp.ones((1, D), jnp.float32), "ln1_b": jnp.zeros((1, D), jnp.float32),
        "W1": nrm((D, 4 * D)), "b1": nrm((1, 4 * D), 0.01),    # FFN linear1
        "W2": nrm((4 * D, D)), "b2": nrm((1, D), 0.01),        # FFN linear2
        "ln2_g": jnp.ones((1, D), jnp.float32), "ln2_b": jnp.zeros((1, D), jnp.float32),
        # TODO(synk): common.HyperNetwork_FC source not provided; reconstructed as a
        # per-sample hypernetwork conditioned on hist_embed gathered at seq_length.
        "Wg": nrm((NL, D, D, D)),   # W_b = einsum('i,ide->de', z, Wg[l]) + bgW[l]
        "bgW": nrm((NL, D, D)),
        "Bg": nrm((NL, D, D)),      # b_b = z @ Bg[l] + bb[l]
        "bb": nrm((NL, 1, D), 0.01),
    }


# --------------------------------------------------------------------------
# Forward wrapper (glue + pallas_call)
# --------------------------------------------------------------------------
def sasrec_forward(params, click_seq, trigger_seq, target_id, nhead=NHEAD):
    del trigger_seq  # trigger branch is dead work when fig1=False
    p = params
    B, L = click_seq.shape
    D = p["W_seq"].shape[0]
    H = nhead
    DH = D // H
    NL = p["Wg"].shape[0]
    f32, bf16 = jnp.float32, jnp.bfloat16

    # Batch tile: large enough to amortize the ~0.35us per-grid-step overhead,
    # but with >=2 tiles for B>=16 so the "parallel" batch axis can shard
    # across v7x's two TensorCores.
    BT = min(128, ((B + 7) // 8) * 8)
    if B >= 16 and (B + BT - 1) // BT < 2:
        BT = max(8, (((B + 1) // 2) + 7) // 8 * 8)
    B_pad = ((B + BT - 1) // BT) * BT
    pad = B_pad - B

    # --- glue: embedding lookups + torch.no_grad bookkeeping ---
    hist_emb = p["id_table"][click_seq]                                # (B, L, D)
    pos_emb = p["pos_table"][jnp.arange(L)]                            # (L, D)
    x_in = (hist_emb + pos_emb[None, :, :]).astype(bf16)               # bf16 -> half DMA bytes
    tgt_emb = p["id_table"][target_id].astype(bf16)                    # (B, D)
    seq_len = jnp.maximum(
        jnp.sum((click_seq != 0).astype(jnp.int32), axis=1) - 1, 0
    ).astype(jnp.int32)[:, None]                                       # (B, 1)

    if pad:
        x_in = jnp.concatenate([x_in, jnp.zeros((pad, L, D), bf16)], axis=0)
        tgt_emb = jnp.concatenate([tgt_emb, jnp.zeros((pad, D), bf16)], axis=0)
        seq_len = jnp.concatenate([seq_len, jnp.zeros((pad, 1), jnp.int32)], axis=0)

    wgt = lambda a: a.astype(bf16)

    # --- weight/bias slabs (leading-axis stacking only: static index = free view) ---
    # (D, D) bf16 weights: [W_seq, Wt1, Wt2, bgW[0..NL-1], Bg[0..NL-1]]
    w_dd = wgt(jnp.stack([p["W_seq"], p["Wt1"], p["Wt2"]]
                         + [p["bgW"][l] for l in range(NL)]
                         + [p["Bg"][l] for l in range(NL)], axis=0))
    # (1, D) f32 biases / LN params
    bias_d = jnp.stack([p["b_seq"], p["bt1"], p["bt2"], p["bo"],
                        p["ln1_g"], p["ln1_b"], p["b2"],
                        p["ln2_g"], p["ln2_b"]]
                       + [p["bb"][l] for l in range(NL)], axis=0)      # (9+NL, 1, D)
    # head-major attention in/out projections: no lane slicing in the kernel
    w_ah = wgt(jnp.stack(
        sum([[p["Wq"][:, h * DH:(h + 1) * DH],
              p["Wk"][:, h * DH:(h + 1) * DH],
              p["Wv"][:, h * DH:(h + 1) * DH]] for h in range(H)], []), axis=0))  # (3H, D, DH)
    b_ah = jnp.stack(
        sum([[p["bq"][:, h * DH:(h + 1) * DH],
              p["bk"][:, h * DH:(h + 1) * DH],
              p["bv"][:, h * DH:(h + 1) * DH]] for h in range(H)], []), axis=0)   # (3H, 1, DH)
    w_ao = wgt(jnp.stack([p["Wo"][h * DH:(h + 1) * DH, :] for h in range(H)], axis=0))  # (H, DH, D)

    w_ff1, b_ff1, w_ff2 = wgt(p["W1"]), p["b1"], wgt(p["W2"])
    # hypernet generator kept in natural (NL, D_i, D_d, D_e) layout (no reshape needed)
    h_wgt = wgt(p["Wg"])
    # TODO(synk): at realistic D (>=128) h_wgt is NL*D^3 bf16 and must be streamed
    # from HBM in chunks (pl.ANY + emit_pipeline / manual DMA with a reduction loop)
    # instead of staying VMEM-resident, especially on v7x's 64 MiB VMEM.

    shared = [w_dd, bias_d, w_ah, b_ah, w_ao, w_ff1, b_ff1, w_ff2, h_wgt]

    def tiled(shape):
        nd = len(shape)
        return pl.BlockSpec(shape, lambda i, _n=nd: (i,) + (0,) * (_n - 1))

    def shared_spec(arr):
        nd = arr.ndim
        return pl.BlockSpec(arr.shape, lambda i, _n=nd: (0,) * _n)

    in_specs = ([tiled((BT, L, D)), tiled((BT, D)), tiled((BT, 1))]
                + [shared_spec(a) for a in shared])

    out = pl.pallas_call(
        make_kernel(BT, L, D, H, NL),
        grid_spec=pltpu.PrefetchScalarGridSpec(
            num_scalar_prefetch=0,
            grid=(B_pad // BT,),
            in_specs=in_specs,
            out_specs=pl.BlockSpec((BT, 1), lambda i: (i, 0)),
        ),
        out_shape=jax.ShapeDtypeStruct((B_pad, 1), f32),
        compiler_params=pltpu.CompilerParams(
            dimension_semantics=("parallel",),        # batch tiles shard across TCs
            vmem_limit_bytes=32 * 1024 * 1024),       # explicit scoped-VMEM limit
    )(x_in, tgt_emb, seq_len, *shared)
    return out[:B]


# --------------------------------------------------------------------------
# Pure-JAX reference (mirrors the torch forward) for a correctness check.
# --------------------------------------------------------------------------
def reference_forward(params, click_seq, target_id, nhead=NHEAD):
    with jax.default_matmul_precision("highest"):
        p = params
        B, L = click_seq.shape
        D = p["W_seq"].shape[0]
        H = nhead
        DH = D // H
        NL = p["Wg"].shape[0]

        def ln(x, g, b):
            mu = jnp.mean(x, axis=-1, keepdims=True)
            xc = x - mu
            var = jnp.mean(xc * xc, axis=-1, keepdims=True)
            return xc * jax.lax.rsqrt(var + 1e-5) * g + b

        hist = p["id_table"][click_seq]
        pos = p["pos_table"][jnp.tile(jnp.arange(L)[None, :], (B, 1))]
        h = jnp.tanh((hist + pos) @ p["W_seq"] + p["b_seq"])
        tgt = p["id_table"][target_id]
        t = jnp.tanh(tgt @ p["Wt1"] + p["bt1"]) @ p["Wt2"] + p["bt2"]

        q = (h @ p["Wq"] + p["bq"]).reshape(B, L, H, DH)
        k = (h @ p["Wk"] + p["bk"]).reshape(B, L, H, DH)
        v = (h @ p["Wv"] + p["bv"]).reshape(B, L, H, DH)
        s = jnp.einsum("blhd,bmhd->bhlm", q, k) / math.sqrt(DH)
        a = jax.nn.softmax(s, axis=-1)
        ctx = jnp.einsum("bhlm,bmhd->blhd", a, v).reshape(B, L, D)
        attn = ctx @ p["Wo"] + p["bo"]
        x1 = ln(h + attn, p["ln1_g"], p["ln1_b"])
        ff = jax.nn.relu(x1 @ p["W1"] + p["b1"]) @ p["W2"] + p["b2"]
        x2 = ln(x1 + ff, p["ln2_g"], p["ln2_b"])

        seq_len = jnp.maximum(jnp.sum((click_seq != 0).astype(jnp.int32), axis=1) - 1, 0)
        user = x2[jnp.arange(B), seq_len]
        z = h[jnp.arange(B), seq_len]
        u = user
        for l in range(NL):
            w_b = jnp.einsum("bi,ide->bde", z, p["Wg"][l]) + p["bgW"][l]
            u = jnp.einsum("bd,bde->be", u, w_b) + z @ p["Bg"][l] + p["bb"][l]
            if l < NL - 1:
                u = jnp.tanh(u)
        return jnp.sum(u * t, axis=1, keepdims=True)


if __name__ == "__main__":
    key = jax.random.PRNGKey(0)
    kp, kc, kt, kg = jax.random.split(key, 4)
    params = build_params(kp)

    click_seq = jax.random.randint(kc, (BATCH, SEQ_LEN), 0, ID_VOCAB, dtype=jnp.int32)
    click_seq = click_seq.at[0, -2:].set(0)   # padded tail to exercise the length mask
    trigger_seq = jax.random.randint(kt, (BATCH, SEQ_LEN), 0, ID_VOCAB, dtype=jnp.int32)
    target_id = jax.random.randint(kg, (BATCH,), 1, ID_VOCAB, dtype=jnp.int32)

    out = sasrec_forward(params, click_seq, trigger_seq, target_id)
    out = jax.block_until_ready(out)

    ref = reference_forward(params, click_seq, target_id)
    # kernel matmuls are bf16 (f32 accumulate) and softmax uses the approx
    # reciprocal; reference is f32-highest -> loose tolerance
    np.testing.assert_allclose(np.asarray(out), np.asarray(ref), rtol=5e-2, atol=2e-2)
    assert out.shape == (BATCH, 1)
    print("KERNEL_OK")
</pallas_src>

<mosaic_0001>
module attributes {stable_mosaic.version = 11 : i64} {
  func.func @kernel(%arg0: i32, %arg1: memref<8x8x32xbf16, #tpu.memory_space<vmem>>, %arg2: memref<8x32xbf16, #tpu.memory_space<vmem>>, %arg3: memref<8x1xi32, #tpu.memory_space<vmem>>, %arg4: memref<7x32x32xbf16, #tpu.memory_space<vmem>>, %arg5: memref<11x1x32xf32, #tpu.memory_space<vmem>>, %arg6: memref<6x32x16xbf16, #tpu.memory_space<vmem>>, %arg7: memref<6x1x16xf32, #tpu.memory_space<vmem>>, %arg8: memref<2x16x32xbf16, #tpu.memory_space<vmem>>, %arg9: memref<32x128xbf16, #tpu.memory_space<vmem>>, %arg10: memref<1x128xf32, #tpu.memory_space<vmem>>, %arg11: memref<128x32xbf16, #tpu.memory_space<vmem>>, %arg12: memref<2x32x32x32xbf16, #tpu.memory_space<vmem>>, %arg13: memref<8x1xf32, #tpu.memory_space<vmem>>) attributes {dimension_semantics = [#tpu.dimension_semantics<parallel>], iteration_bounds = array<i64: 1>, scalar_prefetch = 0 : i64, scratch_operands = 0 : i64, tpu.core_type = #tpu.core_type<tc>, window_params = [{transform_indices = @transform_0, window_bounds = array<i64: 8, 8, 32>}, {transform_indices = @transform_1, window_bounds = array<i64: 8, 32>}, {transform_indices = @transform_2, window_bounds = array<i64: 8, 1>}, {pipeline_mode = #tpu.pipeline_mode<synchronous>, transform_indices = @transform_3, window_bounds = array<i64: 7, 32, 32>}, {pipeline_mode = #tpu.pipeline_mode<synchronous>, transform_indices = @transform_4, window_bounds = array<i64: 11, 1, 32>}, {pipeline_mode = #tpu.pipeline_mode<synchronous>, transform_indices = @transform_5, window_bounds = array<i64: 6, 32, 16>}, {pipeline_mode = #tpu.pipeline_mode<synchronous>, transform_indices = @transform_6, window_bounds = array<i64: 6, 1, 16>}, {pipeline_mode = #tpu.pipeline_mode<synchronous>, transform_indices = @transform_7, window_bounds = array<i64: 2, 16, 32>}, {pipeline_mode = #tpu.pipeline_mode<synchronous>, transform_indices = @transform_8, window_bounds = array<i64: 32, 128>}, {pipeline_mode = #tpu.pipeline_mode<synchronous>, transform_indices = @transform_9, window_bounds = array<i64: 1, 128>}, {pipeline_mode = #tpu.pipeline_mode<synchronous>, transform_indices = @transform_10, window_bounds = array<i64: 128, 32>}, {pipeline_mode = #tpu.pipeline_mode<synchronous>, transform_indices = @transform_11, window_bounds = array<i64: 2, 32, 32, 32>}, {transform_indices = @transform_12, window_bounds = array<i64: 8, 1>}]} {
    %c0 = arith.constant 0 : index
    %c0_0 = arith.constant 0 : index
    %c0_1 = arith.constant 0 : index
    %0 = vector.load %arg1[%c0, %c0_0, %c0_1] : memref<8x8x32xbf16, #tpu.memory_space<vmem>>, vector<8x8x32xbf16>
    %1 = vector.shape_cast %0 : vector<8x8x32xbf16> to vector<64x32xbf16>
    %c0_2 = arith.constant 0 : index
    %c0_3 = arith.constant 0 : index
    %c0_4 = arith.constant 0 : index
    %2 = vector.load %arg4[%c0_2, %c0_3, %c0_4] : memref<7x32x32xbf16, #tpu.memory_space<vmem>>, vector<1x32x32xbf16>
    %3 = vector.shape_cast %2 : vector<1x32x32xbf16> to vector<32x32xbf16>
    %cst = arith.constant dense<0.000000e+00> : vector<64x32xf32>
    %4 = tpu.matmul %1, %3, %cst {dimension_numbers = #tpu.dot_dimension_numbers<[1], [0], [0], [1], [0, 0, 1, 1], [], []>} : vector<64x32xbf16>, vector<32x32xbf16>, vector<64x32xf32> -> vector<64x32xf32>
    %c0_5 = arith.constant 0 : index
    %c0_6 = arith.constant 0 : index
    %c0_7 = arith.constant 0 : index
    %5 = vector.load %arg5[%c0_5, %c0_6, %c0_7] : memref<11x1x32xf32, #tpu.memory_space<vmem>>, vector<1x1x32xf32>
    %6 = vector.shape_cast %5 : vector<1x1x32xf32> to vector<1x32xf32>
    %7 = vector.broadcast %6 : vector<1x32xf32> to vector<64x32xf32>
    %8 = arith.addf %4, %7 : vector<64x32xf32>
    %9 = math.tanh %8 : vector<64x32xf32>
    %c0_8 = arith.constant 0 : index
    %c0_9 = arith.constant 0 : index
    %10 = vector.load %arg2[%c0_8, %c0_9] : memref<8x32xbf16, #tpu.memory_space<vmem>>, vector<8x32xbf16>
    %c1 = arith.constant 1 : index
    %c0_10 = arith.constant 0 : index
    %c0_11 = arith.constant 0 : index
    %11 = vector.load %arg4[%c1, %c0_10, %c0_11] : memref<7x32x32xbf16, #tpu.memory_space<vmem>>, vector<1x32x32xbf16>
    %12 = vector.shape_cast %11 : vector<1x32x32xbf16> to vector<32x32xbf16>
    %cst_12 = arith.constant dense<0.000000e+00> : vector<8x32xf32>
    %13 = tpu.matmul %10, %12, %cst_12 {dimension_numbers = #tpu.dot_dimension_numbers<[1], [0], [0], [1], [0, 0, 1, 1], [], []>} : vector<8x32xbf16>, vector<32x32xbf16>, vector<8x32xf32> -> vector<8x32xf32>
    %c1_13 = arith.constant 1 : index
    %c0_14 = arith.constant 0 : index
    %c0_15 = arith.constant 0 : index
    %14 = vector.load %arg5[%c1_13, %c0_14, %c0_15] : memref<11x1x32xf32, #tpu.memory_space<vmem>>, vector<1x1x32xf32>
    %15 = vector.shape_cast %14 : vector<1x1x32xf32> to vector<1x32xf32>
    %16 = vector.broadcast %15 : vector<1x32xf32> to vector<8x32xf32>
    %17 = arith.addf %13, %16 : vector<8x32xf32>
    %18 = math.tanh %17 : vector<8x32xf32>
    %c2 = arith.constant 2 : index
    %c0_16 = arith.constant 0 : index
    %c0_17 = arith.constant 0 : index
    %19 = vector.load %arg4[%c2, %c0_16, %c0_17] : memref<7x32x32xbf16, #tpu.memory_space<vmem>>, vector<1x32x32xbf16>
    %20 = vector.shape_cast %19 : vector<1x32x32xbf16> to vector<32x32xbf16>
    %21 = arith.truncf %18 : vector<8x32xf32> to vector<8x32xbf16>
    %cst_18 = arith.constant dense<0.000000e+00> : vector<8x32xf32>
    %22 = tpu.matmul %21, %20, %cst_18 {dimension_numbers = #tpu.dot_dimension_numbers<[1], [0], [0], [1], [0, 0, 1, 1], [], []>} : vector<8x32xbf16>, vector<32x32xbf16>, vector<8x32xf32> -> vector<8x32xf32>
    %c2_19 = arith.constant 2 : index
    %c0_20 = arith.constant 0 : index
    %c0_21 = arith.constant 0 : index
    %23 = vector.load %arg5[%c2_19, %c0_20, %c0_21] : memref<11x1x32xf32, #tpu.memory_space<vmem>>, vector<1x1x32xf32>
    %24 = vector.shape_cast %23 : vector<1x1x32xf32> to vector<1x32xf32>
    %25 = vector.broadcast %24 : vector<1x32xf32> to vector<8x32xf32>
    %26 = arith.addf %22, %25 : vector<8x32xf32>
    %c0_22 = arith.constant 0 : index
    %c0_23 = arith.constant 0 : index
    %c0_24 = arith.constant 0 : index
    %27 = vector.load %arg6[%c0_22, %c0_23, %c0_24] : memref<6x32x16xbf16, #tpu.memory_space<vmem>>, vector<1x32x16xbf16>
    %28 = vector.shape_cast %27 : vector<1x32x16xbf16> to vector<32x16xbf16>
    %29 = arith.truncf %9 : vector<64x32xf32> to vector<64x32xbf16>
    %cst_25 = arith.constant dense<0.000000e+00> : vector<64x16xf32>
    %30 = tpu.matmul %29, %28, %cst_25 {dimension_numbers = #tpu.dot_dimension_numbers<[1], [0], [0], [1], [0, 0, 1, 1], [], []>} : vector<64x32xbf16>, vector<32x16xbf16>, vector<64x16xf32> -> vector<64x16xf32>
    %c0_26 = arith.constant 0 : index
    %c0_27 = arith.constant 0 : index
    %c0_28 = arith.constant 0 : index
    %31 = vector.load %arg7[%c0_26, %c0_27, %c0_28] : memref<6x1x16xf32, #tpu.memory_space<vmem>>, vector<1x1x16xf32>
    %32 = vector.shape_cast %31 : vector<1x1x16xf32> to vector<1x16xf32>
    %33 = vector.broadcast %32 : vector<1x16xf32> to vector<64x16xf32>
    %34 = arith.addf %30, %33 : vector<64x16xf32>
    %35 = vector.shape_cast %34 : vector<64x16xf32> to vector<8x8x16xf32>
    %c1_29 = arith.constant 1 : index
    %c0_30 = arith.constant 0 : index
    %c0_31 = arith.constant 0 : index
    %36 = vector.load %arg6[%c1_29, %c0_30, %c0_31] : memref<6x32x16xbf16, #tpu.memory_space<vmem>>, vector<1x32x16xbf16>
    %37 = vector.shape_cast %36 : vector<1x32x16xbf16> to vector<32x16xbf16>
    %38 = arith.truncf %9 : vector<64x32xf32> to vector<64x32xbf16>
    %cst_32 = arith.constant dense<0.000000e+00> : vector<64x16xf32>
    %39 = tpu.matmul %38, %37, %cst_32 {dimension_numbers = #tpu.dot_dimension_numbers<[1], [0], [0], [1], [0, 0, 1, 1], [], []>} : vector<64x32xbf16>, vector<32x16xbf16>, vector<64x16xf32> -> vector<64x16xf32>
    %c1_33 = arith.constant 1 : index
    %c0_34 = arith.constant 0 : index
    %c0_35 = arith.constant 0 : index
    %40 = vector.load %arg7[%c1_33, %c0_34, %c0_35] : memref<6x1x16xf32, #tpu.memory_space<vmem>>, vector<1x1x16xf32>
    %41 = vector.shape_cast %40 : vector<1x1x16xf32> to vector<1x16xf32>
    %42 = vector.broadcast %41 : vector<1x16xf32> to vector<64x16xf32>
    %43 = arith.addf %39, %42 : vector<64x16xf32>
    %44 = vector.shape_cast %43 : vector<64x16xf32> to vector<8x8x16xf32>
    %c2_36 = arith.constant 2 : index
    %c0_37 = arith.constant 0 : index
    %c0_38 = arith.constant 0 : index
    %45 = vector.load %arg6[%c2_36, %c0_37, %c0_38] : memref<6x32x16xbf16, #tpu.memory_space<vmem>>, vector<1x32x16xbf16>
    %46 = vector.shape_cast %45 : vector<1x32x16xbf16> to vector<32x16xbf16>
    %47 = arith.truncf %9 : vector<64x32xf32> to vector<64x32xbf16>
    %cst_39 = arith.constant dense<0.000000e+00> : vector<64x16xf32>
    %48 = tpu.matmul %47, %46, %cst_39 {dimension_numbers = #tpu.dot_dimension_numbers<[1], [0], [0], [1], [0, 0, 1, 1], [], []>} : vector<64x32xbf16>, vector<32x16xbf16>, vector<64x16xf32> -> vector<64x16xf32>
    %c2_40 = arith.constant 2 : index
    %c0_41 = arith.constant 0 : index
    %c0_42 = arith.constant 0 : index
    %49 = vector.load %arg7[%c2_40, %c0_41, %c0_42] : memref<6x1x16xf32, #tpu.memory_space<vmem>>, vector<1x1x16xf32>
    %50 = vector.shape_cast %49 : vector<1x1x16xf32> to vector<1x16xf32>
    %51 = vector.broadcast %50 : vector<1x16xf32> to vector<64x16xf32>
    %52 = arith.addf %48, %51 : vector<64x16xf32>
    %53 = vector.shape_cast %52 : vector<64x16xf32> to vector<8x8x16xf32>
    %54 = arith.truncf %35 : vector<8x8x16xf32> to vector<8x8x16xbf16>
    %55 = arith.truncf %44 : vector<8x8x16xf32> to vector<8x8x16xbf16>
    %cst_43 = arith.constant dense<0.000000e+00> : vector<8x8x8xf32>
    %56 = tpu.matmul %54, %55, %cst_43 {dimension_numbers = #tpu.dot_dimension_numbers<[2], [2], [1], [1], [0, 0, 0, 1, 1, 1], [0], [0]>} : vector<8x8x16xbf16>, vector<8x8x16xbf16>, vector<8x8x8xf32> -> vector<8x8x8xf32>
    %cst_44 = arith.constant 2.500000e-01 : f32
    %57 = vector.broadcast %cst_44 : f32 to vector<8x8x8xf32>
    %58 = arith.mulf %56, %57 : vector<8x8x8xf32>
    %cst_45 = arith.constant dense<0xFF800000> : vector<8x8xf32>
    %59 = vector.multi_reduction <maximumf>, %58, %cst_45 [2] : vector<8x8x8xf32> to vector<8x8xf32>
    %60 = vector.shape_cast %59 : vector<8x8xf32> to vector<8x8x1xf32>
    %61 = vector.broadcast %60 : vector<8x8x1xf32> to vector<8x8x8xf32>
    %62 = arith.subf %58, %61 : vector<8x8x8xf32>
    %63 = math.exp %62 : vector<8x8x8xf32>
    %cst_46 = arith.constant dense<0.000000e+00> : vector<8x8xf32>
    %64 = vector.multi_reduction <add>, %63, %cst_46 [2] : vector<8x8x8xf32> to vector<8x8xf32>
    %65 = vector.shape_cast %64 : vector<8x8xf32> to vector<8x8x1xf32>
    %66 = tpu.reciprocal %65 {approx = true} : vector<8x8x1xf32> -> vector<8x8x1xf32>
    %67 = vector.broadcast %66 : vector<8x8x1xf32> to vector<8x8x8xf32>
    %68 = arith.mulf %63, %67 : vector<8x8x8xf32>
    %69 = arith.truncf %68 : vector<8x8x8xf32> to vector<8x8x8xbf16>
    %70 = arith.truncf %53 : vector<8x8x16xf32> to vector<8x8x16xbf16>
    %cst_47 = arith.constant dense<0.000000e+00> : vector<8x8x16xf32>
    %71 = tpu.matmul %69, %70, %cst_47 {dimension_numbers = #tpu.dot_dimension_numbers<[2], [1], [1], [2], [0, 0, 0, 1, 1, 2], [0], [0]>} : vector<8x8x8xbf16>, vector<8x8x16xbf16>, vector<8x8x16xf32> -> vector<8x8x16xf32>
    %72 = vector.shape_cast %71 : vector<8x8x16xf32> to vector<64x16xf32>
    %c0_48 = arith.constant 0 : index
    %c0_49 = arith.constant 0 : index
    %c0_50 = arith.constant 0 : index
    %73 = vector.load %arg8[%c0_48, %c0_49, %c0_50] : memref<2x16x32xbf16, #tpu.memory_space<vmem>>, vector<1x16x32xbf16>
    %74 = vector.shape_cast %73 : vector<1x16x32xbf16> to vector<16x32xbf16>
    %75 = arith.truncf %72 : vector<64x16xf32> to vector<64x16xbf16>
    %cst_51 = arith.constant dense<0.000000e+00> : vector<64x32xf32>
    %76 = tpu.matmul %75, %74, %cst_51 {dimension_numbers = #tpu.dot_dimension_numbers<[1], [0], [0], [1], [0, 0, 1, 1], [], []>} : vector<64x16xbf16>, vector<16x32xbf16>, vector<64x32xf32> -> vector<64x32xf32>
    %c3 = arith.constant 3 : index
    %c0_52 = arith.constant 0 : index
    %c0_53 = arith.constant 0 : index
    %77 = vector.load %arg6[%c3, %c0_52, %c0_53] : memref<6x32x16xbf16, #tpu.memory_space<vmem>>, vector<1x32x16xbf16>
    %78 = vector.shape_cast %77 : vector<1x32x16xbf16> to vector<32x16xbf16>
    %79 = arith.truncf %9 : vector<64x32xf32> to vector<64x32xbf16>
    %cst_54 = arith.constant dense<0.000000e+00> : vector<64x16xf32>
    %80 = tpu.matmul %79, %78, %cst_54 {dimension_numbers = #tpu.dot_dimension_numbers<[1], [0], [0], [1], [0, 0, 1, 1], [], []>} : vector<64x32xbf16>, vector<32x16xbf16>, vector<64x16xf32> -> vector<64x16xf32>
    %c3_55 = arith.constant 3 : index
    %c0_56 = arith.constant 0 : index
    %c0_57 = arith.constant 0 : index
    %81 = vector.load %arg7[%c3_55, %c0_56, %c0_57] : memref<6x1x16xf32, #tpu.memory_space<vmem>>, vector<1x1x16xf32>
    %82 = vector.shape_cast %81 : vector<1x1x16xf32> to vector<1x16xf32>
    %83 = vector.broadcast %82 : vector<1x16xf32> to vector<64x16xf32>
    %84 = arith.addf %80, %83 : vector<64x16xf32>
    %85 = vector.shape_cast %84 : vector<64x16xf32> to vector<8x8x16xf32>
    %c4 = arith.constant 4 : index
    %c0_58 = arith.constant 0 : index
    %c0_59 = arith.constant 0 : index
    %86 = vector.load %arg6[%c4, %c0_58, %c0_59] : memref<6x32x16xbf16, #tpu.memory_space<vmem>>, vector<1x32x16xbf16>
    %87 = vector.shape_cast %86 : vector<1x32x16xbf16> to vector<32x16xbf16>
    %88 = arith.truncf %9 : vector<64x32xf32> to vector<64x32xbf16>
    %cst_60 = arith.constant dense<0.000000e+00> : vector<64x16xf32>
    %89 = tpu.matmul %88, %87, %cst_60 {dimension_numbers = #tpu.dot_dimension_numbers<[1], [0], [0], [1], [0, 0, 1, 1], [], []>} : vector<64x32xbf16>, vector<32x16xbf16>, vector<64x16xf32> -> vector<64x16xf32>
    %c4_61 = arith.constant 4 : index
    %c0_62 = arith.constant 0 : index
    %c0_63 = arith.constant 0 : index
    %90 = vector.load %arg7[%c4_61, %c0_62, %c0_63] : memref<6x1x16xf32, #tpu.memory_space<vmem>>, vector<1x1x16xf32>
    %91 = vector.shape_cast %90 : vector<1x1x16xf32> to vector<1x16xf32>
    %92 = vector.broadcast %91 : vector<1x16xf32> to vector<64x16xf32>
    %93 = arith.addf %89, %92 : vector<64x16xf32>
    %94 = vector.shape_cast %93 : vector<64x16xf32> to vector<8x8x16xf32>
    %c5 = arith.constant 5 : index
    %c0_64 = arith.constant 0 : index
    %c0_65 = arith.constant 0 : index
    %95 = vector.load %arg6[%c5, %c0_64, %c0_65] : memref<6x32x16xbf16, #tpu.memory_space<vmem>>, vector<1x32x16xbf16>
    %96 = vector.shape_cast %95 : vector<1x32x16xbf16> to vector<32x16xbf16>
    %97 = arith.truncf %9 : vector<64x32xf32> to vector<64x32xbf16>
    %cst_66 = arith.constant dense<0.000000e+00> : vector<64x16xf32>
    %98 = tpu.matmul %97, %96, %cst_66 {dimension_numbers = #tpu.dot_dimension_numbers<[1], [0], [0], [1], [0, 0, 1, 1], [], []>} : vector<64x32xbf16>, vector<32x16xbf16>, vector<64x16xf32> -> vector<64x16xf32>
    %c5_67 = arith.constant 5 : index
    %c0_68 = arith.constant 0 : index
    %c0_69 = arith.constant 0 : index
    %99 = vector.load %arg7[%c5_67, %c0_68, %c0_69] : memref<6x1x16xf32, #tpu.memory_space<vmem>>, vector<1x1x16xf32>
    %100 = vector.shape_cast %99 : vector<1x1x16xf32> to vector<1x16xf32>
    %101 = vector.broadcast %100 : vector<1x16xf32> to vector<64x16xf32>
    %102 = arith.addf %98, %101 : vector<64x16xf32>
    %103 = vector.shape_cast %102 : vector<64x16xf32> to vector<8x8x16xf32>
    %104 = arith.truncf %85 : vector<8x8x16xf32> to vector<8x8x16xbf16>
    %105 = arith.truncf %94 : vector<8x8x16xf32> to vector<8x8x16xbf16>
    %cst_70 = arith.constant dense<0.000000e+00> : vector<8x8x8xf32>
    %106 = tpu.matmul %104, %105, %cst_70 {dimension_numbers = #tpu.dot_dimension_numbers<[2], [2], [1], [1], [0, 0, 0, 1, 1, 1], [0], [0]>} : vector<8x8x16xbf16>, vector<8x8x16xbf16>, vector<8x8x8xf32> -> vector<8x8x8xf32>
    %cst_71 = arith.constant 2.500000e-01 : f32
    %107 = vector.broadcast %cst_71 : f32 to vector<8x8x8xf32>
    %108 = arith.mulf %106, %107 : vector<8x8x8xf32>
    %cst_72 = arith.constant dense<0xFF800000> : vector<8x8xf32>
    %109 = vector.multi_reduction <maximumf>, %108, %cst_72 [2] : vector<8x8x8xf32> to vector<8x8xf32>
    %110 = vector.shape_cast %109 : vector<8x8xf32> to vector<8x8x1xf32>
    %111 = vector.broadcast %110 : vector<8x8x1xf32> to vector<8x8x8xf32>
    %112 = arith.subf %108, %111 : vector<8x8x8xf32>
    %113 = math.exp %112 : vector<8x8x8xf32>
    %cst_73 = arith.constant dense<0.000000e+00> : vector<8x8xf32>
    %114 = vector.multi_reduction <add>, %113, %cst_73 [2] : vector<8x8x8xf32> to vector<8x8xf32>
    %115 = vector.shape_cast %114 : vector<8x8xf32> to vector<8x8x1xf32>
    %116 = tpu.reciprocal %115 {approx = true} : vector<8x8x1xf32> -> vector<8x8x1xf32>
    %117 = vector.broadcast %116 : vector<8x8x1xf32> to vector<8x8x8xf32>
    %118 = arith.mulf %113, %117 : vector<8x8x8xf32>
    %119 = arith.truncf %118 : vector<8x8x8xf32> to vector<8x8x8xbf16>
    %120 = arith.truncf %103 : vector<8x8x16xf32> to vector<8x8x16xbf16>
    %cst_74 = arith.constant dense<0.000000e+00> : vector<8x8x16xf32>
    %121 = tpu.matmul %119, %120, %cst_74 {dimension_numbers = #tpu.dot_dimension_numbers<[2], [1], [1], [2], [0, 0, 0, 1, 1, 2], [0], [0]>} : vector<8x8x8xbf16>, vector<8x8x16xbf16>, vector<8x8x16xf32> -> vector<8x8x16xf32>
    %122 = vector.shape_cast %121 : vector<8x8x16xf32> to vector<64x16xf32>
    %c1_75 = arith.constant 1 : index
    %c0_76 = arith.constant 0 : index
    %c0_77 = arith.constant 0 : index
    %123 = vector.load %arg8[%c1_75, %c0_76, %c0_77] : memref<2x16x32xbf16, #tpu.memory_space<vmem>>, vector<1x16x32xbf16>
    %124 = vector.shape_cast %123 : vector<1x16x32xbf16> to vector<16x32xbf16>
    %125 = arith.truncf %122 : vector<64x16xf32> to vector<64x16xbf16>
    %cst_78 = arith.constant dense<0.000000e+00> : vector<64x32xf32>
    %126 = tpu.matmul %125, %124, %cst_78 {dimension_numbers = #tpu.dot_dimension_numbers<[1], [0], [0], [1], [0, 0, 1, 1], [], []>} : vector<64x16xbf16>, vector<16x32xbf16>, vector<64x32xf32> -> vector<64x32xf32>
    %127 = arith.addf %76, %126 : vector<64x32xf32>
    %c3_79 = arith.constant 3 : index
    %c0_80 = arith.constant 0 : index
    %c0_81 = arith.constant 0 : index
    %128 = vector.load %arg5[%c3_79, %c0_80, %c0_81] : memref<11x1x32xf32, #tpu.memory_space<vmem>>, vector<1x1x32xf32>
    %129 = vector.shape_cast %128 : vector<1x1x32xf32> to vector<1x32xf32>
    %130 = vector.broadcast %129 : vector<1x32xf32> to vector<64x32xf32>
    %131 = arith.addf %127, %130 : vector<64x32xf32>
    %132 = arith.addf %9, %131 : vector<64x32xf32>
    %c4_82 = arith.constant 4 : index
    %c0_83 = arith.constant 0 : index
    %c0_84 = arith.constant 0 : index
    %133 = vector.load %arg5[%c4_82, %c0_83, %c0_84] : memref<11x1x32xf32, #tpu.memory_space<vmem>>, vector<1x1x32xf32>
    %134 = vector.shape_cast %133 : vector<1x1x32xf32> to vector<1x32xf32>
    %c5_85 = arith.constant 5 : index
    %c0_86 = arith.constant 0 : index
    %c0_87 = arith.constant 0 : index
    %135 = vector.load %arg5[%c5_85, %c0_86, %c0_87] : memref<11x1x32xf32, #tpu.memory_space<vmem>>, vector<1x1x32xf32>
    %136 = vector.shape_cast %135 : vector<1x1x32xf32> to vector<1x32xf32>
    %cst_88 = arith.constant dense<0.000000e+00> : vector<64xf32>
    %137 = vector.multi_reduction <add>, %132, %cst_88 [1] : vector<64x32xf32> to vector<64xf32>
    %138 = vector.shape_cast %137 : vector<64xf32> to vector<64x1xf32>
    %cst_89 = arith.constant 3.200000e+01 : f32
    %139 = vector.broadcast %cst_89 : f32 to vector<64x1xf32>
    %140 = arith.divf %138, %139 : vector<64x1xf32>
    %141 = vector.broadcast %140 : vector<64x1xf32> to vector<64x32xf32>
    %142 = arith.subf %132, %141 : vector<64x32xf32>
    %143 = arith.mulf %142, %142 : vector<64x32xf32>
    %cst_90 = arith.constant dense<0.000000e+00> : vector<64xf32>
    %144 = vector.multi_reduction <add>, %143, %cst_90 [1] : vector<64x32xf32> to vector<64xf32>
    %145 = vector.shape_cast %144 : vector<64xf32> to vector<64x1xf32>
    %cst_91 = arith.constant 3.200000e+01 : f32
    %146 = vector.broadcast %cst_91 : f32 to vector<64x1xf32>
    %147 = arith.divf %145, %146 : vector<64x1xf32>
    %cst_92 = arith.constant 9.99999974E-6 : f32
    %148 = vector.broadcast %cst_92 : f32 to vector<64x1xf32>
    %149 = arith.addf %147, %148 : vector<64x1xf32>
    %150 = math.rsqrt %149 : vector<64x1xf32>
    %151 = vector.broadcast %150 : vector<64x1xf32> to vector<64x32xf32>
    %152 = arith.mulf %142, %151 : vector<64x32xf32>
    %153 = vector.broadcast %134 : vector<1x32xf32> to vector<64x32xf32>
    %154 = arith.mulf %152, %153 : vector<64x32xf32>
    %155 = vector.broadcast %136 : vector<1x32xf32> to vector<64x32xf32>
    %156 = arith.addf %154, %155 : vector<64x32xf32>
    %c0_93 = arith.constant 0 : index
    %c0_94 = arith.constant 0 : index
    %157 = vector.load %arg9[%c0_93, %c0_94] : memref<32x128xbf16, #tpu.memory_space<vmem>>, vector<32x128xbf16>
    %158 = arith.truncf %156 : vector<64x32xf32> to vector<64x32xbf16>
    %cst_95 = arith.constant dense<0.000000e+00> : vector<64x128xf32>
    %159 = tpu.matmul %158, %157, %cst_95 {dimension_numbers = #tpu.dot_dimension_numbers<[1], [0], [0], [1], [0, 0, 1, 1], [], []>} : vector<64x32xbf16>, vector<32x128xbf16>, vector<64x128xf32> -> vector<64x128xf32>
    %c0_96 = arith.constant 0 : index
    %c0_97 = arith.constant 0 : index
    %160 = vector.load %arg10[%c0_96, %c0_97] : memref<1x128xf32, #tpu.memory_space<vmem>>, vector<1x128xf32>
    %161 = vector.broadcast %160 : vector<1x128xf32> to vector<64x128xf32>
    %162 = arith.addf %159, %161 : vector<64x128xf32>
    %cst_98 = arith.constant 0.000000e+00 : f32
    %163 = vector.broadcast %cst_98 : f32 to vector<64x128xf32>
    %164 = arith.maximumf %162, %163 : vector<64x128xf32>
    %c0_99 = arith.constant 0 : index
    %c0_100 = arith.constant 0 : index
    %165 = vector.load %arg11[%c0_99, %c0_100] : memref<128x32xbf16, #tpu.memory_space<vmem>>, vector<128x32xbf16>
    %166 = arith.truncf %164 : vector<64x128xf32> to vector<64x128xbf16>
    %cst_101 = arith.constant dense<0.000000e+00> : vector<64x32xf32>
    %167 = tpu.matmul %166, %165, %cst_101 {dimension_numbers = #tpu.dot_dimension_numbers<[1], [0], [0], [1], [0, 0, 1, 1], [], []>} : vector<64x128xbf16>, vector<128x32xbf16>, vector<64x32xf32> -> vector<64x32xf32>
    %c6 = arith.constant 6 : index
    %c0_102 = arith.constant 0 : index
    %c0_103 = arith.constant 0 : index
    %168 = vector.load %arg5[%c6, %c0_102, %c0_103] : memref<11x1x32xf32, #tpu.memory_space<vmem>>, vector<1x1x32xf32>
    %169 = vector.shape_cast %168 : vector<1x1x32xf32> to vector<1x32xf32>
    %170 = vector.broadcast %169 : vector<1x32xf32> to vector<64x32xf32>
    %171 = arith.addf %167, %170 : vector<64x32xf32>
    %172 = arith.addf %156, %171 : vector<64x32xf32>
    %c7 = arith.constant 7 : index
    %c0_104 = arith.constant 0 : index
    %c0_105 = arith.constant 0 : index
    %173 = vector.load %arg5[%c7, %c0_104, %c0_105] : memref<11x1x32xf32, #tpu.memory_space<vmem>>, vector<1x1x32xf32>
    %174 = vector.shape_cast %173 : vector<1x1x32xf32> to vector<1x32xf32>
    %c8 = arith.constant 8 : index
    %c0_106 = arith.constant 0 : index
    %c0_107 = arith.constant 0 : index
    %175 = vector.load %arg5[%c8, %c0_106, %c0_107] : memref<11x1x32xf32, #tpu.memory_space<vmem>>, vector<1x1x32xf32>
    %176 = vector.shape_cast %175 : vector<1x1x32xf32> to vector<1x32xf32>
    %cst_108 = arith.constant dense<0.000000e+00> : vector<64xf32>
    %177 = vector.multi_reduction <add>, %172, %cst_108 [1] : vector<64x32xf32> to vector<64xf32>
    %178 = vector.shape_cast %177 : vector<64xf32> to vector<64x1xf32>
    %cst_109 = arith.constant 3.200000e+01 : f32
    %179 = vector.broadcast %cst_109 : f32 to vector<64x1xf32>
    %180 = arith.divf %178, %179 : vector<64x1xf32>
    %181 = vector.broadcast %180 : vector<64x1xf32> to vector<64x32xf32>
    %182 = arith.subf %172, %181 : vector<64x32xf32>
    %183 = arith.mulf %182, %182 : vector<64x32xf32>
    %cst_110 = arith.constant dense<0.000000e+00> : vector<64xf32>
    %184 = vector.multi_reduction <add>, %183, %cst_110 [1] : vector<64x32xf32> to vector<64xf32>
    %185 = vector.shape_cast %184 : vector<64xf32> to vector<64x1xf32>
    %cst_111 = arith.constant 3.200000e+01 : f32
    %186 = vector.broadcast %cst_111 : f32 to vector<64x1xf32>
    %187 = arith.divf %185, %186 : vector<64x1xf32>
    %cst_112 = arith.constant 9.99999974E-6 : f32
    %188 = vector.broadcast %cst_112 : f32 to vector<64x1xf32>
    %189 = arith.addf %187, %188 : vector<64x1xf32>
    %190 = math.rsqrt %189 : vector<64x1xf32>
    %191 = vector.broadcast %190 : vector<64x1xf32> to vector<64x32xf32>
    %192 = arith.mulf %182, %191 : vector<64x32xf32>
    %193 = vector.broadcast %174 : vector<1x32xf32> to vector<64x32xf32>
    %194 = arith.mulf %192, %193 : vector<64x32xf32>
    %195 = vector.broadcast %176 : vector<1x32xf32> to vector<64x32xf32>
    %196 = arith.addf %194, %195 : vector<64x32xf32>
    %c0_113 = arith.constant 0 : index
    %c0_114 = arith.constant 0 : index
    %197 = vector.load %arg3[%c0_113, %c0_114] : memref<8x1xi32, #tpu.memory_space<vmem>>, vector<8x1xi32>
    %198 = vector.shape_cast %197 : vector<8x1xi32> to vector<8x1x1xi32>
    %199 = tpu.iota {dimensions = array<i32: 1>} : vector<8x8x32xi32>
    %200 = vector.broadcast %198 : vector<8x1x1xi32> to vector<8x8x32xi32>
    %201 = arith.cmpi eq, %199, %200 : vector<8x8x32xi32>
    %202 = vector.shape_cast %196 : vector<64x32xf32> to vector<8x8x32xf32>
    %cst_115 = arith.constant 0.000000e+00 : f32
    %203 = vector.broadcast %cst_115 : f32 to vector<8x8x32xf32>
    %204 = arith.select %201, %202, %203 : vector<8x8x32xi1>, vector<8x8x32xf32>
    %cst_116 = arith.constant dense<0.000000e+00> : vector<8x32xf32>
    %205 = vector.multi_reduction <add>, %204, %cst_116 [1] : vector<8x8x32xf32> to vector<8x32xf32>
    %206 = vector.shape_cast %9 : vector<64x32xf32> to vector<8x8x32xf32>
    %cst_117 = arith.constant 0.000000e+00 : f32
    %207 = vector.broadcast %cst_117 : f32 to vector<8x8x32xf32>
    %208 = arith.select %201, %206, %207 : vector<8x8x32xi1>, vector<8x8x32xf32>
    %cst_118 = arith.constant dense<0.000000e+00> : vector<8x32xf32>
    %209 = vector.multi_reduction <add>, %208, %cst_118 [1] : vector<8x8x32xf32> to vector<8x32xf32>
    %210 = tpu.transpose %209, [1, 0] : vector<8x32xf32> -> vector<32x8xf32>
    %211 = vector.shape_cast %210 : vector<32x8xf32> to vector<32x8x1xf32>
    %212 = vector.shape_cast %205 : vector<8x32xf32> to vector<1x8x32xf32>
    %213 = vector.broadcast %211 : vector<32x8x1xf32> to vector<32x8x32xf32>
    %214 = vector.broadcast %212 : vector<1x8x32xf32> to vector<32x8x32xf32>
    %215 = arith.mulf %213, %214 : vector<32x8x32xf32>
    %c0_119 = arith.constant 0 : index
    %c0_120 = arith.constant 0 : index
    %c0_121 = arith.constant 0 : index
    %c0_122 = arith.constant 0 : index
    %216 = vector.load %arg12[%c0_119, %c0_120, %c0_121, %c0_122] : memref<2x32x32x32xbf16, #tpu.memory_space<vmem>>, vector<1x32x32x32xbf16>
    %217 = vector.shape_cast %216 : vector<1x32x32x32xbf16> to vector<32x32x32xbf16>
    %218 = arith.truncf %215 : vector<32x8x32xf32> to vector<32x8x32xbf16>
    %cst_123 = arith.constant dense<0.000000e+00> : vector<32x8x32xf32>
    %219 = tpu.matmul %218, %217, %cst_123 {dimension_numbers = #tpu.dot_dimension_numbers<[2], [1], [1], [2], [0, 0, 0, 1, 1, 2], [0], [0]>} : vector<32x8x32xbf16>, vector<32x32x32xbf16>, vector<32x8x32xf32> -> vector<32x8x32xf32>
    %cst_124 = arith.constant dense<0.000000e+00> : vector<8x32xf32>
    %220 = vector.multi_reduction <add>, %219, %cst_124 [0] : vector<32x8x32xf32> to vector<8x32xf32>
    %c3_125 = arith.constant 3 : index
    %c0_126 = arith.constant 0 : index
    %c0_127 = arith.constant 0 : index
    %221 = vector.load %arg4[%c3_125, %c0_126, %c0_127] : memref<7x32x32xbf16, #tpu.memory_space<vmem>>, vector<1x32x32xbf16>
    %222 = vector.shape_cast %221 : vector<1x32x32xbf16> to vector<32x32xbf16>
    %223 = arith.truncf %205 : vector<8x32xf32> to vector<8x32xbf16>
    %cst_128 = arith.constant dense<0.000000e+00> : vector<8x32xf32>
    %224 = tpu.matmul %223, %222, %cst_128 {dimension_numbers = #tpu.dot_dimension_numbers<[1], [0], [0], [1], [0, 0, 1, 1], [], []>} : vector<8x32xbf16>, vector<32x32xbf16>, vector<8x32xf32> -> vector<8x32xf32>
    %225 = arith.addf %220, %224 : vector<8x32xf32>
    %c5_129 = arith.constant 5 : index
    %c0_130 = arith.constant 0 : index
    %c0_131 = arith.constant 0 : index
    %226 = vector.load %arg4[%c5_129, %c0_130, %c0_131] : memref<7x32x32xbf16, #tpu.memory_space<vmem>>, vector<1x32x32xbf16>
    %227 = vector.shape_cast %226 : vector<1x32x32xbf16> to vector<32x32xbf16>
    %228 = arith.truncf %209 : vector<8x32xf32> to vector<8x32xbf16>
    %cst_132 = arith.constant dense<0.000000e+00> : vector<8x32xf32>
    %229 = tpu.matmul %228, %227, %cst_132 {dimension_numbers = #tpu.dot_dimension_numbers<[1], [0], [0], [1], [0, 0, 1, 1], [], []>} : vector<8x32xbf16>, vector<32x32xbf16>, vector<8x32xf32> -> vector<8x32xf32>
    %230 = arith.addf %225, %229 : vector<8x32xf32>
    %c9 = arith.constant 9 : index
    %c0_133 = arith.constant 0 : index
    %c0_134 = arith.constant 0 : index
    %231 = vector.load %arg5[%c9, %c0_133, %c0_134] : memref<11x1x32xf32, #tpu.memory_space<vmem>>, vector<1x1x32xf32>
    %232 = vector.shape_cast %231 : vector<1x1x32xf32> to vector<1x32xf32>
    %233 = vector.broadcast %232 : vector<1x32xf32> to vector<8x32xf32>
    %234 = arith.addf %230, %233 : vector<8x32xf32>
    %235 = math.tanh %234 : vector<8x32xf32>
    %236 = vector.shape_cast %210 : vector<32x8xf32> to vector<32x8x1xf32>
    %237 = vector.shape_cast %235 : vector<8x32xf32> to vector<1x8x32xf32>
    %238 = vector.broadcast %236 : vector<32x8x1xf32> to vector<32x8x32xf32>
    %239 = vector.broadcast %237 : vector<1x8x32xf32> to vector<32x8x32xf32>
    %240 = arith.mulf %238, %239 : vector<32x8x32xf32>
    %c1_135 = arith.constant 1 : index
    %c0_136 = arith.constant 0 : index
    %c0_137 = arith.constant 0 : index
    %c0_138 = arith.constant 0 : index
    %241 = vector.load %arg12[%c1_135, %c0_136, %c0_137, %c0_138] : memref<2x32x32x32xbf16, #tpu.memory_space<vmem>>, vector<1x32x32x32xbf16>
    %242 = vector.shape_cast %241 : vector<1x32x32x32xbf16> to vector<32x32x32xbf16>
    %243 = arith.truncf %240 : vector<32x8x32xf32> to vector<32x8x32xbf16>
    %cst_139 = arith.constant dense<0.000000e+00> : vector<32x8x32xf32>
    %244 = tpu.matmul %243, %242, %cst_139 {dimension_numbers = #tpu.dot_dimension_numbers<[2], [1], [1], [2], [0, 0, 0, 1, 1, 2], [0], [0]>} : vector<32x8x32xbf16>, vector<32x32x32xbf16>, vector<32x8x32xf32> -> vector<32x8x32xf32>
    %cst_140 = arith.constant dense<0.000000e+00> : vector<8x32xf32>
    %245 = vector.multi_reduction <add>, %244, %cst_140 [0] : vector<32x8x32xf32> to vector<8x32xf32>
    %c4_141 = arith.constant 4 : index
    %c0_142 = arith.constant 0 : index
    %c0_143 = arith.constant 0 : index
    %246 = vector.load %arg4[%c4_141, %c0_142, %c0_143] : memref<7x32x32xbf16, #tpu.memory_space<vmem>>, vector<1x32x32xbf16>
    %247 = vector.shape_cast %246 : vector<1x32x32xbf16> to vector<32x32xbf16>
    %248 = arith.truncf %235 : vector<8x32xf32> to vector<8x32xbf16>
    %cst_144 = arith.constant dense<0.000000e+00> : vector<8x32xf32>
    %249 = tpu.matmul %248, %247, %cst_144 {dimension_numbers = #tpu.dot_dimension_numbers<[1], [0], [0], [1], [0, 0, 1, 1], [], []>} : vector<8x32xbf16>, vector<32x32xbf16>, vector<8x32xf32> -> vector<8x32xf32>
    %250 = arith.addf %245, %249 : vector<8x32xf32>
    %c6_145 = arith.constant 6 : index
    %c0_146 = arith.constant 0 : index
    %c0_147 = arith.constant 0 : index
    %251 = vector.load %arg4[%c6_145, %c0_146, %c0_147] : memref<7x32x32xbf16, #tpu.memory_space<vmem>>, vector<1x32x32xbf16>
    %252 = vector.shape_cast %251 : vector<1x32x32xbf16> to vector<32x32xbf16>
    %253 = arith.truncf %209 : vector<8x32xf32> to vector<8x32xbf16>
    %cst_148 = arith.constant dense<0.000000e+00> : vector<8x32xf32>
    %254 = tpu.matmul %253, %252, %cst_148 {dimension_numbers = #tpu.dot_dimension_numbers<[1], [0], [0], [1], [0, 0, 1, 1], [], []>} : vector<8x32xbf16>, vector<32x32xbf16>, vector<8x32xf32> -> vector<8x32xf32>
    %255 = arith.addf %250, %254 : vector<8x32xf32>
    %c10 = arith.constant 10 : index
    %c0_149 = arith.constant 0 : index
    %c0_150 = arith.constant 0 : index
    %256 = vector.load %arg5[%c10, %c0_149, %c0_150] : memref<11x1x32xf32, #tpu.memory_space<vmem>>, vector<1x1x32xf32>
    %257 = vector.shape_cast %256 : vector<1x1x32xf32> to vector<1x32xf32>
    %258 = vector.broadcast %257 : vector<1x32xf32> to vector<8x32xf32>
    %259 = arith.addf %255, %258 : vector<8x32xf32>
    %260 = arith.mulf %259, %26 : vector<8x32xf32>
    %cst_151 = arith.constant dense<0.000000e+00> : vector<8xf32>
    %261 = vector.multi_reduction <add>, %260, %cst_151 [1] : vector<8x32xf32> to vector<8xf32>
    %262 = vector.shape_cast %261 : vector<8xf32> to vector<8x1xf32>
    %c0_152 = arith.constant 0 : index
    %c0_153 = arith.constant 0 : index
    %263 = vector.load %arg13[%c0_152, %c0_153] : memref<8x1xf32, #tpu.memory_space<vmem>>, vector<8x1xf32>
    tpu.vector_store %arg13[%c0_152, %c0_153], %262 {strides = array<i32>} : memref<8x1xf32, #tpu.memory_space<vmem>>, vector<8x1xf32>,
    return
  }
  func.func @transform_0(%arg0: i32) -> (i32, i32, i32) {
    %c0_i32 = arith.constant 0 : i32
    %c0_i32_0 = arith.constant 0 : i32
    %c0_i32_1 = arith.constant 0 : i32
    return %arg0, %c0_i32, %c0_i32_0 : i32, i32, i32
  }
  func.func @transform_1(%arg0: i32) -> (i32, i32) {
    %c0_i32 = arith.constant 0 : i32
    %c0_i32_0 = arith.constant 0 : i32
    return %arg0, %c0_i32 : i32, i32
  }
  func.func @transform_2(%arg0: i32) -> (i32, i32) {
    %c0_i32 = arith.constant 0 : i32
    %c0_i32_0 = arith.constant 0 : i32
    return %arg0, %c0_i32 : i32, i32
  }
  func.func @transform_3(%arg0: i32) -> (i32, i32, i32) {
    %c0_i32 = arith.constant 0 : i32
    %c0_i32_0 = arith.constant 0 : i32
    %c0_i32_1 = arith.constant 0 : i32
    %c0_i32_2 = arith.constant 0 : i32
    return %c0_i32, %c0_i32_0, %c0_i32_1 : i32, i32, i32
  }
  func.func @transform_4(%arg0: i32) -> (i32, i32, i32) {
    %c0_i32 = arith.constant 0 : i32
    %c0_i32_0 = arith.constant 0 : i32
    %c0_i32_1 = arith.constant 0 : i32
    %c0_i32_2 = arith.constant 0 : i32
    return %c0_i32, %c0_i32_0, %c0_i32_1 : i32, i32, i32
  }
  func.func @transform_5(%arg0: i32) -> (i32, i32, i32) {
    %c0_i32 = arith.constant 0 : i32
    %c0_i32_0 = arith.constant 0 : i32
    %c0_i32_1 = arith.constant 0 : i32
    %c0_i32_2 = arith.constant 0 : i32
    return %c0_i32, %c0_i32_0, %c0_i32_1 : i32, i32, i32
  }
  func.func @transform_6(%arg0: i32) -> (i32, i32, i32) {
    %c0_i32 = arith.constant 0 : i32
    %c0_i32_0 = arith.constant 0 : i32
    %c0_i32_1 = arith.constant 0 : i32
    %c0_i32_2 = arith.constant 0 : i32
    return %c0_i32, %c0_i32_0, %c0_i32_1 : i32, i32, i32
  }
  func.func @transform_7(%arg0: i32) -> (i32, i32, i32) {
    %c0_i32 = arith.constant 0 : i32
    %c0_i32_0 = arith.constant 0 : i32
    %c0_i32_1 = arith.constant 0 : i32
    %c0_i32_2 = arith.constant 0 : i32
    return %c0_i32, %c0_i32_0, %c0_i32_1 : i32, i32, i32
  }
  func.func @transform_8(%arg0: i32) -> (i32, i32) {
    %c0_i32 = arith.constant 0 : i32
    %c0_i32_0 = arith.constant 0 : i32
    %c0_i32_1 = arith.constant 0 : i32
    return %c0_i32, %c0_i32_0 : i32, i32
  }
  func.func @transform_9(%arg0: i32) -> (i32, i32) {
    %c0_i32 = arith.constant 0 : i32
    %c0_i32_0 = arith.constant 0 : i32
    %c0_i32_1 = arith.constant 0 : i32
    return %c0_i32, %c0_i32_0 : i32, i32
  }
  func.func @transform_10(%arg0: i32) -> (i32, i32) {
    %c0_i32 = arith.constant 0 : i32
    %c0_i32_0 = arith.constant 0 : i32
    %c0_i32_1 = arith.constant 0 : i32
    return %c0_i32, %c0_i32_0 : i32, i32
  }
  func.func @transform_11(%arg0: i32) -> (i32, i32, i32, i32) {
    %c0_i32 = arith.constant 0 : i32
    %c0_i32_0 = arith.constant 0 : i32
    %c0_i32_1 = arith.constant 0 : i32
    %c0_i32_2 = arith.constant 0 : i32
    %c0_i32_3 = arith.constant 0 : i32
    return %c0_i32, %c0_i32_0, %c0_i32_1, %c0_i32_2 : i32, i32, i32, i32
  }
  func.func @transform_12(%arg0: i32) -> (i32, i32) {
    %c0_i32 = arith.constant 0 : i32
    %c0_i32_0 = arith.constant 0 : i32
    return %arg0, %c0_i32 : i32, i32
  }
}

</mosaic_0001>

<llo_original>
// kernel: tpu_custom_call.1
$region0: #{tpu_custom_call.1}
  #allocation0 [shape = 'u32[]', space=smem, size = 0x4, offset = 0x4, fixed_abs, tag = 'smem constant byte address 0x4 - core index']
  #allocation1 [shape = 'u32[72,128]{1,0:T(1,128)}', space=vmem, size = 0x9000, scoped, tag = 'internal scratch']
  %s0 = inlined_call_operand.vmem [shape: bf16[8,8,32], index: 0, kind: input, shape index: {}]
  %s1 = inlined_call_operand.hbm [shape: bf16[8,32], index: 1, kind: input, shape index: {}]
  %s2 = inlined_call_operand.vmem [shape: s32[8,1], index: 2, kind: input, shape index: {}]
  %s3 = inlined_call_operand.vmem [shape: bf16[7,32,32], index: 3, kind: input, shape index: {}]
  %s4 = inlined_call_operand.hbm [shape: f32[11,1,32], index: 4, kind: input, shape index: {}]
  %s5 = inlined_call_operand.vmem [shape: bf16[6,32,16], index: 5, kind: input, shape index: {}]
  %s6 = inlined_call_operand.hbm [shape: f32[6,1,16], index: 6, kind: input, shape index: {}]
  %s7 = inlined_call_operand.vmem [shape: bf16[2,16,32], index: 7, kind: input, shape index: {}]
  %s8 = inlined_call_operand.vmem [shape: bf16[32,128], index: 8, kind: input, shape index: {}]
  %s9 = inlined_call_operand.vmem [shape: f32[1,128], index: 9, kind: input, shape index: {}]
  %s10 = inlined_call_operand.vmem [shape: bf16[128,32], index: 10, kind: input, shape index: {}]
  %s11 = inlined_call_operand.hbm [shape: bf16[2,32,32,32], index: 11, kind: input, shape index: {}]
  %s12 = inlined_call_operand.vmem [shape: f32[8,1], index: 12, kind: output, shape index: {}]
  %s13 = sld [smem:[#allocation0]]
  $region74: #{tpu_custom_call.1} parent=0
    _
  %s15 = ssub.s32 1, %s13
  %s16 = scalar_select 0, %s15, %s13
  $region1: #{tpu_custom_call.1} parent=0
    #allocation2 [shape = 'u8[2048]{0}', space=vmem, size = 0x800, scoped, tag = 'input window, operand 1, single buffered']
    #allocation3 [shape = 's32[1]{0}', space=sflag, size = 0x4, scoped, tag = 'scoped memory for tpu_custom_call.1']
    #allocation4 [shape = 'u8[5632]{0}', space=vmem, size = 0x1800, scoped, tag = 'input window, operand 4, single buffered']
    #allocation5 [shape = 's32[1]{0}', space=sflag, size = 0x4, scoped, tag = 'scoped memory for tpu_custom_call.1']
    #allocation6 [shape = 'u8[3072]{0}', space=vmem, size = 0xc00, scoped, tag = 'input window, operand 6, single buffered']
    #allocation7 [shape = 'u8[524288]{0}', space=vmem, size = 0x80000, scoped, tag = 'input window, operand 11, single buffered']
    #allocation8 [shape = 's32[1]{0}', space=sflag, size = 0x4, scoped, tag = 'scoped memory for tpu_custom_call.1']
    %17 = vsyncpa [#allocation3], 0
    %18 = vsyncpa [#allocation5], 0
    %19 = vsyncpa [#allocation8], 0
    // Predicated region
    $region2: #{tpu_custom_call.1} parent=1 // pred_check
      _
    $region3: #{tpu_custom_call.1} parent=1 // pred_check_branch
      %21 = sbr.rel (0) target = $region5
    $region4: #{tpu_custom_call.1} parent=1 // pred_region
      _
    $region5: #{tpu_custom_call.1} parent=1 // pred_fallthru
      _
    // Predicated region
    $region6: #{tpu_custom_call.1} parent=1 // pred_check
      _
    $region7: #{tpu_custom_call.1} parent=1 // pred_check_branch
      %23 = sbr.rel (0) target = $region9
    $region8: #{tpu_custom_call.1} parent=1 // pred_region
      %25 = vsyncadd [#allocation3], 0
      %s27 = sshll.u32 %s1, 4
      %s28 = int_to_ptr.hbm [resolvable:$true] %s27
      %s29 = sshll.u32 [#allocation2], 4
      %s30 = int_to_ptr.vmem [resolvable:$true] %s29
      %32 = dma.hbm_to_vmem [thread:$0]  %s28, 64, %s30, [#allocation3]
    $region9: #{tpu_custom_call.1} parent=1 // pred_fallthru
      _
    // Predicated region
    $region10: #{tpu_custom_call.1} parent=1 // pred_check
      _
    $region11: #{tpu_custom_call.1} parent=1 // pred_check_branch
      %34 = sbr.rel (0) target = $region13
    $region12: #{tpu_custom_call.1} parent=1 // pred_region
      _
    $region13: #{tpu_custom_call.1} parent=1 // pred_fallthru
      _
    // Predicated region
    $region14: #{tpu_custom_call.1} parent=1 // pred_check
      _
    $region15: #{tpu_custom_call.1} parent=1 // pred_check_branch
      %36 = sbr.rel (0) target = $region17
    $region16: #{tpu_custom_call.1} parent=1 // pred_region
      _
    $region17: #{tpu_custom_call.1} parent=1 // pred_fallthru
      _
    // Predicated region
    $region18: #{tpu_custom_call.1} parent=1 // pred_check
      _
    $region19: #{tpu_custom_call.1} parent=1 // pred_check_branch
      %38 = sbr.rel (0) target = $region21
    $region20: #{tpu_custom_call.1} parent=1 // pred_region
      %40 = vsyncadd [#allocation5], 0
      %s41 = sshll.u32 %s4, 4
      %s42 = int_to_ptr.hbm [resolvable:$true] %s41
      %s43 = sshll.u32 [#allocation4], 4
      %s44 = int_to_ptr.vmem [resolvable:$true] %s43
      %49 = dma.hbm_to_vmem [thread:$0]  %s42, 176, %s44, [#allocation5], 16, 16, 1
    $region21: #{tpu_custom_call.1} parent=1 // pred_fallthru
      _
    // Predicated region
    $region22: #{tpu_custom_call.1} parent=1 // pred_check
      _
    $region23: #{tpu_custom_call.1} parent=1 // pred_check_branch
      %51 = sbr.rel (0) target = $region25
    $region24: #{tpu_custom_call.1} parent=1 // pred_region
      _
    $region25: #{tpu_custom_call.1} parent=1 // pred_fallthru
      _
    // Predicated region
    $region26: #{tpu_custom_call.1} parent=1 // pred_check
      _
    $region27: #{tpu_custom_call.1} parent=1 // pred_check_branch
      %53 = sbr.rel (0) target = $region29
    $region28: #{tpu_custom_call.1} parent=1 // pred_region
      %55 = vsyncadd [#allocation5], 0
      %s56 = sshll.u32 %s6, 4
      %s57 = int_to_ptr.hbm [resolvable:$true] %s56
      %s58 = sshll.u32 [#allocation6], 4
      %s59 = int_to_ptr.vmem [resolvable:$true] %s58
      %64 = dma.hbm_to_vmem [thread:$0]  %s57, 96, %s59, [#allocation5], 16, 16, 1
    $region29: #{tpu_custom_call.1} parent=1 // pred_fallthru
      _
    // Predicated region
    $region30: #{tpu_custom_call.1} parent=1 // pred_check
      _
    $region31: #{tpu_custom_call.1} parent=1 // pred_check_branch
      %66 = sbr.rel (0) target = $region33
    $region32: #{tpu_custom_call.1} parent=1 // pred_region
      _
    $region33: #{tpu_custom_call.1} parent=1 // pred_fallthru
      _
    // Predicated region
    $region34: #{tpu_custom_call.1} parent=1 // pred_check
      _
    $region35: #{tpu_custom_call.1} parent=1 // pred_check_branch
      %68 = sbr.rel (0) target = $region37
    $region36: #{tpu_custom_call.1} parent=1 // pred_region
      _
    $region37: #{tpu_custom_call.1} parent=1 // pred_fallthru
      _
    // Predicated region
    $region38: #{tpu_custom_call.1} parent=1 // pred_check
      _
    $region39: #{tpu_custom_call.1} parent=1 // pred_check_branch
      %70 = sbr.rel (0) target = $region41
    $region40: #{tpu_custom_call.1} parent=1 // pred_region
      _
    $region41: #{tpu_custom_call.1} parent=1 // pred_fallthru
      _
    // Predicated region
    $region42: #{tpu_custom_call.1} parent=1 // pred_check
      _
    $region43: #{tpu_custom_call.1} parent=1 // pred_check_branch
      %72 = sbr.rel (0) target = $region45
    $region44: #{tpu_custom_call.1} parent=1 // pred_region
      _
    $region45: #{tpu_custom_call.1} parent=1 // pred_fallthru
      _
    // Predicated region
    $region46: #{tpu_custom_call.1} parent=1 // pred_check
      _
    $region47: #{tpu_custom_call.1} parent=1 // pred_check_branch
      %74 = sbr.rel (0) target = $region49
    $region48: #{tpu_custom_call.1} parent=1 // pred_region
      %76 = vsyncadd [#allocation8], 0
      %s77 = sshll.u32 %s11, 4
      %s78 = int_to_ptr.hbm [resolvable:$true] %s77
      %s79 = sshll.u32 [#allocation7], 4
      %s80 = int_to_ptr.vmem [resolvable:$true] %s79
      %85 = dma.hbm_to_vmem [thread:$0]  %s78, 16384, %s80, [#allocation8], 64, 64, 4
    $region49: #{tpu_custom_call.1} parent=1 // pred_fallthru
      _
    // Predicated region
    $region50: #{tpu_custom_call.1} parent=1 // pred_check
      _
    $region51: #{tpu_custom_call.1} parent=1 // pred_check_branch
      %87 = sbr.rel (0) target = $region53
    $region52: #{tpu_custom_call.1} parent=1 // pred_region
      %89 = dma.done [#allocation3], 64
    $region53: #{tpu_custom_call.1} parent=1 // pred_fallthru
      _
    // Predicated region
    $region54: #{tpu_custom_call.1} parent=1 // pred_check
      _
    $region55: #{tpu_custom_call.1} parent=1 // pred_check_branch
      %91 = sbr.rel (0) target = $region57
    $region56: #{tpu_custom_call.1} parent=1 // pred_region
      %93 = dma.done [#allocation5], 176
    $region57: #{tpu_custom_call.1} parent=1 // pred_fallthru
      _
    // Predicated region
    $region58: #{tpu_custom_call.1} parent=1 // pred_check
      _
    $region59: #{tpu_custom_call.1} parent=1 // pred_check_branch
      %95 = sbr.rel (0) target = $region61
    $region60: #{tpu_custom_call.1} parent=1 // pred_region
      %97 = dma.done [#allocation5], 96
    $region61: #{tpu_custom_call.1} parent=1 // pred_fallthru
      _
    // Predicated region
    $region62: #{tpu_custom_call.1} parent=1 // pred_check
      _
    $region63: #{tpu_custom_call.1} parent=1 // pred_check_branch
      %99 = sbr.rel (0) target = $region65
    $region64: #{tpu_custom_call.1} parent=1 // pred_region
      %101 = dma.done [#allocation8], 16384
    $region65: #{tpu_custom_call.1} parent=1 // pred_fallthru
      _
    %v103 = vld [vmem:[%s0] sm:$0xf]
    %v104 = vld [vmem:[%s0 + $0x4] sm:$0xf]
    %v105 = vld [vmem:[%s0 + $0x8] sm:$0xf]
    %v106 = vld [vmem:[%s0 + $0xc] sm:$0xf]
    %v107 = vld [vmem:[%s0 + $0x10] sm:$0xf]
    %v108 = vld [vmem:[%s0 + $0x14] sm:$0xf]
    %v109 = vld [vmem:[%s0 + $0x18] sm:$0xf]
    %v110 = vld [vmem:[%s0 + $0x1c] sm:$0xf]
    %v111 = vld [vmem:[%s3] sm:$0xf]
    %v112 = vld [vmem:[%s3 + $0x4] sm:$0xf]
    %v113 = vld [vmem:[%s3 + $0x8] sm:$0xf]
    %v114 = vld [vmem:[%s3 + $0xc] sm:$0xf]
    %v115 = vld [vmem:[#allocation4] sm:$0x1]
    %v117 = vperm.slane %v115, 0
    %v127 = vunpack.c.l.b16 %v103
    %v128 = vunpack.c.l.b16 %v104
    %v129 = vunpack.c.l.b16 %v105
    %v130 = vunpack.c.l.b16 %v106
    %v131 = vunpack.c.l.b16 %v107
    %v132 = vunpack.c.l.b16 %v108
    %v133 = vunpack.c.l.b16 %v109
    %v134 = vunpack.c.l.b16 %v110
    %v135 = vpack.c.b16 %v128, %v127
    %v136 = vpack.c.b16 %v130, %v129
    %v137 = vpack.c.b16 %v132, %v131
    %v138 = vpack.c.b16 %v134, %v133
    %v143 = vunpack.c.l.b16 %v111
    %v144 = vunpack.c.l.b16 %v112
    %v145 = vunpack.c.l.b16 %v113
    %v146 = vunpack.c.l.b16 %v114
    %v147 = vpack.c.b16 %v144, %v143
    %v148 = vpack.c.b16 %v146, %v145
    %vm151 = vcmask 261120
    %v153 = vsel %vm151, %v135, 0
    %v156 = vsel %vm151, %v136, 0
    %v159 = vsel %vm151, %v137, 0
    %v162 = vsel %vm151, %v138, 0
    %164 = vmatpush.bf16.msra.mxu0 0
    %165 = vmatpush.bf16.msra.mxu0 0
    %166 = vmatpush.bf16.msra.mxu0 0
    %167 = vmatpush.bf16.msra.mxu0 0
    %168 = vmatpush.bf16.msra.mxu0 0
    %169 = vmatpush.bf16.msra.mxu0 0
    %170 = vmatpush.bf16.msra.mxu0 %v148
    %171 = vmatpush.bf16.msra.mxu0 %v147
    %172 = vmatmul.bf16.gmra.mxu0 %v153
    %v173 = vpop.f32.mrf.mxu0
    %v174 = vadd.f32 %v117, %v173
    %v175 = vpop.f32.mrf.mxu0
    %v176 = vadd.f32 %v117, %v175
    %177 = vmatmul.bf16.gmra.mxu0 %v156
    %v178 = vpop.f32.mrf.mxu0
    %v179 = vadd.f32 %v117, %v178
    %v180 = vpop.f32.mrf.mxu0
    %v181 = vadd.f32 %v117, %v180
    %182 = vmatmul.bf16.gmra.mxu0 %v159
    %v183 = vpop.f32.mrf.mxu0
    %v184 = vadd.f32 %v117, %v183
    %v185 = vpop.f32.mrf.mxu0
    %v186 = vadd.f32 %v117, %v185
    %187 = vmatmul.bf16.gmra.mxu0 %v162
    %v188 = vpop.f32.mrf.mxu0
    %v189 = vadd.f32 %v117, %v188
    %v190 = vpop.f32.mrf.mxu0
    %v191 = vadd.f32 %v117, %v190
    %192 = vdwg.mxu0
    %v193 = vtanh.pop %v174
    %v194 = vtanh.pop %v176
    %v195 = vtanh.pop %v179
    %v196 = vtanh.pop %v181
    %v197 = vtanh.pop %v184
    %v198 = vtanh.pop %v186
    %v199 = vtanh.pop %v189
    %v200 = vtanh.pop %v191
    %v201 = vld [vmem:[#allocation2] sm:$0xf]
    %s202 = scalar_lea.vmem %s3, 16
    %v203 = vld [vmem:[%s202] sm:$0xf]
    %v204 = vld [vmem:[%s202 + $0x4] sm:$0xf]
    %v205 = vld [vmem:[%s202 + $0x8] sm:$0xf]
    %v206 = vld [vmem:[%s202 + $0xc] sm:$0xf]
    %s207 = scalar_lea.vmem [#allocation4], 1
    %v208 = vld [vmem:[%s207] sm:$0x1]
    %v210 = vperm.slane %v208, 0
    %v216 = vunpack.c.l.b16 %v203
    %v217 = vunpack.c.l.b16 %v204
    %v218 = vunpack.c.l.b16 %v205
    %v219 = vunpack.c.l.b16 %v206
    %v220 = vpack.c.b16 %v217, %v216
    %v221 = vpack.c.b16 %v219, %v218
    %v225 = vsel %vm151, %v201, 0
    %227 = vmatpush.bf16.msra.mxu0 0
    %228 = vmatpush.bf16.msra.mxu0 0
    %229 = vmatpush.bf16.msra.mxu0 0
    %230 = vmatpush.bf16.msra.mxu0 0
    %231 = vmatpush.bf16.msra.mxu0 0
    %232 = vmatpush.bf16.msra.mxu0 0
    %233 = vmatpush.bf16.msra.mxu0 %v221
    %234 = vmatpush.bf16.msra.mxu0 %v220
    %235 = vmatmul.bf16.gmra.mxu0 %v225
    %v236 = vpop.f32.mrf.mxu0
    %v237 = vadd.f32 %v210, %v236
    %v238 = vpop.f32.mrf.mxu0
    %239 = vdwg.mxu0
    %v240 = vtanh.pop %v237
    %s241 = scalar_lea.vmem %s3, 32
    %v242 = vld [vmem:[%s241] sm:$0xf]
    %v243 = vld [vmem:[%s241 + $0x4] sm:$0xf]
    %v244 = vld [vmem:[%s241 + $0x8] sm:$0xf]
    %v245 = vld [vmem:[%s241 + $0xc] sm:$0xf]
    %v246 = vpack.c.bf16 %v240, %v240
    %s247 = scalar_lea.vmem [#allocation4], 2
    %v248 = vld [vmem:[%s247] sm:$0x1]
    %v250 = vperm.slane %v248, 0
    %v256 = vunpack.c.l.b16 %v242
    %v257 = vunpack.c.l.b16 %v243
    %v258 = vunpack.c.l.b16 %v244
    %v259 = vunpack.c.l.b16 %v245
    %v260 = vpack.c.b16 %v257, %v256
    %v261 = vpack.c.b16 %v259, %v258
    %v265 = vsel %vm151, %v246, 0
    %267 = vmatpush.bf16.msra.mxu0 0
    %268 = vmatpush.bf16.msra.mxu0 0
    %269 = vmatpush.bf16.msra.mxu0 0
    %270 = vmatpush.bf16.msra.mxu0 0
    %271 = vmatpush.bf16.msra.mxu0 0
    %272 = vmatpush.bf16.msra.mxu0 0
    %273 = vmatpush.bf16.msra.mxu0 %v261
    %274 = vmatpush.bf16.msra.mxu0 %v260
    %275 = vmatmul.bf16.gmra.mxu0 %v265
    %v276 = vpop.f32.mrf.mxu0
    %v277 = vadd.f32 %v250, %v276
    %v278 = vpop.f32.mrf.mxu0
    %279 = vdwg.mxu0
    %v280 = vld [vmem:[%s5] sm:$0xf]
    %v281 = vld [vmem:[%s5 + $0x4] sm:$0xf]
    %v282 = vld [vmem:[%s5 + $0x8] sm:$0xf]
    %v283 = vld [vmem:[%s5 + $0xc] sm:$0xf]
    %v284 = vpack.c.bf16 %v194, %v193
    %v285 = vpack.c.bf16 %v196, %v195
    %v286 = vpack.c.bf16 %v198, %v197
    %v287 = vpack.c.bf16 %v200, %v199
    %v288 = vld [vmem:[#allocation6] sm:$0x1]
    %v290 = vperm.slane %v288, 0
    %v296 = vunpack.c.l.b16 %v280
    %v297 = vunpack.c.l.b16 %v281
    %v298 = vunpack.c.l.b16 %v282
    %v299 = vunpack.c.l.b16 %v283
    %v300 = vpack.c.b16 %v297, %v296
    %v301 = vpack.c.b16 %v299, %v298
    %v305 = vsel %vm151, %v284, 0
    %v308 = vsel %vm151, %v285, 0
    %v311 = vsel %vm151, %v286, 0
    %v314 = vsel %vm151, %v287, 0
    %316 = vmatpush.bf16.msra.mxu0 0
    %317 = vmatpush.bf16.msra.mxu0 0
    %318 = vmatpush.bf16.msra.mxu0 0
    %319 = vmatpush.bf16.msra.mxu0 0
    %320 = vmatpush.bf16.msra.mxu0 0
    %321 = vmatpush.bf16.msra.mxu0 0
    %322 = vmatpush.bf16.msra.mxu0 %v301
    %323 = vmatpush.bf16.msra.mxu0 %v300
    %324 = vmatmul.bf16.gmra.mxu0 %v305
    %v325 = vpop.f32.mrf.mxu0
    %v326 = vadd.f32 %v290, %v325
    %v327 = vpop.f32.mrf.mxu0
    %v328 = vadd.f32 %v290, %v327
    %329 = vmatmul.bf16.gmra.mxu0 %v308
    %v330 = vpop.f32.mrf.mxu0
    %v331 = vadd.f32 %v290, %v330
    %v332 = vpop.f32.mrf.mxu0
    %v333 = vadd.f32 %v290, %v332
    %334 = vmatmul.bf16.gmra.mxu0 %v311
    %v335 = vpop.f32.mrf.mxu0
    %v336 = vadd.f32 %v290, %v335
    %v337 = vpop.f32.mrf.mxu0
    %v338 = vadd.f32 %v290, %v337
    %339 = vmatmul.bf16.gmra.mxu0 %v314
    %v340 = vpop.f32.mrf.mxu0
    %v341 = vadd.f32 %v290, %v340
    %v342 = vpop.f32.mrf.mxu0
    %v343 = vadd.f32 %v290, %v342
    %344 = vdwg.mxu0
    %s345 = scalar_lea.vmem %s5, 16
    %v346 = vld [vmem:[%s345] sm:$0xf]
    %v347 = vld [vmem:[%s345 + $0x4] sm:$0xf]
    %v348 = vld [vmem:[%s345 + $0x8] sm:$0xf]
    %v349 = vld [vmem:[%s345 + $0xc] sm:$0xf]
    %s350 = scalar_lea.vmem [#allocation6], 1
    %v351 = vld [vmem:[%s350] sm:$0x1]
    %v353 = vperm.slane %v351, 0
    %v359 = vunpack.c.l.b16 %v346
    %v360 = vunpack.c.l.b16 %v347
    %v361 = vunpack.c.l.b16 %v348
    %v362 = vunpack.c.l.b16 %v349
    %v363 = vpack.c.b16 %v360, %v359
    %v364 = vpack.c.b16 %v362, %v361
    %367 = vmatpush.bf16.msra.mxu0 0
    %368 = vmatpush.bf16.msra.mxu0 0
    %369 = vmatpush.bf16.msra.mxu0 0
    %370 = vmatpush.bf16.msra.mxu0 0
    %371 = vmatpush.bf16.msra.mxu0 0
    %372 = vmatpush.bf16.msra.mxu0 0
    %373 = vmatpush.bf16.msra.mxu0 %v364
    %374 = vmatpush.bf16.msra.mxu0 %v363
    %375 = vmatmul.bf16.gmra.mxu0 %v305
    %v376 = vpop.f32.mrf.mxu0
    %v377 = vadd.f32 %v353, %v376
    %v378 = vpop.f32.mrf.mxu0
    %v379 = vadd.f32 %v353, %v378
    %380 = vmatmul.bf16.gmra.mxu0 %v308
    %v381 = vpop.f32.mrf.mxu0
    %v382 = vadd.f32 %v353, %v381
    %v383 = vpop.f32.mrf.mxu0
    %v384 = vadd.f32 %v353, %v383
    %385 = vmatmul.bf16.gmra.mxu0 %v311
    %v386 = vpop.f32.mrf.mxu0
    %v387 = vadd.f32 %v353, %v386
    %v388 = vpop.f32.mrf.mxu0
    %v389 = vadd.f32 %v353, %v388
    %390 = vmatmul.bf16.gmra.mxu0 %v314
    %v391 = vpop.f32.mrf.mxu0
    %v392 = vadd.f32 %v353, %v391
    %v393 = vpop.f32.mrf.mxu0
    %v394 = vadd.f32 %v353, %v393
    %395 = vdwg.mxu0
    %s396 = scalar_lea.vmem %s5, 32
    %v397 = vld [vmem:[%s396] sm:$0xf]
    %v398 = vld [vmem:[%s396 + $0x4] sm:$0xf]
    %v399 = vld [vmem:[%s396 + $0x8] sm:$0xf]
    %v400 = vld [vmem:[%s396 + $0xc] sm:$0xf]
    %s401 = scalar_lea.vmem [#allocation6], 2
    %v402 = vld [vmem:[%s401] sm:$0x1]
    %v404 = vperm.slane %v402, 0
    %v410 = vunpack.c.l.b16 %v397
    %v411 = vunpack.c.l.b16 %v398
    %v412 = vunpack.c.l.b16 %v399
    %v413 = vunpack.c.l.b16 %v400
    %v414 = vpack.c.b16 %v411, %v410
    %v415 = vpack.c.b16 %v413, %v412
    %418 = vmatpush.bf16.msra.mxu0 0
    %419 = vmatpush.bf16.msra.mxu0 0
    %420 = vmatpush.bf16.msra.mxu0 0
    %421 = vmatpush.bf16.msra.mxu0 0
    %422 = vmatpush.bf16.msra.mxu0 0
    %423 = vmatpush.bf16.msra.mxu0 0
    %424 = vmatpush.bf16.msra.mxu0 %v415
    %425 = vmatpush.bf16.msra.mxu0 %v414
    %426 = vmatmul.bf16.gmra.mxu0 %v305
    %v427 = vpop.f32.mrf.mxu0
    %v428 = vadd.f32 %v404, %v427
    %v429 = vpop.f32.mrf.mxu0
    %v430 = vadd.f32 %v404, %v429
    %431 = vmatmul.bf16.gmra.mxu0 %v308
    %v432 = vpop.f32.mrf.mxu0
    %v433 = vadd.f32 %v404, %v432
    %v434 = vpop.f32.mrf.mxu0
    %v435 = vadd.f32 %v404, %v434
    %436 = vmatmul.bf16.gmra.mxu0 %v311
    %v437 = vpop.f32.mrf.mxu0
    %v438 = vadd.f32 %v404, %v437
    %v439 = vpop.f32.mrf.mxu0
    %v440 = vadd.f32 %v404, %v439
    %441 = vmatmul.bf16.gmra.mxu0 %v314
    %v442 = vpop.f32.mrf.mxu0
    %v443 = vadd.f32 %v404, %v442
    %v444 = vpop.f32.mrf.mxu0
    %v445 = vadd.f32 %v404, %v444
    %446 = vdwg.mxu0
    %v447 = vpack.c.bf16 %v326, %v326
    %v448 = vpack.c.bf16 %v328, %v328
    %v449 = vpack.c.bf16 %v331, %v331
    %v450 = vpack.c.bf16 %v333, %v333
    %v451 = vpack.c.bf16 %v336, %v336
    %v452 = vpack.c.bf16 %v338, %v338
    %v453 = vpack.c.bf16 %v341, %v341
    %v454 = vpack.c.bf16 %v343, %v343
    %v455 = vpack.c.bf16 %v377, %v377
    %v456 = vpack.c.bf16 %v379, %v379
    %v457 = vpack.c.bf16 %v382, %v382
    %v458 = vpack.c.bf16 %v384, %v384
    %v459 = vpack.c.bf16 %v387, %v387
    %v460 = vpack.c.bf16 %v389, %v389
    %v461 = vpack.c.bf16 %v392, %v392
    %v462 = vpack.c.bf16 %v394, %v394
    %vm463 = vcmask 130048
    %v465 = vsel %vm463, %v447, 0
    %v468 = vsel %vm463, %v455, 0
    %470 = vmatpush.bf16.xpose.msra.mxu0 0
    %471 = vmatpush.bf16.xpose.msra.mxu0 0
    %472 = vmatpush.bf16.xpose.msra.mxu0 0
    %473 = vmatpush.bf16.xpose.msra.mxu0 0
    %474 = vmatpush.bf16.xpose.msra.mxu0 0
    %475 = vmatpush.bf16.xpose.msra.mxu0 0
    %476 = vmatpush.bf16.xpose.msra.mxu0 0
    %477 = vmatpush.bf16.xpose.msra.mxu0 %v468
    %478 = vmatmul.bf16.gmra.mxu0 %v465
    %v479 = vpop.f32.mrf.mxu0
    %v480 = vadd.f32 0.0, %v479
    %v481 = vpop.f32.mrf.mxu0
    %482 = vdwg.mxu0
    %v484 = vsel %vm463, %v448, 0
    %v487 = vsel %vm463, %v456, 0
    %489 = vmatpush.bf16.xpose.msra.mxu0 0
    %490 = vmatpush.bf16.xpose.msra.mxu0 0
    %491 = vmatpush.bf16.xpose.msra.mxu0 0
    %492 = vmatpush.bf16.xpose.msra.mxu0 0
    %493 = vmatpush.bf16.xpose.msra.mxu0 0
    %494 = vmatpush.bf16.xpose.msra.mxu0 0
    %495 = vmatpush.bf16.xpose.msra.mxu0 0
    %496 = vmatpush.bf16.xpose.msra.mxu0 %v487
    %497 = vmatmul.bf16.gmra.mxu0 %v484
    %v498 = vpop.f32.mrf.mxu0
    %v499 = vadd.f32 0.0, %v498
    %v500 = vpop.f32.mrf.mxu0
    %501 = vdwg.mxu0
    %v503 = vsel %vm463, %v449, 0
    %v506 = vsel %vm463, %v457, 0
    %508 = vmatpush.bf16.xpose.msra.mxu0 0
    %509 = vmatpush.bf16.xpose.msra.mxu0 0
    %510 = vmatpush.bf16.xpose.msra.mxu0 0
    %511 = vmatpush.bf16.xpose.msra.mxu0 0
    %512 = vmatpush.bf16.xpose.msra.mxu0 0
    %513 = vmatpush.bf16.xpose.msra.mxu0 0
    %514 = vmatpush.bf16.xpose.msra.mxu0 0
    %515 = vmatpush.bf16.xpose.msra.mxu0 %v506
    %516 = vmatmul.bf16.gmra.mxu0 %v503
    %v517 = vpop.f32.mrf.mxu0
    %v518 = vadd.f32 0.0, %v517
    %v519 = vpop.f32.mrf.mxu0
    %520 = vdwg.mxu0
    %v522 = vsel %vm463, %v450, 0
    %v525 = vsel %vm463, %v458, 0
    %527 = vmatpush.bf16.xpose.msra.mxu0 0
    %528 = vmatpush.bf16.xpose.msra.mxu0 0
    %529 = vmatpush.bf16.xpose.msra.mxu0 0
    %530 = vmatpush.bf16.xpose.msra.mxu0 0
    %531 = vmatpush.bf16.xpose.msra.mxu0 0
    %532 = vmatpush.bf16.xpose.msra.mxu0 0
    %533 = vmatpush.bf16.xpose.msra.mxu0 0
    %534 = vmatpush.bf16.xpose.msra.mxu0 %v525
    %535 = vmatmul.bf16.gmra.mxu0 %v522
    %v536 = vpop.f32.mrf.mxu0
    %v537 = vadd.f32 0.0, %v536
    %v538 = vpop.f32.mrf.mxu0
    %539 = vdwg.mxu0
    %v541 = vsel %vm463, %v451, 0
    %v544 = vsel %vm463, %v459, 0
    %546 = vmatpush.bf16.xpose.msra.mxu0 0
    %547 = vmatpush.bf16.xpose.msra.mxu0 0
    %548 = vmatpush.bf16.xpose.msra.mxu0 0
    %549 = vmatpush.bf16.xpose.msra.mxu0 0
    %550 = vmatpush.bf16.xpose.msra.mxu0 0
    %551 = vmatpush.bf16.xpose.msra.mxu0 0
    %552 = vmatpush.bf16.xpose.msra.mxu0 0
    %553 = vmatpush.bf16.xpose.msra.mxu0 %v544
    %554 = vmatmul.bf16.gmra.mxu0 %v541
    %v555 = vpop.f32.mrf.mxu0
    %v556 = vadd.f32 0.0, %v555
    %v557 = vpop.f32.mrf.mxu0
    %558 = vdwg.mxu0
    %v560 = vsel %vm463, %v452, 0
    %v563 = vsel %vm463, %v460, 0
    %565 = vmatpush.bf16.xpose.msra.mxu0 0
    %566 = vmatpush.bf16.xpose.msra.mxu0 0
    %567 = vmatpush.bf16.xpose.msra.mxu0 0
    %568 = vmatpush.bf16.xpose.msra.mxu0 0
    %569 = vmatpush.bf16.xpose.msra.mxu0 0
    %570 = vmatpush.bf16.xpose.msra.mxu0 0
    %571 = vmatpush.bf16.xpose.msra.mxu0 0
    %572 = vmatpush.bf16.xpose.msra.mxu0 %v563
    %573 = vmatmul.bf16.gmra.mxu0 %v560
    %v574 = vpop.f32.mrf.mxu0
    %v575 = vadd.f32 0.0, %v574
    %v576 = vpop.f32.mrf.mxu0
    %577 = vdwg.mxu0
    %v579 = vsel %vm463, %v453, 0
    %v582 = vsel %vm463, %v461, 0
    %584 = vmatpush.bf16.xpose.msra.mxu0 0
    %585 = vmatpush.bf16.xpose.msra.mxu0 0
    %586 = vmatpush.bf16.xpose.msra.mxu0 0
    %587 = vmatpush.bf16.xpose.msra.mxu0 0
    %588 = vmatpush.bf16.xpose.msra.mxu0 0
    %589 = vmatpush.bf16.xpose.msra.mxu0 0
    %590 = vmatpush.bf16.xpose.msra.mxu0 0
    %591 = vmatpush.bf16.xpose.msra.mxu0 %v582
    %592 = vmatmul.bf16.gmra.mxu0 %v579
    %v593 = vpop.f32.mrf.mxu0
    %v594 = vadd.f32 0.0, %v593
    %v595 = vpop.f32.mrf.mxu0
    %596 = vdwg.mxu0
    %v598 = vsel %vm463, %v454, 0
    %v601 = vsel %vm463, %v462, 0
    %603 = vmatpush.bf16.xpose.msra.mxu0 0
    %604 = vmatpush.bf16.xpose.msra.mxu0 0
    %605 = vmatpush.bf16.xpose.msra.mxu0 0
    %606 = vmatpush.bf16.xpose.msra.mxu0 0
    %607 = vmatpush.bf16.xpose.msra.mxu0 0
    %608 = vmatpush.bf16.xpose.msra.mxu0 0
    %609 = vmatpush.bf16.xpose.msra.mxu0 0
    %610 = vmatpush.bf16.xpose.msra.mxu0 %v601
    %611 = vmatmul.bf16.gmra.mxu0 %v598
    %v612 = vpop.f32.mrf.mxu0
    %v613 = vadd.f32 0.0, %v612
    %v614 = vpop.f32.mrf.mxu0
    %615 = vdwg.mxu0
    %v616 = vmul.f32 %v480, 0.25
    %v617 = vmul.f32 %v499, 0.25
    %v618 = vmul.f32 %v518, 0.25
    %v619 = vmul.f32 %v537, 0.25
    %v620 = vmul.f32 %v556, 0.25
    %v621 = vmul.f32 %v575, 0.25
    %v622 = vmul.f32 %v594, 0.25
    %v623 = vmul.f32 %v613, 0.25
    %vm624 = vcmask 64512
    %v625 = vsel %vm624, %v616, -inf
    %626 = vmax.xlane.f32.xlu0 %v625
    %v627 = vpop.xlane.xlu0 %626
    %v628 = vsel %vm624, %v617, -inf
    %629 = vmax.xlane.f32.xlu0 %v628
    %v630 = vpop.xlane.xlu0 %629
    %v631 = vsel %vm624, %v618, -inf
    %632 = vmax.xlane.f32.xlu0 %v631
    %v633 = vpop.xlane.xlu0 %632
    %v634 = vsel %vm624, %v619, -inf
    %635 = vmax.xlane.f32.xlu0 %v634
    %v636 = vpop.xlane.xlu0 %635
    %v637 = vsel %vm624, %v620, -inf
    %638 = vmax.xlane.f32.xlu0 %v637
    %v639 = vpop.xlane.xlu0 %638
    %v640 = vsel %vm624, %v621, -inf
    %641 = vmax.xlane.f32.xlu0 %v640
    %v642 = vpop.xlane.xlu0 %641
    %v643 = vsel %vm624, %v622, -inf
    %644 = vmax.xlane.f32.xlu0 %v643
    %v645 = vpop.xlane.xlu0 %644
    %v646 = vsel %vm624, %v623, -inf
    %647 = vmax.xlane.f32.xlu0 %v646
    %v648 = vpop.xlane.xlu0 %647
    %v649 = vsub.f32 %v616, %v627
    %v650 = vsub.f32 %v617, %v630
    %v651 = vsub.f32 %v618, %v633
    %v652 = vsub.f32 %v619, %v636
    %v653 = vsub.f32 %v620, %v639
    %v654 = vsub.f32 %v621, %v642
    %v655 = vsub.f32 %v622, %v645
    %v656 = vsub.f32 %v623, %v648
    %v657 = vmul.f32 %v649, 1.442695
    %v658 = vpow.pop %v657
    %v659 = vmul.f32 %v650, 1.442695
    %v660 = vpow.pop %v659
    %v661 = vmul.f32 %v651, 1.442695
    %v662 = vpow.pop %v661
    %v663 = vmul.f32 %v652, 1.442695
    %v664 = vpow.pop %v663
    %v665 = vmul.f32 %v653, 1.442695
    %v666 = vpow.pop %v665
    %v667 = vmul.f32 %v654, 1.442695
    %v668 = vpow.pop %v667
    %v669 = vmul.f32 %v655, 1.442695
    %v670 = vpow.pop %v669
    %v671 = vmul.f32 %v656, 1.442695
    %v672 = vpow.pop %v671
    %v673 = vsel %vm624, %v658, 0.0
    %674 = vadd.xlane.f32.xlu0 %v673
    %v675 = vpop.xlane.xlu0 %674
    %v676 = vsel %vm624, %v660, 0.0
    %677 = vadd.xlane.f32.xlu0 %v676
    %v678 = vpop.xlane.xlu0 %677
    %v679 = vsel %vm624, %v662, 0.0
    %680 = vadd.xlane.f32.xlu0 %v679
    %v681 = vpop.xlane.xlu0 %680
    %v682 = vsel %vm624, %v664, 0.0
    %683 = vadd.xlane.f32.xlu0 %v682
    %v684 = vpop.xlane.xlu0 %683
    %v685 = vsel %vm624, %v666, 0.0
    %686 = vadd.xlane.f32.xlu0 %v685
    %v687 = vpop.xlane.xlu0 %686
    %v688 = vsel %vm624, %v668, 0.0
    %689 = vadd.xlane.f32.xlu0 %v688
    %v690 = vpop.xlane.xlu0 %689
    %v691 = vsel %vm624, %v670, 0.0
    %692 = vadd.xlane.f32.xlu0 %v691
    %v693 = vpop.xlane.xlu0 %692
    %v694 = vsel %vm624, %v672, 0.0
    %695 = vadd.xlane.f32.xlu0 %v694
    %v696 = vpop.xlane.xlu0 %695
    %v697 = vrcp.pop %v675
    %v698 = vrcp.pop %v678
    %v699 = vrcp.pop %v681
    %v700 = vrcp.pop %v684
    %v701 = vrcp.pop %v687
    %v702 = vrcp.pop %v690
    %v703 = vrcp.pop %v693
    %v704 = vrcp.pop %v696
    %v705 = vmul.f32 %v658, %v697
    %v706 = vmul.f32 %v660, %v698
    %v707 = vmul.f32 %v662, %v699
    %v708 = vmul.f32 %v664, %v700
    %v709 = vmul.f32 %v666, %v701
    %v710 = vmul.f32 %v668, %v702
    %v711 = vmul.f32 %v670, %v703
    %v712 = vmul.f32 %v672, %v704
    %v713 = vpack.c.bf16 %v705, %v705
    %v714 = vpack.c.bf16 %v706, %v706
    %v715 = vpack.c.bf16 %v707, %v707
    %v716 = vpack.c.bf16 %v708, %v708
    %v717 = vpack.c.bf16 %v709, %v709
    %v718 = vpack.c.bf16 %v710, %v710
    %v719 = vpack.c.bf16 %v711, %v711
    %v720 = vpack.c.bf16 %v712, %v712
    %v721 = vpack.c.bf16 %v428, %v428
    %v722 = vpack.c.bf16 %v430, %v430
    %v723 = vpack.c.bf16 %v433, %v433
    %v724 = vpack.c.bf16 %v435, %v435
    %v725 = vpack.c.bf16 %v438, %v438
    %v726 = vpack.c.bf16 %v440, %v440
    %v727 = vpack.c.bf16 %v443, %v443
    %v728 = vpack.c.bf16 %v445, %v445
    %v730 = vsel %vm624, %v713, 0
    %vm732 = vcmask 1043456
    %v734 = vsel %vm732, %v721, 0
    %736 = vmatpush.bf16.msra.mxu0 0
    %737 = vmatpush.bf16.msra.mxu0 0
    %738 = vmatpush.bf16.msra.mxu0 0
    %739 = vmatpush.bf16.msra.mxu0 0
    %740 = vmatpush.bf16.msra.mxu0 0
    %741 = vmatpush.bf16.msra.mxu0 0
    %742 = vmatpush.bf16.msra.mxu0 0
    %743 = vmatpush.bf16.msra.mxu0 %v734
    %744 = vmatmul.bf16.gmra.mxu0 %v730
    %v745 = vpop.f32.mrf.mxu0
    %v746 = vadd.f32 0.0, %v745
    %v747 = vpop.f32.mrf.mxu0
    %748 = vdwg.mxu0
    %v750 = vsel %vm624, %v714, 0
    %v753 = vsel %vm732, %v722, 0
    %755 = vmatpush.bf16.msra.mxu0 0
    %756 = vmatpush.bf16.msra.mxu0 0
    %757 = vmatpush.bf16.msra.mxu0 0
    %758 = vmatpush.bf16.msra.mxu0 0
    %759 = vmatpush.bf16.msra.mxu0 0
    %760 = vmatpush.bf16.msra.mxu0 0
    %761 = vmatpush.bf16.msra.mxu0 0
    %762 = vmatpush.bf16.msra.mxu0 %v753
    %763 = vmatmul.bf16.gmra.mxu0 %v750
    %v764 = vpop.f32.mrf.mxu0
    %v765 = vadd.f32 0.0, %v764
    %v766 = vpop.f32.mrf.mxu0
    %767 = vdwg.mxu0
    %v769 = vsel %vm624, %v715, 0
    %v772 = vsel %vm732, %v723, 0
    %774 = vmatpush.bf16.msra.mxu0 0
    %775 = vmatpush.bf16.msra.mxu0 0
    %776 = vmatpush.bf16.msra.mxu0 0
    %777 = vmatpush.bf16.msra.mxu0 0
    %778 = vmatpush.bf16.msra.mxu0 0
    %779 = vmatpush.bf16.msra.mxu0 0
    %780 = vmatpush.bf16.msra.mxu0 0
    %781 = vmatpush.bf16.msra.mxu0 %v772
    %782 = vmatmul.bf16.gmra.mxu0 %v769
    %v783 = vpop.f32.mrf.mxu0
    %v784 = vadd.f32 0.0, %v783
    %v785 = vpop.f32.mrf.mxu0
    %786 = vdwg.mxu0
    %v788 = vsel %vm624, %v716, 0
    %v791 = vsel %vm732, %v724, 0
    %793 = vmatpush.bf16.msra.mxu0 0
    %794 = vmatpush.bf16.msra.mxu0 0
    %795 = vmatpush.bf16.msra.mxu0 0
    %796 = vmatpush.bf16.msra.mxu0 0
    %797 = vmatpush.bf16.msra.mxu0 0
    %798 = vmatpush.bf16.msra.mxu0 0
    %799 = vmatpush.bf16.msra.mxu0 0
    %800 = vmatpush.bf16.msra.mxu0 %v791
    %801 = vmatmul.bf16.gmra.mxu0 %v788
    %v802 = vpop.f32.mrf.mxu0
    %v803 = vadd.f32 0.0, %v802
    %v804 = vpop.f32.mrf.mxu0
    %805 = vdwg.mxu0
    %v807 = vsel %vm624, %v717, 0
    %v810 = vsel %vm732, %v725, 0
    %812 = vmatpush.bf16.msra.mxu0 0
    %813 = vmatpush.bf16.msra.mxu0 0
    %814 = vmatpush.bf16.msra.mxu0 0
    %815 = vmatpush.bf16.msra.mxu0 0
    %816 = vmatpush.bf16.msra.mxu0 0
    %817 = vmatpush.bf16.msra.mxu0 0
    %818 = vmatpush.bf16.msra.mxu0 0
    %819 = vmatpush.bf16.msra.mxu0 %v810
    %820 = vmatmul.bf16.gmra.mxu0 %v807
    %v821 = vpop.f32.mrf.mxu0
    %v822 = vadd.f32 0.0, %v821
    %v823 = vpop.f32.mrf.mxu0
    %824 = vdwg.mxu0
    %v826 = vsel %vm624, %v718, 0
    %v829 = vsel %vm732, %v726, 0
    %831 = vmatpush.bf16.msra.mxu0 0
    %832 = vmatpush.bf16.msra.mxu0 0
    %833 = vmatpush.bf16.msra.mxu0 0
    %834 = vmatpush.bf16.msra.mxu0 0
    %835 = vmatpush.bf16.msra.mxu0 0
    %836 = vmatpush.bf16.msra.mxu0 0
    %837 = vmatpush.bf16.msra.mxu0 0
    %838 = vmatpush.bf16.msra.mxu0 %v829
    %839 = vmatmul.bf16.gmra.mxu0 %v826
    %v840 = vpop.f32.mrf.mxu0
    %v841 = vadd.f32 0.0, %v840
    %v842 = vpop.f32.mrf.mxu0
    %843 = vdwg.mxu0
    %v845 = vsel %vm624, %v719, 0
    %v848 = vsel %vm732, %v727, 0
    %850 = vmatpush.bf16.msra.mxu0 0
    %851 = vmatpush.bf16.msra.mxu0 0
    %852 = vmatpush.bf16.msra.mxu0 0
    %853 = vmatpush.bf16.msra.mxu0 0
    %854 = vmatpush.bf16.msra.mxu0 0
    %855 = vmatpush.bf16.msra.mxu0 0
    %856 = vmatpush.bf16.msra.mxu0 0
    %857 = vmatpush.bf16.msra.mxu0 %v848
    %858 = vmatmul.bf16.gmra.mxu0 %v845
    %v859 = vpop.f32.mrf.mxu0
    %v860 = vadd.f32 0.0, %v859
    %v861 = vpop.f32.mrf.mxu0
    %862 = vdwg.mxu0
    %v864 = vsel %vm624, %v720, 0
    %v867 = vsel %vm732, %v728, 0
    %869 = vmatpush.bf16.msra.mxu0 0
    %870 = vmatpush.bf16.msra.mxu0 0
    %871 = vmatpush.bf16.msra.mxu0 0
    %872 = vmatpush.bf16.msra.mxu0 0
    %873 = vmatpush.bf16.msra.mxu0 0
    %874 = vmatpush.bf16.msra.mxu0 0
    %875 = vmatpush.bf16.msra.mxu0 0
    %876 = vmatpush.bf16.msra.mxu0 %v867
    %877 = vmatmul.bf16.gmra.mxu0 %v864
    %v878 = vpop.f32.mrf.mxu0
    %v879 = vadd.f32 0.0, %v878
    %v880 = vpop.f32.mrf.mxu0
    %881 = vdwg.mxu0
    %v882 = vld [vmem:[%s7] sm:$0xf]
    %v883 = vld [vmem:[%s7 + $0x4] sm:$0xf]
    %v884 = vpack.c.bf16 %v765, %v746
    %v885 = vpack.c.bf16 %v803, %v784
    %v886 = vpack.c.bf16 %v841, %v822
    %v887 = vpack.c.bf16 %v879, %v860
    %s888 = scalar_lea.vmem %s5, 48
    %v889 = vld [vmem:[%s888] sm:$0xf]
    %v890 = vld [vmem:[%s888 + $0x4] sm:$0xf]
    %v891 = vld [vmem:[%s888 + $0x8] sm:$0xf]
    %v892 = vld [vmem:[%s888 + $0xc] sm:$0xf]
    %s893 = scalar_lea.vmem [#allocation6], 3
    %v894 = vld [vmem:[%s893] sm:$0x1]
    %v896 = vperm.slane %v894, 0
    %v902 = vunpack.c.l.b16 %v889
    %v903 = vunpack.c.l.b16 %v890
    %v904 = vunpack.c.l.b16 %v891
    %v905 = vunpack.c.l.b16 %v892
    %v906 = vpack.c.b16 %v903, %v902
    %v907 = vpack.c.b16 %v905, %v904
    %910 = vmatpush.bf16.msra.mxu0 0
    %911 = vmatpush.bf16.msra.mxu0 0
    %912 = vmatpush.bf16.msra.mxu0 0
    %913 = vmatpush.bf16.msra.mxu0 0
    %914 = vmatpush.bf16.msra.mxu0 0
    %915 = vmatpush.bf16.msra.mxu0 0
    %916 = vmatpush.bf16.msra.mxu0 %v907
    %917 = vmatpush.bf16.msra.mxu0 %v906
    %918 = vmatmul.bf16.gmra.mxu0 %v305
    %v919 = vpop.f32.mrf.mxu0
    %v920 = vadd.f32 %v896, %v919
    %v921 = vpop.f32.mrf.mxu0
    %v922 = vadd.f32 %v896, %v921
    %923 = vmatmul.bf16.gmra.mxu0 %v308
    %v924 = vpop.f32.mrf.mxu0
    %v925 = vadd.f32 %v896, %v924
    %v926 = vpop.f32.mrf.mxu0
    %v927 = vadd.f32 %v896, %v926
    %928 = vmatmul.bf16.gmra.mxu0 %v311
    %v929 = vpop.f32.mrf.mxu0
    %v930 = vadd.f32 %v896, %v929
    %v931 = vpop.f32.mrf.mxu0
    %v932 = vadd.f32 %v896, %v931
    %933 = vmatmul.bf16.gmra.mxu0 %v314
    %v934 = vpop.f32.mrf.mxu0
    %v935 = vadd.f32 %v896, %v934
    %v936 = vpop.f32.mrf.mxu0
    %v937 = vadd.f32 %v896, %v936
    %938 = vdwg.mxu0
    %s939 = scalar_lea.vmem %s5, 64
    %v940 = vld [vmem:[%s939] sm:$0xf]
    %v941 = vld [vmem:[%s939 + $0x4] sm:$0xf]
    %v942 = vld [vmem:[%s939 + $0x8] sm:$0xf]
    %v943 = vld [vmem:[%s939 + $0xc] sm:$0xf]
    %s944 = scalar_lea.vmem [#allocation6], 4
    %v945 = vld [vmem:[%s944] sm:$0x1]
    %v947 = vperm.slane %v945, 0
    %v953 = vunpack.c.l.b16 %v940
    %v954 = vunpack.c.l.b16 %v941
    %v955 = vunpack.c.l.b16 %v942
    %v956 = vunpack.c.l.b16 %v943
    %v957 = vpack.c.b16 %v954, %v953
    %v958 = vpack.c.b16 %v956, %v955
    %961 = vmatpush.bf16.msra.mxu0 0
    %962 = vmatpush.bf16.msra.mxu0 0
    %963 = vmatpush.bf16.msra.mxu0 0
    %964 = vmatpush.bf16.msra.mxu0 0
    %965 = vmatpush.bf16.msra.mxu0 0
    %966 = vmatpush.bf16.msra.mxu0 0
    %967 = vmatpush.bf16.msra.mxu0 %v958
    %968 = vmatpush.bf16.msra.mxu0 %v957
    %969 = vmatmul.bf16.gmra.mxu0 %v305
    %v970 = vpop.f32.mrf.mxu0
    %v971 = vadd.f32 %v947, %v970
    %v972 = vpop.f32.mrf.mxu0
    %v973 = vadd.f32 %v947, %v972
    %974 = vmatmul.bf16.gmra.mxu0 %v308
    %v975 = vpop.f32.mrf.mxu0
    %v976 = vadd.f32 %v947, %v975
    %v977 = vpop.f32.mrf.mxu0
    %v978 = vadd.f32 %v947, %v977
    %979 = vmatmul.bf16.gmra.mxu0 %v311
    %v980 = vpop.f32.mrf.mxu0
    %v981 = vadd.f32 %v947, %v980
    %v982 = vpop.f32.mrf.mxu0
    %v983 = vadd.f32 %v947, %v982
    %984 = vmatmul.bf16.gmra.mxu0 %v314
    %v985 = vpop.f32.mrf.mxu0
    %v986 = vadd.f32 %v947, %v985
    %v987 = vpop.f32.mrf.mxu0
    %v988 = vadd.f32 %v947, %v987
    %989 = vdwg.mxu0
    %s990 = scalar_lea.vmem %s5, 80
    %v991 = vld [vmem:[%s990] sm:$0xf]
    %v992 = vld [vmem:[%s990 + $0x4] sm:$0xf]
    %v993 = vld [vmem:[%s990 + $0x8] sm:$0xf]
    %v994 = vld [vmem:[%s990 + $0xc] sm:$0xf]
    %s995 = scalar_lea.vmem [#allocation6], 5
    %v996 = vld [vmem:[%s995] sm:$0x1]
    %v998 = vperm.slane %v996, 0
    %v1004 = vunpack.c.l.b16 %v991
    %v1005 = vunpack.c.l.b16 %v992
    %v1006 = vunpack.c.l.b16 %v993
    %v1007 = vunpack.c.l.b16 %v994
    %v1008 = vpack.c.b16 %v1005, %v1004
    %v1009 = vpack.c.b16 %v1007, %v1006
    %1012 = vmatpush.bf16.msra.mxu0 0
    %1013 = vmatpush.bf16.msra.mxu0 0
    %1014 = vmatpush.bf16.msra.mxu0 0
    %1015 = vmatpush.bf16.msra.mxu0 0
    %1016 = vmatpush.bf16.msra.mxu0 0
    %1017 = vmatpush.bf16.msra.mxu0 0
    %1018 = vmatpush.bf16.msra.mxu0 %v1009
    %1019 = vmatpush.bf16.msra.mxu0 %v1008
    %1020 = vmatmul.bf16.gmra.mxu0 %v305
    %v1021 = vpop.f32.mrf.mxu0
    %v1022 = vadd.f32 %v998, %v1021
    %v1023 = vpop.f32.mrf.mxu0
    %v1024 = vadd.f32 %v998, %v1023
    %1025 = vmatmul.bf16.gmra.mxu0 %v308
    %v1026 = vpop.f32.mrf.mxu0
    %v1027 = vadd.f32 %v998, %v1026
    %v1028 = vpop.f32.mrf.mxu0
    %v1029 = vadd.f32 %v998, %v1028
    %1030 = vmatmul.bf16.gmra.mxu0 %v311
    %v1031 = vpop.f32.mrf.mxu0
    %v1032 = vadd.f32 %v998, %v1031
    %v1033 = vpop.f32.mrf.mxu0
    %v1034 = vadd.f32 %v998, %v1033
    %1035 = vmatmul.bf16.gmra.mxu0 %v314
    %v1036 = vpop.f32.mrf.mxu0
    %v1037 = vadd.f32 %v998, %v1036
    %v1038 = vpop.f32.mrf.mxu0
    %v1039 = vadd.f32 %v998, %v1038
    %1040 = vdwg.mxu0
    %v1041 = vpack.c.bf16 %v920, %v920
    %v1042 = vpack.c.bf16 %v922, %v922
    %v1043 = vpack.c.bf16 %v925, %v925
    %v1044 = vpack.c.bf16 %v927, %v927
    %v1045 = vpack.c.bf16 %v930, %v930
    %v1046 = vpack.c.bf16 %v932, %v932
    %v1047 = vpack.c.bf16 %v935, %v935
    %v1048 = vpack.c.bf16 %v937, %v937
    %v1049 = vpack.c.bf16 %v971, %v971
    %v1050 = vpack.c.bf16 %v973, %v973
    %v1051 = vpack.c.bf16 %v976, %v976
    %v1052 = vpack.c.bf16 %v978, %v978
    %v1053 = vpack.c.bf16 %v981, %v981
    %v1054 = vpack.c.bf16 %v983, %v983
    %v1055 = vpack.c.bf16 %v986, %v986
    %v1056 = vpack.c.bf16 %v988, %v988
    %v1058 = vsel %vm463, %v1041, 0
    %v1061 = vsel %vm463, %v1049, 0
    %1063 = vmatpush.bf16.xpose.msra.mxu0 0
    %1064 = vmatpush.bf16.xpose.msra.mxu0 0
    %1065 = vmatpush.bf16.xpose.msra.mxu0 0
    %1066 = vmatpush.bf16.xpose.msra.mxu0 0
    %1067 = vmatpush.bf16.xpose.msra.mxu0 0
    %1068 = vmatpush.bf16.xpose.msra.mxu0 0
    %1069 = vmatpush.bf16.xpose.msra.mxu0 0
    %1070 = vmatpush.bf16.xpose.msra.mxu0 %v1061
    %1071 = vmatmul.bf16.gmra.mxu0 %v1058
    %v1072 = vpop.f32.mrf.mxu0
    %v1073 = vadd.f32 0.0, %v1072
    %v1074 = vpop.f32.mrf.mxu0
    %1075 = vdwg.mxu0
    %v1077 = vsel %vm463, %v1042, 0
    %v1080 = vsel %vm463, %v1050, 0
    %1082 = vmatpush.bf16.xpose.msra.mxu0 0
    %1083 = vmatpush.bf16.xpose.msra.mxu0 0
    %1084 = vmatpush.bf16.xpose.msra.mxu0 0
    %1085 = vmatpush.bf16.xpose.msra.mxu0 0
    %1086 = vmatpush.bf16.xpose.msra.mxu0 0
    %1087 = vmatpush.bf16.xpose.msra.mxu0 0
    %1088 = vmatpush.bf16.xpose.msra.mxu0 0
    %1089 = vmatpush.bf16.xpose.msra.mxu0 %v1080
    %1090 = vmatmul.bf16.gmra.mxu0 %v1077
    %v1091 = vpop.f32.mrf.mxu0
    %v1092 = vadd.f32 0.0, %v1091
    %v1093 = vpop.f32.mrf.mxu0
    %1094 = vdwg.mxu0
    %v1096 = vsel %vm463, %v1043, 0
    %v1099 = vsel %vm463, %v1051, 0
    %1101 = vmatpush.bf16.xpose.msra.mxu0 0
    %1102 = vmatpush.bf16.xpose.msra.mxu0 0
    %1103 = vmatpush.bf16.xpose.msra.mxu0 0
    %1104 = vmatpush.bf16.xpose.msra.mxu0 0
    %1105 = vmatpush.bf16.xpose.msra.mxu0 0
    %1106 = vmatpush.bf16.xpose.msra.mxu0 0
    %1107 = vmatpush.bf16.xpose.msra.mxu0 0
    %1108 = vmatpush.bf16.xpose.msra.mxu0 %v1099
    %1109 = vmatmul.bf16.gmra.mxu0 %v1096
    %v1110 = vpop.f32.mrf.mxu0
    %v1111 = vadd.f32 0.0, %v1110
    %v1112 = vpop.f32.mrf.mxu0
    %1113 = vdwg.mxu0
    %v1115 = vsel %vm463, %v1044, 0
    %v1118 = vsel %vm463, %v1052, 0
    %1120 = vmatpush.bf16.xpose.msra.mxu0 0
    %1121 = vmatpush.bf16.xpose.msra.mxu0 0
    %1122 = vmatpush.bf16.xpose.msra.mxu0 0
    %1123 = vmatpush.bf16.xpose.msra.mxu0 0
    %1124 = vmatpush.bf16.xpose.msra.mxu0 0
    %1125 = vmatpush.bf16.xpose.msra.mxu0 0
    %1126 = vmatpush.bf16.xpose.msra.mxu0 0
    %1127 = vmatpush.bf16.xpose.msra.mxu0 %v1118
    %1128 = vmatmul.bf16.gmra.mxu0 %v1115
    %v1129 = vpop.f32.mrf.mxu0
    %v1130 = vadd.f32 0.0, %v1129
    %v1131 = vpop.f32.mrf.mxu0
    %1132 = vdwg.mxu0
    %v1134 = vsel %vm463, %v1045, 0
    %v1137 = vsel %vm463, %v1053, 0
    %1139 = vmatpush.bf16.xpose.msra.mxu0 0
    %1140 = vmatpush.bf16.xpose.msra.mxu0 0
    %1141 = vmatpush.bf16.xpose.msra.mxu0 0
    %1142 = vmatpush.bf16.xpose.msra.mxu0 0
    %1143 = vmatpush.bf16.xpose.msra.mxu0 0
    %1144 = vmatpush.bf16.xpose.msra.mxu0 0
    %1145 = vmatpush.bf16.xpose.msra.mxu0 0
    %1146 = vmatpush.bf16.xpose.msra.mxu0 %v1137
    %1147 = vmatmul.bf16.gmra.mxu0 %v1134
    %v1148 = vpop.f32.mrf.mxu0
    %v1149 = vadd.f32 0.0, %v1148
    %v1150 = vpop.f32.mrf.mxu0
    %1151 = vdwg.mxu0
    %v1153 = vsel %vm463, %v1046, 0
    %v1156 = vsel %vm463, %v1054, 0
    %1158 = vmatpush.bf16.xpose.msra.mxu0 0
    %1159 = vmatpush.bf16.xpose.msra.mxu0 0
    %1160 = vmatpush.bf16.xpose.msra.mxu0 0
    %1161 = vmatpush.bf16.xpose.msra.mxu0 0
    %1162 = vmatpush.bf16.xpose.msra.mxu0 0
    %1163 = vmatpush.bf16.xpose.msra.mxu0 0
    %1164 = vmatpush.bf16.xpose.msra.mxu0 0
    %1165 = vmatpush.bf16.xpose.msra.mxu0 %v1156
    %1166 = vmatmul.bf16.gmra.mxu0 %v1153
    %v1167 = vpop.f32.mrf.mxu0
    %v1168 = vadd.f32 0.0, %v1167
    %v1169 = vpop.f32.mrf.mxu0
    %1170 = vdwg.mxu0
    %v1172 = vsel %vm463, %v1047, 0
    %v1175 = vsel %vm463, %v1055, 0
    %1177 = vmatpush.bf16.xpose.msra.mxu0 0
    %1178 = vmatpush.bf16.xpose.msra.mxu0 0
    %1179 = vmatpush.bf16.xpose.msra.mxu0 0
    %1180 = vmatpush.bf16.xpose.msra.mxu0 0
    %1181 = vmatpush.bf16.xpose.msra.mxu0 0
    %1182 = vmatpush.bf16.xpose.msra.mxu0 0
    %1183 = vmatpush.bf16.xpose.msra.mxu0 0
    %1184 = vmatpush.bf16.xpose.msra.mxu0 %v1175
    %1185 = vmatmul.bf16.gmra.mxu0 %v1172
    %v1186 = vpop.f32.mrf.mxu0
    %v1187 = vadd.f32 0.0, %v1186
    %v1188 = vpop.f32.mrf.mxu0
    %1189 = vdwg.mxu0
    %v1191 = vsel %vm463, %v1048, 0
    %v1194 = vsel %vm463, %v1056, 0
    %1196 = vmatpush.bf16.xpose.msra.mxu0 0
    %1197 = vmatpush.bf16.xpose.msra.mxu0 0
    %1198 = vmatpush.bf16.xpose.msra.mxu0 0
    %1199 = vmatpush.bf16.xpose.msra.mxu0 0
    %1200 = vmatpush.bf16.xpose.msra.mxu0 0
    %1201 = vmatpush.bf16.xpose.msra.mxu0 0
    %1202 = vmatpush.bf16.xpose.msra.mxu0 0
    %1203 = vmatpush.bf16.xpose.msra.mxu0 %v1194
    %1204 = vmatmul.bf16.gmra.mxu0 %v1191
    %v1205 = vpop.f32.mrf.mxu0
    %v1206 = vadd.f32 0.0, %v1205
    %v1207 = vpop.f32.mrf.mxu0
    %1208 = vdwg.mxu0
    %v1209 = vmul.f32 %v1073, 0.25
    %v1210 = vmul.f32 %v1092, 0.25
    %v1211 = vmul.f32 %v1111, 0.25
    %v1212 = vmul.f32 %v1130, 0.25
    %v1213 = vmul.f32 %v1149, 0.25
    %v1214 = vmul.f32 %v1168, 0.25
    %v1215 = vmul.f32 %v1187, 0.25
    %v1216 = vmul.f32 %v1206, 0.25
    %v1217 = vsel %vm624, %v1209, -inf
    %1218 = vmax.xlane.f32.xlu0 %v1217
    %v1219 = vpop.xlane.xlu0 %1218
    %v1220 = vsel %vm624, %v1210, -inf
    %1221 = vmax.xlane.f32.xlu0 %v1220
    %v1222 = vpop.xlane.xlu0 %1221
    %v1223 = vsel %vm624, %v1211, -inf
    %1224 = vmax.xlane.f32.xlu0 %v1223
    %v1225 = vpop.xlane.xlu0 %1224
    %v1226 = vsel %vm624, %v1212, -inf
    %1227 = vmax.xlane.f32.xlu0 %v1226
    %v1228 = vpop.xlane.xlu0 %1227
    %v1229 = vsel %vm624, %v1213, -inf
    %1230 = vmax.xlane.f32.xlu0 %v1229
    %v1231 = vpop.xlane.xlu0 %1230
    %v1232 = vsel %vm624, %v1214, -inf
    %1233 = vmax.xlane.f32.xlu0 %v1232
    %v1234 = vpop.xlane.xlu0 %1233
    %v1235 = vsel %vm624, %v1215, -inf
    %1236 = vmax.xlane.f32.xlu0 %v1235
    %v1237 = vpop.xlane.xlu0 %1236
    %v1238 = vsel %vm624, %v1216, -inf
    %1239 = vmax.xlane.f32.xlu0 %v1238
    %v1240 = vpop.xlane.xlu0 %1239
    %v1241 = vsub.f32 %v1209, %v1219
    %v1242 = vsub.f32 %v1210, %v1222
    %v1243 = vsub.f32 %v1211, %v1225
    %v1244 = vsub.f32 %v1212, %v1228
    %v1245 = vsub.f32 %v1213, %v1231
    %v1246 = vsub.f32 %v1214, %v1234
    %v1247 = vsub.f32 %v1215, %v1237
    %v1248 = vsub.f32 %v1216, %v1240
    %v1249 = vmul.f32 %v1241, 1.442695
    %v1250 = vpow.pop %v1249
    %v1251 = vmul.f32 %v1242, 1.442695
    %v1252 = vpow.pop %v1251
    %v1253 = vmul.f32 %v1243, 1.442695
    %v1254 = vpow.pop %v1253
    %v1255 = vmul.f32 %v1244, 1.442695
    %v1256 = vpow.pop %v1255
    %v1257 = vmul.f32 %v1245, 1.442695
    %v1258 = vpow.pop %v1257
    %v1259 = vmul.f32 %v1246, 1.442695
    %v1260 = vpow.pop %v1259
    %v1261 = vmul.f32 %v1247, 1.442695
    %v1262 = vpow.pop %v1261
    %v1263 = vmul.f32 %v1248, 1.442695
    %v1264 = vpow.pop %v1263
    %v1265 = vsel %vm624, %v1250, 0.0
    %1266 = vadd.xlane.f32.xlu0 %v1265
    %v1267 = vpop.xlane.xlu0 %1266
    %v1268 = vsel %vm624, %v1252, 0.0
    %1269 = vadd.xlane.f32.xlu0 %v1268
    %v1270 = vpop.xlane.xlu0 %1269
    %v1271 = vsel %vm624, %v1254, 0.0
    %1272 = vadd.xlane.f32.xlu0 %v1271
    %v1273 = vpop.xlane.xlu0 %1272
    %v1274 = vsel %vm624, %v1256, 0.0
    %1275 = vadd.xlane.f32.xlu0 %v1274
    %v1276 = vpop.xlane.xlu0 %1275
    %v1277 = vsel %vm624, %v1258, 0.0
    %1278 = vadd.xlane.f32.xlu0 %v1277
    %v1279 = vpop.xlane.xlu0 %1278
    %v1280 = vsel %vm624, %v1260, 0.0
    %1281 = vadd.xlane.f32.xlu0 %v1280
    %v1282 = vpop.xlane.xlu0 %1281
    %v1283 = vsel %vm624, %v1262, 0.0
    %1284 = vadd.xlane.f32.xlu0 %v1283
    %v1285 = vpop.xlane.xlu0 %1284
    %v1286 = vsel %vm624, %v1264, 0.0
    %1287 = vadd.xlane.f32.xlu0 %v1286
    %v1288 = vpop.xlane.xlu0 %1287
    %v1289 = vrcp.pop %v1267
    %v1290 = vrcp.pop %v1270
    %v1291 = vrcp.pop %v1273
    %v1292 = vrcp.pop %v1276
    %v1293 = vrcp.pop %v1279
    %v1294 = vrcp.pop %v1282
    %v1295 = vrcp.pop %v1285
    %v1296 = vrcp.pop %v1288
    %v1297 = vmul.f32 %v1250, %v1289
    %v1298 = vmul.f32 %v1252, %v1290
    %v1299 = vmul.f32 %v1254, %v1291
    %v1300 = vmul.f32 %v1256, %v1292
    %v1301 = vmul.f32 %v1258, %v1293
    %v1302 = vmul.f32 %v1260, %v1294
    %v1303 = vmul.f32 %v1262, %v1295
    %v1304 = vmul.f32 %v1264, %v1296
    %v1305 = vpack.c.bf16 %v1297, %v1297
    %v1306 = vpack.c.bf16 %v1298, %v1298
    %v1307 = vpack.c.bf16 %v1299, %v1299
    %v1308 = vpack.c.bf16 %v1300, %v1300
    %v1309 = vpack.c.bf16 %v1301, %v1301
    %v1310 = vpack.c.bf16 %v1302, %v1302
    %v1311 = vpack.c.bf16 %v1303, %v1303
    %v1312 = vpack.c.bf16 %v1304, %v1304
    %v1313 = vpack.c.bf16 %v1022, %v1022
    %v1314 = vpack.c.bf16 %v1024, %v1024
    %v1315 = vpack.c.bf16 %v1027, %v1027
    %v1316 = vpack.c.bf16 %v1029, %v1029
    %v1317 = vpack.c.bf16 %v1032, %v1032
    %v1318 = vpack.c.bf16 %v1034, %v1034
    %v1319 = vpack.c.bf16 %v1037, %v1037
    %v1320 = vpack.c.bf16 %v1039, %v1039
    %v1322 = vsel %vm624, %v1305, 0
    %v1325 = vsel %vm732, %v1313, 0
    %1327 = vmatpush.bf16.msra.mxu0 0
    %1328 = vmatpush.bf16.msra.mxu0 0
    %1329 = vmatpush.bf16.msra.mxu0 0
    %1330 = vmatpush.bf16.msra.mxu0 0
    %1331 = vmatpush.bf16.msra.mxu0 0
    %1332 = vmatpush.bf16.msra.mxu0 0
    %1333 = vmatpush.bf16.msra.mxu0 0
    %1334 = vmatpush.bf16.msra.mxu0 %v1325
    %1335 = vmatmul.bf16.gmra.mxu0 %v1322
    %v1336 = vpop.f32.mrf.mxu0
    %v1337 = vadd.f32 0.0, %v1336
    %v1338 = vpop.f32.mrf.mxu0
    %1339 = vdwg.mxu0
    %v1341 = vsel %vm624, %v1306, 0
    %v1344 = vsel %vm732, %v1314, 0
    %1346 = vmatpush.bf16.msra.mxu0 0
    %1347 = vmatpush.bf16.msra.mxu0 0
    %1348 = vmatpush.bf16.msra.mxu0 0
    %1349 = vmatpush.bf16.msra.mxu0 0
    %1350 = vmatpush.bf16.msra.mxu0 0
    %1351 = vmatpush.bf16.msra.mxu0 0
    %1352 = vmatpush.bf16.msra.mxu0 0
    %1353 = vmatpush.bf16.msra.mxu0 %v1344
    %1354 = vmatmul.bf16.gmra.mxu0 %v1341
    %v1355 = vpop.f32.mrf.mxu0
    %v1356 = vadd.f32 0.0, %v1355
    %v1357 = vpop.f32.mrf.mxu0
    %1358 = vdwg.mxu0
    %v1360 = vsel %vm624, %v1307, 0
    %v1363 = vsel %vm732, %v1315, 0
    %1365 = vmatpush.bf16.msra.mxu0 0
    %1366 = vmatpush.bf16.msra.mxu0 0
    %1367 = vmatpush.bf16.msra.mxu0 0
    %1368 = vmatpush.bf16.msra.mxu0 0
    %1369 = vmatpush.bf16.msra.mxu0 0
    %1370 = vmatpush.bf16.msra.mxu0 0
    %1371 = vmatpush.bf16.msra.mxu0 0
    %1372 = vmatpush.bf16.msra.mxu0 %v1363
    %1373 = vmatmul.bf16.gmra.mxu0 %v1360
    %v1374 = vpop.f32.mrf.mxu0
    %v1375 = vadd.f32 0.0, %v1374
    %v1376 = vpop.f32.mrf.mxu0
    %1377 = vdwg.mxu0
    %v1379 = vsel %vm624, %v1308, 0
    %v1382 = vsel %vm732, %v1316, 0
    %1384 = vmatpush.bf16.msra.mxu0 0
    %1385 = vmatpush.bf16.msra.mxu0 0
    %1386 = vmatpush.bf16.msra.mxu0 0
    %1387 = vmatpush.bf16.msra.mxu0 0
    %1388 = vmatpush.bf16.msra.mxu0 0
    %1389 = vmatpush.bf16.msra.mxu0 0
    %1390 = vmatpush.bf16.msra.mxu0 0
    %1391 = vmatpush.bf16.msra.mxu0 %v1382
    %1392 = vmatmul.bf16.gmra.mxu0 %v1379
    %v1393 = vpop.f32.mrf.mxu0
    %v1394 = vadd.f32 0.0, %v1393
    %v1395 = vpop.f32.mrf.mxu0
    %1396 = vdwg.mxu0
    %v1398 = vsel %vm624, %v1309, 0
    %v1401 = vsel %vm732, %v1317, 0
    %1403 = vmatpush.bf16.msra.mxu0 0
    %1404 = vmatpush.bf16.msra.mxu0 0
    %1405 = vmatpush.bf16.msra.mxu0 0
    %1406 = vmatpush.bf16.msra.mxu0 0
    %1407 = vmatpush.bf16.msra.mxu0 0
    %1408 = vmatpush.bf16.msra.mxu0 0
    %1409 = vmatpush.bf16.msra.mxu0 0
    %1410 = vmatpush.bf16.msra.mxu0 %v1401
    %1411 = vmatmul.bf16.gmra.mxu0 %v1398
    %v1412 = vpop.f32.mrf.mxu0
    %v1413 = vadd.f32 0.0, %v1412
    %v1414 = vpop.f32.mrf.mxu0
    %1415 = vdwg.mxu0
    %v1417 = vsel %vm624, %v1310, 0
    %v1420 = vsel %vm732, %v1318, 0
    %1422 = vmatpush.bf16.msra.mxu0 0
    %1423 = vmatpush.bf16.msra.mxu0 0
    %1424 = vmatpush.bf16.msra.mxu0 0
    %1425 = vmatpush.bf16.msra.mxu0 0
    %1426 = vmatpush.bf16.msra.mxu0 0
    %1427 = vmatpush.bf16.msra.mxu0 0
    %1428 = vmatpush.bf16.msra.mxu0 0
    %1429 = vmatpush.bf16.msra.mxu0 %v1420
    %1430 = vmatmul.bf16.gmra.mxu0 %v1417
    %v1431 = vpop.f32.mrf.mxu0
    %v1432 = vadd.f32 0.0, %v1431
    %v1433 = vpop.f32.mrf.mxu0
    %1434 = vdwg.mxu0
    %v1436 = vsel %vm624, %v1311, 0
    %v1439 = vsel %vm732, %v1319, 0
    %1441 = vmatpush.bf16.msra.mxu0 0
    %1442 = vmatpush.bf16.msra.mxu0 0
    %1443 = vmatpush.bf16.msra.mxu0 0
    %1444 = vmatpush.bf16.msra.mxu0 0
    %1445 = vmatpush.bf16.msra.mxu0 0
    %1446 = vmatpush.bf16.msra.mxu0 0
    %1447 = vmatpush.bf16.msra.mxu0 0
    %1448 = vmatpush.bf16.msra.mxu0 %v1439
    %1449 = vmatmul.bf16.gmra.mxu0 %v1436
    %v1450 = vpop.f32.mrf.mxu0
    %v1451 = vadd.f32 0.0, %v1450
    %v1452 = vpop.f32.mrf.mxu0
    %1453 = vdwg.mxu0
    %v1455 = vsel %vm624, %v1312, 0
    %v1458 = vsel %vm732, %v1320, 0
    %1460 = vmatpush.bf16.msra.mxu0 0
    %1461 = vmatpush.bf16.msra.mxu0 0
    %1462 = vmatpush.bf16.msra.mxu0 0
    %1463 = vmatpush.bf16.msra.mxu0 0
    %1464 = vmatpush.bf16.msra.mxu0 0
    %1465 = vmatpush.bf16.msra.mxu0 0
    %1466 = vmatpush.bf16.msra.mxu0 0
    %1467 = vmatpush.bf16.msra.mxu0 %v1458
    %1468 = vmatmul.bf16.gmra.mxu0 %v1455
    %v1469 = vpop.f32.mrf.mxu0
    %v1470 = vadd.f32 0.0, %v1469
    %v1471 = vpop.f32.mrf.mxu0
    %1472 = vdwg.mxu0
    %s1473 = scalar_lea.vmem %s7, 8
    %v1474 = vld [vmem:[%s1473] sm:$0xf]
    %v1475 = vld [vmem:[%s1473 + $0x4] sm:$0xf]
    %v1476 = vpack.c.bf16 %v1356, %v1337
    %v1477 = vpack.c.bf16 %v1394, %v1375
    %v1478 = vpack.c.bf16 %v1432, %v1413
    %v1479 = vpack.c.bf16 %v1470, %v1451
    %v1482 = vunpack.c.l.b16 %v1474
    %v1483 = vunpack.c.l.b16 %v1475
    %v1484 = vpack.c.b16 %v1483, %v1482
    %v1487 = vsel %vm463, %v1476, 0
    %v1490 = vsel %vm463, %v1477, 0
    %v1493 = vsel %vm463, %v1478, 0
    %v1496 = vsel %vm463, %v1479, 0
    %1498 = vmatpush.bf16.msra.mxu0 0
    %1499 = vmatpush.bf16.msra.mxu0 0
    %1500 = vmatpush.bf16.msra.mxu0 0
    %1501 = vmatpush.bf16.msra.mxu0 0
    %1502 = vmatpush.bf16.msra.mxu0 0
    %1503 = vmatpush.bf16.msra.mxu0 0
    %1504 = vmatpush.bf16.msra.mxu0 0
    %1505 = vmatpush.bf16.msra.mxu0 %v1484
    %1506 = vmatmul.bf16.gmra.mxu0 %v1487
    %v1507 = vpop.f32.mrf.mxu0
    %v1508 = vadd.f32 0.0, %v1507
    %v1509 = vpop.f32.mrf.mxu0
    %v1510 = vadd.f32 0.0, %v1509
    %1511 = vmatmul.bf16.gmra.mxu0 %v1490
    %v1512 = vpop.f32.mrf.mxu0
    %v1513 = vadd.f32 0.0, %v1512
    %v1514 = vpop.f32.mrf.mxu0
    %v1515 = vadd.f32 0.0, %v1514
    %1516 = vmatmul.bf16.gmra.mxu0 %v1493
    %v1517 = vpop.f32.mrf.mxu0
    %v1518 = vadd.f32 0.0, %v1517
    %v1519 = vpop.f32.mrf.mxu0
    %v1520 = vadd.f32 0.0, %v1519
    %1521 = vmatmul.bf16.gmra.mxu0 %v1496
    %v1522 = vpop.f32.mrf.mxu0
    %v1523 = vadd.f32 0.0, %v1522
    %v1524 = vpop.f32.mrf.mxu0
    %v1525 = vadd.f32 0.0, %v1524
    %1526 = vdwg.mxu0
    %v1529 = vunpack.c.l.b16 %v882
    %v1530 = vunpack.c.l.b16 %v883
    %v1531 = vpack.c.b16 %v1530, %v1529
    %v1534 = vsel %vm463, %v884, 0
    %v1537 = vsel %vm463, %v885, 0
    %v1540 = vsel %vm463, %v886, 0
    %v1543 = vsel %vm463, %v887, 0
    %1545 = vmatpush.bf16.msra.mxu0 0
    %1546 = vmatpush.bf16.msra.mxu0 0
    %1547 = vmatpush.bf16.msra.mxu0 0
    %1548 = vmatpush.bf16.msra.mxu0 0
    %1549 = vmatpush.bf16.msra.mxu0 0
    %1550 = vmatpush.bf16.msra.mxu0 0
    %1551 = vmatpush.bf16.msra.mxu0 0
    %1552 = vmatpush.bf16.msra.mxu0 %v1531
    %1553 = vmatmul.bf16.gmra.mxu0 %v1534
    %v1554 = vpop.f32.mrf.mxu0
    %v1555 = vadd.f32 %v1508, %v1554
    %v1556 = vpop.f32.mrf.mxu0
    %v1557 = vadd.f32 %v1510, %v1556
    %1558 = vmatmul.bf16.gmra.mxu0 %v1537
    %v1559 = vpop.f32.mrf.mxu0
    %v1560 = vadd.f32 %v1513, %v1559
    %v1561 = vpop.f32.mrf.mxu0
    %v1562 = vadd.f32 %v1515, %v1561
    %1563 = vmatmul.bf16.gmra.mxu0 %v1540
    %v1564 = vpop.f32.mrf.mxu0
    %v1565 = vadd.f32 %v1518, %v1564
    %v1566 = vpop.f32.mrf.mxu0
    %v1567 = vadd.f32 %v1520, %v1566
    %1568 = vmatmul.bf16.gmra.mxu0 %v1543
    %v1569 = vpop.f32.mrf.mxu0
    %v1570 = vadd.f32 %v1523, %v1569
    %v1571 = vpop.f32.mrf.mxu0
    %v1572 = vadd.f32 %v1525, %v1571
    %1573 = vdwg.mxu0
    %s1574 = scalar_lea.vmem [#allocation4], 3
    %v1575 = vld [vmem:[%s1574] sm:$0x1]
    %v1577 = vperm.slane %v1575, 0
    %v1579 = vadd.f32 %v1555, %v1577
    %v1580 = vadd.f32 %v1557, %v1577
    %v1581 = vadd.f32 %v1560, %v1577
    %v1582 = vadd.f32 %v1562, %v1577
    %v1583 = vadd.f32 %v1565, %v1577
    %v1584 = vadd.f32 %v1567, %v1577
    %v1585 = vadd.f32 %v1570, %v1577
    %v1586 = vadd.f32 %v1572, %v1577
    %v1587 = vadd.f32 %v193, %v1579
    %v1588 = vadd.f32 %v194, %v1580
    %v1589 = vadd.f32 %v195, %v1581
    %v1590 = vadd.f32 %v196, %v1582
    %v1591 = vadd.f32 %v197, %v1583
    %v1592 = vadd.f32 %v198, %v1584
    %v1593 = vadd.f32 %v199, %v1585
    %v1594 = vadd.f32 %v200, %v1586
    %s1595 = scalar_lea.vmem [#allocation4], 4
    %v1596 = vld [vmem:[%s1595] sm:$0x1]
    %s1597 = scalar_lea.vmem [#allocation4], 5
    %v1598 = vld [vmem:[%s1597] sm:$0x1]
    %v1599 = vsel %vm151, %v1587, 0.0
    %1600 = vadd.xlane.f32.xlu0 %v1599
    %v1601 = vpop.xlane.xlu0 %1600
    %v1602 = vsel %vm151, %v1588, 0.0
    %1603 = vadd.xlane.f32.xlu0 %v1602
    %v1604 = vpop.xlane.xlu0 %1603
    %v1605 = vsel %vm151, %v1589, 0.0
    %1606 = vadd.xlane.f32.xlu0 %v1605
    %v1607 = vpop.xlane.xlu0 %1606
    %v1608 = vsel %vm151, %v1590, 0.0
    %1609 = vadd.xlane.f32.xlu0 %v1608
    %v1610 = vpop.xlane.xlu0 %1609
    %v1611 = vsel %vm151, %v1591, 0.0
    %1612 = vadd.xlane.f32.xlu0 %v1611
    %v1613 = vpop.xlane.xlu0 %1612
    %v1614 = vsel %vm151, %v1592, 0.0
    %1615 = vadd.xlane.f32.xlu0 %v1614
    %v1616 = vpop.xlane.xlu0 %1615
    %v1617 = vsel %vm151, %v1593, 0.0
    %1618 = vadd.xlane.f32.xlu0 %v1617
    %v1619 = vpop.xlane.xlu0 %1618
    %v1620 = vsel %vm151, %v1594, 0.0
    %1621 = vadd.xlane.f32.xlu0 %v1620
    %v1622 = vpop.xlane.xlu0 %1621
    %v1623 = vrcp.pop 32.0
    %v1624 = vmul.f32 32.0, %v1623
    %v1625 = vsub.f32 1.0, %v1624
    %v1626 = vmul.f32 %v1623, %v1625
    %v1627 = vadd.f32 %v1623, %v1626
    %vm1628 = vweird.f32 %v1623
    %v1629 = vsel %vm1628, %v1623, %v1627
    %v1630 = vmul.f32 %v1601, %v1629
    %v1631 = vmul.f32 %v1604, %v1629
    %v1632 = vmul.f32 %v1607, %v1629
    %v1633 = vmul.f32 %v1610, %v1629
    %v1634 = vmul.f32 %v1613, %v1629
    %v1635 = vmul.f32 %v1616, %v1629
    %v1636 = vmul.f32 %v1619, %v1629
    %v1637 = vmul.f32 %v1622, %v1629
    %v1638 = vsub.f32 %v1587, %v1630
    %v1639 = vsub.f32 %v1588, %v1631
    %v1640 = vsub.f32 %v1589, %v1632
    %v1641 = vsub.f32 %v1590, %v1633
    %v1642 = vsub.f32 %v1591, %v1634
    %v1643 = vsub.f32 %v1592, %v1635
    %v1644 = vsub.f32 %v1593, %v1636
    %v1645 = vsub.f32 %v1594, %v1637
    %v1646 = vmul.f32 %v1638, %v1638
    %v1647 = vmul.f32 %v1639, %v1639
    %v1648 = vmul.f32 %v1640, %v1640
    %v1649 = vmul.f32 %v1641, %v1641
    %v1650 = vmul.f32 %v1642, %v1642
    %v1651 = vmul.f32 %v1643, %v1643
    %v1652 = vmul.f32 %v1644, %v1644
    %v1653 = vmul.f32 %v1645, %v1645
    %v1654 = vsel %vm151, %v1646, 0.0
    %1655 = vadd.xlane.f32.xlu0 %v1654
    %v1656 = vpop.xlane.xlu0 %1655
    %v1657 = vsel %vm151, %v1647, 0.0
    %1658 = vadd.xlane.f32.xlu0 %v1657
    %v1659 = vpop.xlane.xlu0 %1658
    %v1660 = vsel %vm151, %v1648, 0.0
    %1661 = vadd.xlane.f32.xlu0 %v1660
    %v1662 = vpop.xlane.xlu0 %1661
    %v1663 = vsel %vm151, %v1649, 0.0
    %1664 = vadd.xlane.f32.xlu0 %v1663
    %v1665 = vpop.xlane.xlu0 %1664
    %v1666 = vsel %vm151, %v1650, 0.0
    %1667 = vadd.xlane.f32.xlu0 %v1666
    %v1668 = vpop.xlane.xlu0 %1667
    %v1669 = vsel %vm151, %v1651, 0.0
    %1670 = vadd.xlane.f32.xlu0 %v1669
    %v1671 = vpop.xlane.xlu0 %1670
    %v1672 = vsel %vm151, %v1652, 0.0
    %1673 = vadd.xlane.f32.xlu0 %v1672
    %v1674 = vpop.xlane.xlu0 %1673
    %v1675 = vsel %vm151, %v1653, 0.0
    %1676 = vadd.xlane.f32.xlu0 %v1675
    %v1677 = vpop.xlane.xlu0 %1676
    %v1678 = vmul.f32 %v1656, %v1629
    %v1679 = vmul.f32 %v1659, %v1629
    %v1680 = vmul.f32 %v1662, %v1629
    %v1681 = vmul.f32 %v1665, %v1629
    %v1682 = vmul.f32 %v1668, %v1629
    %v1683 = vmul.f32 %v1671, %v1629
    %v1684 = vmul.f32 %v1674, %v1629
    %v1685 = vmul.f32 %v1677, %v1629
    %v1686 = vadd.f32 %v1678, 1e-05
    %v1687 = vadd.f32 %v1679, 1e-05
    %v1688 = vadd.f32 %v1680, 1e-05
    %v1689 = vadd.f32 %v1681, 1e-05
    %v1690 = vadd.f32 %v1682, 1e-05
    %v1691 = vadd.f32 %v1683, 1e-05
    %v1692 = vadd.f32 %v1684, 1e-05
    %v1693 = vadd.f32 %v1685, 1e-05
    %v1694 = vrsqrt.pop %v1686
    %v1695 = vmul.f32 %v1694, %v1686
    %v1696 = vmul.f32 %v1695, %v1694
    %v1697 = vmul.f32 0.5, %v1696
    %v1698 = vsub.f32 1.5, %v1697
    %v1699 = vmul.f32 %v1694, %v1698
    %vm1700 = vweird.f32 %v1686
    %vm1701 = vweird.f32 %v1694
    %vm1702 = vmor %vm1700, %vm1701
    %v1703 = vsel %vm1702, %v1694, %v1699
    %v1704 = vrsqrt.pop %v1687
    %v1705 = vmul.f32 %v1704, %v1687
    %v1706 = vmul.f32 %v1705, %v1704
    %v1707 = vmul.f32 0.5, %v1706
    %v1708 = vsub.f32 1.5, %v1707
    %v1709 = vmul.f32 %v1704, %v1708
    %vm1710 = vweird.f32 %v1687
    %vm1711 = vweird.f32 %v1704
    %vm1712 = vmor %vm1710, %vm1711
    %v1713 = vsel %vm1712, %v1704, %v1709
    %v1714 = vrsqrt.pop %v1688
    %v1715 = vmul.f32 %v1714, %v1688
    %v1716 = vmul.f32 %v1715, %v1714
    %v1717 = vmul.f32 0.5, %v1716
    %v1718 = vsub.f32 1.5, %v1717
    %v1719 = vmul.f32 %v1714, %v1718
    %vm1720 = vweird.f32 %v1688
    %vm1721 = vweird.f32 %v1714
    %vm1722 = vmor %vm1720, %vm1721
    %v1723 = vsel %vm1722, %v1714, %v1719
    %v1724 = vrsqrt.pop %v1689
    %v1725 = vmul.f32 %v1724, %v1689
    %v1726 = vmul.f32 %v1725, %v1724
    %v1727 = vmul.f32 0.5, %v1726
    %v1728 = vsub.f32 1.5, %v1727
    %v1729 = vmul.f32 %v1724, %v1728
    %vm1730 = vweird.f32 %v1689
    %vm1731 = vweird.f32 %v1724
    %vm1732 = vmor %vm1730, %vm1731
    %v1733 = vsel %vm1732, %v1724, %v1729
    %v1734 = vrsqrt.pop %v1690
    %v1735 = vmul.f32 %v1734, %v1690
    %v1736 = vmul.f32 %v1735, %v1734
    %v1737 = vmul.f32 0.5, %v1736
    %v1738 = vsub.f32 1.5, %v1737
    %v1739 = vmul.f32 %v1734, %v1738
    %vm1740 = vweird.f32 %v1690
    %vm1741 = vweird.f32 %v1734
    %vm1742 = vmor %vm1740, %vm1741
    %v1743 = vsel %vm1742, %v1734, %v1739
    %v1744 = vrsqrt.pop %v1691
    %v1745 = vmul.f32 %v1744, %v1691
    %v1746 = vmul.f32 %v1745, %v1744
    %v1747 = vmul.f32 0.5, %v1746
    %v1748 = vsub.f32 1.5, %v1747
    %v1749 = vmul.f32 %v1744, %v1748
    %vm1750 = vweird.f32 %v1691
    %vm1751 = vweird.f32 %v1744
    %vm1752 = vmor %vm1750, %vm1751
    %v1753 = vsel %vm1752, %v1744, %v1749
    %v1754 = vrsqrt.pop %v1692
    %v1755 = vmul.f32 %v1754, %v1692
    %v1756 = vmul.f32 %v1755, %v1754
    %v1757 = vmul.f32 0.5, %v1756
    %v1758 = vsub.f32 1.5, %v1757
    %v1759 = vmul.f32 %v1754, %v1758
    %vm1760 = vweird.f32 %v1692
    %vm1761 = vweird.f32 %v1754
    %vm1762 = vmor %vm1760, %vm1761
    %v1763 = vsel %vm1762, %v1754, %v1759
    %v1764 = vrsqrt.pop %v1693
    %v1765 = vmul.f32 %v1764, %v1693
    %v1766 = vmul.f32 %v1765, %v1764
    %v1767 = vmul.f32 0.5, %v1766
    %v1768 = vsub.f32 1.5, %v1767
    %v1769 = vmul.f32 %v1764, %v1768
    %vm1770 = vweird.f32 %v1693
    %vm1771 = vweird.f32 %v1764
    %vm1772 = vmor %vm1770, %vm1771
    %v1773 = vsel %vm1772, %v1764, %v1769
    %v1774 = vmul.f32 %v1638, %v1703
    %v1775 = vmul.f32 %v1639, %v1713
    %v1776 = vmul.f32 %v1640, %v1723
    %v1777 = vmul.f32 %v1641, %v1733
    %v1778 = vmul.f32 %v1642, %v1743
    %v1779 = vmul.f32 %v1643, %v1753
    %v1780 = vmul.f32 %v1644, %v1763
    %v1781 = vmul.f32 %v1645, %v1773
    %v1783 = vperm.slane %v1596, 0
    %v1785 = vmul.f32 %v1774, %v1783
    %v1786 = vmul.f32 %v1775, %v1783
    %v1787 = vmul.f32 %v1776, %v1783
    %v1788 = vmul.f32 %v1777, %v1783
    %v1789 = vmul.f32 %v1778, %v1783
    %v1790 = vmul.f32 %v1779, %v1783
    %v1791 = vmul.f32 %v1780, %v1783
    %v1792 = vmul.f32 %v1781, %v1783
    %v1794 = vperm.slane %v1598, 0
    %v1796 = vadd.f32 %v1785, %v1794
    %v1797 = vadd.f32 %v1786, %v1794
    %v1798 = vadd.f32 %v1787, %v1794
    %v1799 = vadd.f32 %v1788, %v1794
    %v1800 = vadd.f32 %v1789, %v1794
    %v1801 = vadd.f32 %v1790, %v1794
    %v1802 = vadd.f32 %v1791, %v1794
    %v1803 = vadd.f32 %v1792, %v1794
    %v1804 = vld [vmem:[%s8] sm:$0xf]
    %v1805 = vld [vmem:[%s8 + $0x4] sm:$0xf]
    %v1806 = vld [vmem:[%s8 + $0x8] sm:$0xf]
    %v1807 = vld [vmem:[%s8 + $0xc] sm:$0xf]
    %v1808 = vpack.c.bf16 %v1797, %v1796
    %v1809 = vpack.c.bf16 %v1799, %v1798
    %v1810 = vpack.c.bf16 %v1801, %v1800
    %v1811 = vpack.c.bf16 %v1803, %v1802
    %v1812 = vld [vmem:[%s9] sm:$0x1]
    %v1814 = vperm.slane %v1812, 0
    %v1820 = vunpack.c.l.b16 %v1804
    %v1821 = vunpack.c.l.b16 %v1805
    %v1822 = vunpack.c.l.b16 %v1806
    %v1823 = vunpack.c.l.b16 %v1807
    %v1824 = vpack.c.b16 %v1821, %v1820
    %v1825 = vpack.c.b16 %v1823, %v1822
    %v1829 = vsel %vm151, %v1808, 0
    %v1832 = vsel %vm151, %v1809, 0
    %v1835 = vsel %vm151, %v1810, 0
    %v1838 = vsel %vm151, %v1811, 0
    %1840 = vmatpush.bf16.msra.mxu0 0
    %1841 = vmatpush.bf16.msra.mxu0 0
    %1842 = vmatpush.bf16.msra.mxu0 0
    %1843 = vmatpush.bf16.msra.mxu0 0
    %1844 = vmatpush.bf16.msra.mxu0 0
    %1845 = vmatpush.bf16.msra.mxu0 0
    %1846 = vmatpush.bf16.msra.mxu0 %v1825
    %1847 = vmatpush.bf16.msra.mxu0 %v1824
    %1848 = vmatmul.bf16.gmra.mxu0 %v1829
    %v1849 = vpop.f32.mrf.mxu0
    %v1850 = vadd.f32 %v1814, %v1849
    %v1851 = vpop.f32.mrf.mxu0
    %v1852 = vadd.f32 %v1814, %v1851
    %1853 = vmatmul.bf16.gmra.mxu0 %v1832
    %v1854 = vpop.f32.mrf.mxu0
    %v1855 = vadd.f32 %v1814, %v1854
    %v1856 = vpop.f32.mrf.mxu0
    %v1857 = vadd.f32 %v1814, %v1856
    %1858 = vmatmul.bf16.gmra.mxu0 %v1835
    %v1859 = vpop.f32.mrf.mxu0
    %v1860 = vadd.f32 %v1814, %v1859
    %v1861 = vpop.f32.mrf.mxu0
    %v1862 = vadd.f32 %v1814, %v1861
    %1863 = vmatmul.bf16.gmra.mxu0 %v1838
    %v1864 = vpop.f32.mrf.mxu0
    %v1865 = vadd.f32 %v1814, %v1864
    %v1866 = vpop.f32.mrf.mxu0
    %v1867 = vadd.f32 %v1814, %v1866
    %1868 = vdwg.mxu0
    %v1869 = vmax.f32 %v1850, 0.0
    %v1870 = vmax.f32 %v1852, 0.0
    %v1871 = vmax.f32 %v1855, 0.0
    %v1872 = vmax.f32 %v1857, 0.0
    %v1873 = vmax.f32 %v1860, 0.0
    %v1874 = vmax.f32 %v1862, 0.0
    %v1875 = vmax.f32 %v1865, 0.0
    %v1876 = vmax.f32 %v1867, 0.0
    %v1877 = vld [vmem:[%s10] sm:$0xf]
    %v1878 = vld [vmem:[%s10 + $0x4] sm:$0xf]
    %v1879 = vld [vmem:[%s10 + $0x8] sm:$0xf]
    %v1880 = vld [vmem:[%s10 + $0xc] sm:$0xf]
    %v1881 = vld [vmem:[%s10 + $0x10] sm:$0xf]
    %v1882 = vld [vmem:[%s10 + $0x14] sm:$0xf]
    %v1883 = vld [vmem:[%s10 + $0x18] sm:$0xf]
    %v1884 = vld [vmem:[%s10 + $0x1c] sm:$0xf]
    %v1885 = vld [vmem:[%s10 + $0x20] sm:$0xf]
    %v1886 = vld [vmem:[%s10 + $0x24] sm:$0xf]
    %v1887 = vld [vmem:[%s10 + $0x28] sm:$0xf]
    %v1888 = vld [vmem:[%s10 + $0x2c] sm:$0xf]
    %v1889 = vld [vmem:[%s10 + $0x30] sm:$0xf]
    %v1890 = vld [vmem:[%s10 + $0x34] sm:$0xf]
    %v1891 = vld [vmem:[%s10 + $0x38] sm:$0xf]
    %v1892 = vld [vmem:[%s10 + $0x3c] sm:$0xf]
    %v1893 = vpack.c.bf16 %v1870, %v1869
    %v1894 = vpack.c.bf16 %v1872, %v1871
    %v1895 = vpack.c.bf16 %v1874, %v1873
    %v1896 = vpack.c.bf16 %v1876, %v1875
    %s1897 = scalar_lea.vmem [#allocation4], 6
    %v1898 = vld [vmem:[%s1897] sm:$0x1]
    %v1900 = vperm.slane %v1898, 0
    %v1918 = vunpack.c.l.b16 %v1877
    %v1919 = vunpack.c.l.b16 %v1878
    %v1920 = vunpack.c.l.b16 %v1879
    %v1921 = vunpack.c.l.b16 %v1880
    %v1922 = vunpack.c.l.b16 %v1881
    %v1923 = vunpack.c.l.b16 %v1882
    %v1924 = vunpack.c.l.b16 %v1883
    %v1925 = vunpack.c.l.b16 %v1884
    %v1926 = vunpack.c.l.b16 %v1885
    %v1927 = vunpack.c.l.b16 %v1886
    %v1928 = vunpack.c.l.b16 %v1887
    %v1929 = vunpack.c.l.b16 %v1888
    %v1930 = vunpack.c.l.b16 %v1889
    %v1931 = vunpack.c.l.b16 %v1890
    %v1932 = vunpack.c.l.b16 %v1891
    %v1933 = vunpack.c.l.b16 %v1892
    %v1934 = vpack.c.b16 %v1919, %v1918
    %v1935 = vpack.c.b16 %v1921, %v1920
    %v1936 = vpack.c.b16 %v1923, %v1922
    %v1937 = vpack.c.b16 %v1925, %v1924
    %v1938 = vpack.c.b16 %v1927, %v1926
    %v1939 = vpack.c.b16 %v1929, %v1928
    %v1940 = vpack.c.b16 %v1931, %v1930
    %v1941 = vpack.c.b16 %v1933, %v1932
    %1950 = vmatpush.bf16.msra.mxu0 %v1941
    %1951 = vmatpush.bf16.msra.mxu0 %v1940
    %1952 = vmatpush.bf16.msra.mxu0 %v1939
    %1953 = vmatpush.bf16.msra.mxu0 %v1938
    %1954 = vmatpush.bf16.msra.mxu0 %v1937
    %1955 = vmatpush.bf16.msra.mxu0 %v1936
    %1956 = vmatpush.bf16.msra.mxu0 %v1935
    %1957 = vmatpush.bf16.msra.mxu0 %v1934
    %1958 = vmatmul.bf16.gmra.mxu0 %v1893
    %v1959 = vpop.f32.mrf.mxu0
    %v1960 = vadd.f32 %v1900, %v1959
    %v1961 = vpop.f32.mrf.mxu0
    %v1962 = vadd.f32 %v1900, %v1961
    %1963 = vmatmul.bf16.gmra.mxu0 %v1894
    %v1964 = vpop.f32.mrf.mxu0
    %v1965 = vadd.f32 %v1900, %v1964
    %v1966 = vpop.f32.mrf.mxu0
    %v1967 = vadd.f32 %v1900, %v1966
    %1968 = vmatmul.bf16.gmra.mxu0 %v1895
    %v1969 = vpop.f32.mrf.mxu0
    %v1970 = vadd.f32 %v1900, %v1969
    %v1971 = vpop.f32.mrf.mxu0
    %v1972 = vadd.f32 %v1900, %v1971
    %1973 = vmatmul.bf16.gmra.mxu0 %v1896
    %v1974 = vpop.f32.mrf.mxu0
    %v1975 = vadd.f32 %v1900, %v1974
    %v1976 = vpop.f32.mrf.mxu0
    %v1977 = vadd.f32 %v1900, %v1976
    %1978 = vdwg.mxu0
    %v1979 = vadd.f32 %v1796, %v1960
    %v1980 = vadd.f32 %v1797, %v1962
    %v1981 = vadd.f32 %v1798, %v1965
    %v1982 = vadd.f32 %v1799, %v1967
    %v1983 = vadd.f32 %v1800, %v1970
    %v1984 = vadd.f32 %v1801, %v1972
    %v1985 = vadd.f32 %v1802, %v1975
    %v1986 = vadd.f32 %v1803, %v1977
    %s1987 = scalar_lea.vmem [#allocation4], 7
    %v1988 = vld [vmem:[%s1987] sm:$0x1]
    %s1989 = scalar_lea.vmem [#allocation4], 8
    %v1990 = vld [vmem:[%s1989] sm:$0x1]
    %v1991 = vsel %vm151, %v1979, 0.0
    %1992 = vadd.xlane.f32.xlu0 %v1991
    %v1993 = vpop.xlane.xlu0 %1992
    %v1994 = vsel %vm151, %v1980, 0.0
    %1995 = vadd.xlane.f32.xlu0 %v1994
    %v1996 = vpop.xlane.xlu0 %1995
    %v1997 = vsel %vm151, %v1981, 0.0
    %1998 = vadd.xlane.f32.xlu0 %v1997
    %v1999 = vpop.xlane.xlu0 %1998
    %v2000 = vsel %vm151, %v1982, 0.0
    %2001 = vadd.xlane.f32.xlu0 %v2000
    %v2002 = vpop.xlane.xlu0 %2001
    %v2003 = vsel %vm151, %v1983, 0.0
    %2004 = vadd.xlane.f32.xlu0 %v2003
    %v2005 = vpop.xlane.xlu0 %2004
    %v2006 = vsel %vm151, %v1984, 0.0
    %2007 = vadd.xlane.f32.xlu0 %v2006
    %v2008 = vpop.xlane.xlu0 %2007
    %v2009 = vsel %vm151, %v1985, 0.0
    %2010 = vadd.xlane.f32.xlu0 %v2009
    %v2011 = vpop.xlane.xlu0 %2010
    %v2012 = vsel %vm151, %v1986, 0.0
    %2013 = vadd.xlane.f32.xlu0 %v2012
    %v2014 = vpop.xlane.xlu0 %2013
    %v2015 = vmul.f32 %v1993, %v1629
    %v2016 = vmul.f32 %v1996, %v1629
    %v2017 = vmul.f32 %v1999, %v1629
    %v2018 = vmul.f32 %v2002, %v1629
    %v2019 = vmul.f32 %v2005, %v1629
    %v2020 = vmul.f32 %v2008, %v1629
    %v2021 = vmul.f32 %v2011, %v1629
    %v2022 = vmul.f32 %v2014, %v1629
    %v2023 = vsub.f32 %v1979, %v2015
    %v2024 = vsub.f32 %v1980, %v2016
    %v2025 = vsub.f32 %v1981, %v2017
    %v2026 = vsub.f32 %v1982, %v2018
    %v2027 = vsub.f32 %v1983, %v2019
    %v2028 = vsub.f32 %v1984, %v2020
    %v2029 = vsub.f32 %v1985, %v2021
    %v2030 = vsub.f32 %v1986, %v2022
    %v2031 = vmul.f32 %v2023, %v2023
    %v2032 = vmul.f32 %v2024, %v2024
    %v2033 = vmul.f32 %v2025, %v2025
    %v2034 = vmul.f32 %v2026, %v2026
    %v2035 = vmul.f32 %v2027, %v2027
    %v2036 = vmul.f32 %v2028, %v2028
    %v2037 = vmul.f32 %v2029, %v2029
    %v2038 = vmul.f32 %v2030, %v2030
    %v2039 = vsel %vm151, %v2031, 0.0
    %2040 = vadd.xlane.f32.xlu0 %v2039
    %v2041 = vpop.xlane.xlu0 %2040
    %v2042 = vsel %vm151, %v2032, 0.0
    %2043 = vadd.xlane.f32.xlu0 %v2042
    %v2044 = vpop.xlane.xlu0 %2043
    %v2045 = vsel %vm151, %v2033, 0.0
    %2046 = vadd.xlane.f32.xlu0 %v2045
    %v2047 = vpop.xlane.xlu0 %2046
    %v2048 = vsel %vm151, %v2034, 0.0
    %2049 = vadd.xlane.f32.xlu0 %v2048
    %v2050 = vpop.xlane.xlu0 %2049
    %v2051 = vsel %vm151, %v2035, 0.0
    %2052 = vadd.xlane.f32.xlu0 %v2051
    %v2053 = vpop.xlane.xlu0 %2052
    %v2054 = vsel %vm151, %v2036, 0.0
    %2055 = vadd.xlane.f32.xlu0 %v2054
    %v2056 = vpop.xlane.xlu0 %2055
    %v2057 = vsel %vm151, %v2037, 0.0
    %2058 = vadd.xlane.f32.xlu0 %v2057
    %v2059 = vpop.xlane.xlu0 %2058
    %v2060 = vsel %vm151, %v2038, 0.0
    %2061 = vadd.xlane.f32.xlu0 %v2060
    %v2062 = vpop.xlane.xlu0 %2061
    %v2063 = vmul.f32 %v2041, %v1629
    %v2064 = vmul.f32 %v2044, %v1629
    %v2065 = vmul.f32 %v2047, %v1629
    %v2066 = vmul.f32 %v2050, %v1629
    %v2067 = vmul.f32 %v2053, %v1629
    %v2068 = vmul.f32 %v2056, %v1629
    %v2069 = vmul.f32 %v2059, %v1629
    %v2070 = vmul.f32 %v2062, %v1629
    %v2071 = vadd.f32 %v2063, 1e-05
    %v2072 = vadd.f32 %v2064, 1e-05
    %v2073 = vadd.f32 %v2065, 1e-05
    %v2074 = vadd.f32 %v2066, 1e-05
    %v2075 = vadd.f32 %v2067, 1e-05
    %v2076 = vadd.f32 %v2068, 1e-05
    %v2077 = vadd.f32 %v2069, 1e-05
    %v2078 = vadd.f32 %v2070, 1e-05
    %v2079 = vrsqrt.pop %v2071
    %v2080 = vmul.f32 %v2079, %v2071
    %v2081 = vmul.f32 %v2080, %v2079
    %v2082 = vmul.f32 0.5, %v2081
    %v2083 = vsub.f32 1.5, %v2082
    %v2084 = vmul.f32 %v2079, %v2083
    %vm2085 = vweird.f32 %v2071
    %vm2086 = vweird.f32 %v2079
    %vm2087 = vmor %vm2085, %vm2086
    %v2088 = vsel %vm2087, %v2079, %v2084
    %v2089 = vrsqrt.pop %v2072
    %v2090 = vmul.f32 %v2089, %v2072
    %v2091 = vmul.f32 %v2090, %v2089
    %v2092 = vmul.f32 0.5, %v2091
    %v2093 = vsub.f32 1.5, %v2092
    %v2094 = vmul.f32 %v2089, %v2093
    %vm2095 = vweird.f32 %v2072
    %vm2096 = vweird.f32 %v2089
    %vm2097 = vmor %vm2095, %vm2096
    %v2098 = vsel %vm2097, %v2089, %v2094
    %v2099 = vrsqrt.pop %v2073
    %v2100 = vmul.f32 %v2099, %v2073
    %v2101 = vmul.f32 %v2100, %v2099
    %v2102 = vmul.f32 0.5, %v2101
    %v2103 = vsub.f32 1.5, %v2102
    %v2104 = vmul.f32 %v2099, %v2103
    %vm2105 = vweird.f32 %v2073
    %vm2106 = vweird.f32 %v2099
    %vm2107 = vmor %vm2105, %vm2106
    %v2108 = vsel %vm2107, %v2099, %v2104
    %v2109 = vrsqrt.pop %v2074
    %v2110 = vmul.f32 %v2109, %v2074
    %v2111 = vmul.f32 %v2110, %v2109
    %v2112 = vmul.f32 0.5, %v2111
    %v2113 = vsub.f32 1.5, %v2112
    %v2114 = vmul.f32 %v2109, %v2113
    %vm2115 = vweird.f32 %v2074
    %vm2116 = vweird.f32 %v2109
    %vm2117 = vmor %vm2115, %vm2116
    %v2118 = vsel %vm2117, %v2109, %v2114
    %v2119 = vrsqrt.pop %v2075
    %v2120 = vmul.f32 %v2119, %v2075
    %v2121 = vmul.f32 %v2120, %v2119
    %v2122 = vmul.f32 0.5, %v2121
    %v2123 = vsub.f32 1.5, %v2122
    %v2124 = vmul.f32 %v2119, %v2123
    %vm2125 = vweird.f32 %v2075
    %vm2126 = vweird.f32 %v2119
    %vm2127 = vmor %vm2125, %vm2126
    %v2128 = vsel %vm2127, %v2119, %v2124
    %v2129 = vrsqrt.pop %v2076
    %v2130 = vmul.f32 %v2129, %v2076
    %v2131 = vmul.f32 %v2130, %v2129
    %v2132 = vmul.f32 0.5, %v2131
    %v2133 = vsub.f32 1.5, %v2132
    %v2134 = vmul.f32 %v2129, %v2133
    %vm2135 = vweird.f32 %v2076
    %vm2136 = vweird.f32 %v2129
    %vm2137 = vmor %vm2135, %vm2136
    %v2138 = vsel %vm2137, %v2129, %v2134
    %v2139 = vrsqrt.pop %v2077
    %v2140 = vmul.f32 %v2139, %v2077
    %v2141 = vmul.f32 %v2140, %v2139
    %v2142 = vmul.f32 0.5, %v2141
    %v2143 = vsub.f32 1.5, %v2142
    %v2144 = vmul.f32 %v2139, %v2143
    %vm2145 = vweird.f32 %v2077
    %vm2146 = vweird.f32 %v2139
    %vm2147 = vmor %vm2145, %vm2146
    %v2148 = vsel %vm2147, %v2139, %v2144
    %v2149 = vrsqrt.pop %v2078
    %v2150 = vmul.f32 %v2149, %v2078
    %v2151 = vmul.f32 %v2150, %v2149
    %v2152 = vmul.f32 0.5, %v2151
    %v2153 = vsub.f32 1.5, %v2152
    %v2154 = vmul.f32 %v2149, %v2153
    %vm2155 = vweird.f32 %v2078
    %vm2156 = vweird.f32 %v2149
    %vm2157 = vmor %vm2155, %vm2156
    %v2158 = vsel %vm2157, %v2149, %v2154
    %v2159 = vmul.f32 %v2023, %v2088
    %v2160 = vmul.f32 %v2024, %v2098
    %v2161 = vmul.f32 %v2025, %v2108
    %v2162 = vmul.f32 %v2026, %v2118
    %v2163 = vmul.f32 %v2027, %v2128
    %v2164 = vmul.f32 %v2028, %v2138
    %v2165 = vmul.f32 %v2029, %v2148
    %v2166 = vmul.f32 %v2030, %v2158
    %v2168 = vperm.slane %v1988, 0
    %v2170 = vmul.f32 %v2159, %v2168
    %v2171 = vmul.f32 %v2160, %v2168
    %v2172 = vmul.f32 %v2161, %v2168
    %v2173 = vmul.f32 %v2162, %v2168
    %v2174 = vmul.f32 %v2163, %v2168
    %v2175 = vmul.f32 %v2164, %v2168
    %v2176 = vmul.f32 %v2165, %v2168
    %v2177 = vmul.f32 %v2166, %v2168
    %v2179 = vperm.slane %v1990, 0
    %v2181 = vadd.f32 %v2170, %v2179
    %v2182 = vadd.f32 %v2171, %v2179
    %v2183 = vadd.f32 %v2172, %v2179
    %v2184 = vadd.f32 %v2173, %v2179
    %v2185 = vadd.f32 %v2174, %v2179
    %v2186 = vadd.f32 %v2175, %v2179
    %v2187 = vadd.f32 %v2176, %v2179
    %v2188 = vadd.f32 %v2177, %v2179
    %v2189 = vld [vmem:[%s2] sm:$0xff]
    %v2190 = vrot.slane %v2189, 1
    %v2191 = vrot.slane %v2189, 2
    %v2192 = vrot.slane %v2189, 3
    %v2193 = vrot.slane %v2189, 4
    %v2194 = vrot.slane %v2189, 5
    %v2195 = vrot.slane %v2189, 6
    %v2196 = vrot.slane %v2189, 7
    %v2197 = vlaneseq
    %v2198 = vshrl.u32 %v2197, 7
    %v2199 = vperm.slane %v2189, 0
    %v2200 = vperm.slane %v2190, 0
    %v2201 = vperm.slane %v2191, 0
    %v2202 = vperm.slane %v2192, 0
    %v2203 = vperm.slane %v2193, 0
    %v2204 = vperm.slane %v2194, 0
    %v2205 = vperm.slane %v2195, 0
    %v2206 = vperm.slane %v2196, 0
    %2207 = vset.pattern.permute.xlu0 0
    %2208 = vperm.xlu0 %2207, %v2199
    %v2209 = vpop.permute.xlu0 %2208
    %2210 = vset.pattern.permute.xlu0 0
    %2211 = vperm.xlu0 %2210, %v2200
    %v2212 = vpop.permute.xlu0 %2211
    %2213 = vset.pattern.permute.xlu0 0
    %2214 = vperm.xlu0 %2213, %v2201
    %v2215 = vpop.permute.xlu0 %2214
    %2216 = vset.pattern.permute.xlu0 0
    %2217 = vperm.xlu0 %2216, %v2202
    %v2218 = vpop.permute.xlu0 %2217
    %2219 = vset.pattern.permute.xlu0 0
    %2220 = vperm.xlu0 %2219, %v2203
    %v2221 = vpop.permute.xlu0 %2220
    %2222 = vset.pattern.permute.xlu0 0
    %2223 = vperm.xlu0 %2222, %v2204
    %v2224 = vpop.permute.xlu0 %2223
    %2225 = vset.pattern.permute.xlu0 0
    %2226 = vperm.xlu0 %2225, %v2205
    %v2227 = vpop.permute.xlu0 %2226
    %2228 = vset.pattern.permute.xlu0 0
    %2229 = vperm.xlu0 %2228, %v2206
    %v2230 = vpop.permute.xlu0 %2229
    %vm2231 = vcmp.eq.s32.totalorder %v2198, %v2209
    %vm2232 = vcmp.eq.s32.totalorder %v2198, %v2212
    %vm2233 = vcmp.eq.s32.totalorder %v2198, %v2215
    %vm2234 = vcmp.eq.s32.totalorder %v2198, %v2218
    %vm2235 = vcmp.eq.s32.totalorder %v2198, %v2221
    %vm2236 = vcmp.eq.s32.totalorder %v2198, %v2224
    %vm2237 = vcmp.eq.s32.totalorder %v2198, %v2227
    %vm2238 = vcmp.eq.s32.totalorder %v2198, %v2230
    %v2239 = vsel %vm2231, %v2181, 0.0
    %v2240 = vsel %vm2232, %v2182, 0.0
    %v2241 = vsel %vm2233, %v2183, 0.0
    %v2242 = vsel %vm2234, %v2184, 0.0
    %v2243 = vsel %vm2235, %v2185, 0.0
    %v2244 = vsel %vm2236, %v2186, 0.0
    %v2245 = vsel %vm2237, %v2187, 0.0
    %v2246 = vsel %vm2238, %v2188, 0.0
    %v2247 = vsel %vm151, %v2239, 0.0
    %v2248 = vrot.slane %v2247, 4
    %v2249 = vadd.f32 %v2247, %v2248
    %v2250 = vrot.slane %v2249, 2
    %v2251 = vadd.f32 %v2249, %v2250
    %v2252 = vrot.slane %v2251, 1
    %v2253 = vadd.f32 %v2251, %v2252
    %v2254 = vsel %vm151, %v2240, 0.0
    %v2255 = vrot.slane %v2254, 4
    %v2256 = vadd.f32 %v2254, %v2255
    %v2257 = vrot.slane %v2256, 2
    %v2258 = vadd.f32 %v2256, %v2257
    %v2259 = vrot.slane %v2258, 1
    %v2260 = vadd.f32 %v2258, %v2259
    %v2261 = vsel %vm151, %v2241, 0.0
    %v2262 = vrot.slane %v2261, 4
    %v2263 = vadd.f32 %v2261, %v2262
    %v2264 = vrot.slane %v2263, 2
    %v2265 = vadd.f32 %v2263, %v2264
    %v2266 = vrot.slane %v2265, 1
    %v2267 = vadd.f32 %v2265, %v2266
    %v2268 = vsel %vm151, %v2242, 0.0
    %v2269 = vrot.slane %v2268, 4
    %v2270 = vadd.f32 %v2268, %v2269
    %v2271 = vrot.slane %v2270, 2
    %v2272 = vadd.f32 %v2270, %v2271
    %v2273 = vrot.slane %v2272, 1
    %v2274 = vadd.f32 %v2272, %v2273
    %v2275 = vsel %vm151, %v2243, 0.0
    %v2276 = vrot.slane %v2275, 4
    %v2277 = vadd.f32 %v2275, %v2276
    %v2278 = vrot.slane %v2277, 2
    %v2279 = vadd.f32 %v2277, %v2278
    %v2280 = vrot.slane %v2279, 1
    %v2281 = vadd.f32 %v2279, %v2280
    %v2282 = vsel %vm151, %v2244, 0.0
    %v2283 = vrot.slane %v2282, 4
    %v2284 = vadd.f32 %v2282, %v2283
    %v2285 = vrot.slane %v2284, 2
    %v2286 = vadd.f32 %v2284, %v2285
    %v2287 = vrot.slane %v2286, 1
    %v2288 = vadd.f32 %v2286, %v2287
    %v2289 = vsel %vm151, %v2245, 0.0
    %v2290 = vrot.slane %v2289, 4
    %v2291 = vadd.f32 %v2289, %v2290
    %v2292 = vrot.slane %v2291, 2
    %v2293 = vadd.f32 %v2291, %v2292
    %v2294 = vrot.slane %v2293, 1
    %v2295 = vadd.f32 %v2293, %v2294
    %v2296 = vsel %vm151, %v2246, 0.0
    %v2297 = vrot.slane %v2296, 4
    %v2298 = vadd.f32 %v2296, %v2297
    %v2299 = vrot.slane %v2298, 2
    %v2300 = vadd.f32 %v2298, %v2299
    %v2301 = vrot.slane %v2300, 1
    %v2302 = vadd.f32 %v2300, %v2301
    %v2303 = vsel %vm2231, %v193, 0.0
    %v2304 = vsel %vm2232, %v194, 0.0
    %v2305 = vsel %vm2233, %v195, 0.0
    %v2306 = vsel %vm2234, %v196, 0.0
    %v2307 = vsel %vm2235, %v197, 0.0
    %v2308 = vsel %vm2236, %v198, 0.0
    %v2309 = vsel %vm2237, %v199, 0.0
    %v2310 = vsel %vm2238, %v200, 0.0
    %v2311 = vsel %vm151, %v2303, 0.0
    %v2312 = vrot.slane %v2311, 4
    %v2313 = vadd.f32 %v2311, %v2312
    %v2314 = vrot.slane %v2313, 2
    %v2315 = vadd.f32 %v2313, %v2314
    %v2316 = vrot.slane %v2315, 1
    %v2317 = vadd.f32 %v2315, %v2316
    %v2318 = vsel %vm151, %v2304, 0.0
    %v2319 = vrot.slane %v2318, 4
    %v2320 = vadd.f32 %v2318, %v2319
    %v2321 = vrot.slane %v2320, 2
    %v2322 = vadd.f32 %v2320, %v2321
    %v2323 = vrot.slane %v2322, 1
    %v2324 = vadd.f32 %v2322, %v2323
    %v2325 = vsel %vm151, %v2305, 0.0
    %v2326 = vrot.slane %v2325, 4
    %v2327 = vadd.f32 %v2325, %v2326
    %v2328 = vrot.slane %v2327, 2
    %v2329 = vadd.f32 %v2327, %v2328
    %v2330 = vrot.slane %v2329, 1
    %v2331 = vadd.f32 %v2329, %v2330
    %v2332 = vsel %vm151, %v2306, 0.0
    %v2333 = vrot.slane %v2332, 4
    %v2334 = vadd.f32 %v2332, %v2333
    %v2335 = vrot.slane %v2334, 2
    %v2336 = vadd.f32 %v2334, %v2335
    %v2337 = vrot.slane %v2336, 1
    %v2338 = vadd.f32 %v2336, %v2337
    %v2339 = vsel %vm151, %v2307, 0.0
    %v2340 = vrot.slane %v2339, 4
    %v2341 = vadd.f32 %v2339, %v2340
    %v2342 = vrot.slane %v2341, 2
    %v2343 = vadd.f32 %v2341, %v2342
    %v2344 = vrot.slane %v2343, 1
    %v2345 = vadd.f32 %v2343, %v2344
    %v2346 = vsel %vm151, %v2308, 0.0
    %v2347 = vrot.slane %v2346, 4
    %v2348 = vadd.f32 %v2346, %v2347
    %v2349 = vrot.slane %v2348, 2
    %v2350 = vadd.f32 %v2348, %v2349
    %v2351 = vrot.slane %v2350, 1
    %v2352 = vadd.f32 %v2350, %v2351
    %v2353 = vsel %vm151, %v2309, 0.0
    %v2354 = vrot.slane %v2353, 4
    %v2355 = vadd.f32 %v2353, %v2354
    %v2356 = vrot.slane %v2355, 2
    %v2357 = vadd.f32 %v2355, %v2356
    %v2358 = vrot.slane %v2357, 1
    %v2359 = vadd.f32 %v2357, %v2358
    %v2360 = vsel %vm151, %v2310, 0.0
    %v2361 = vrot.slane %v2360, 4
    %v2362 = vadd.f32 %v2360, %v2361
    %v2363 = vrot.slane %v2362, 2
    %v2364 = vadd.f32 %v2362, %v2363
    %v2365 = vrot.slane %v2364, 1
    %v2366 = vadd.f32 %v2364, %v2365
    %vm2375 = vcmask 1041409
    %v2376 = vsel %vm2375, %v2324, %v2317
    %vm2377 = vcmask 1042434
    %v2378 = vsel %vm2377, %v2331, %v2376
    %vm2379 = vcmask 1043459
    %v2380 = vsel %vm2379, %v2338, %v2378
    %vm2381 = vcmask 1044484
    %v2382 = vsel %vm2381, %v2345, %v2380
    %vm2383 = vcmask 1045509
    %v2384 = vsel %vm2383, %v2352, %v2382
    %vm2385 = vcmask 1046534
    %v2386 = vsel %vm2385, %v2359, %v2384
    %vm2387 = vcmask 1047559
    %v2388 = vsel %vm2387, %v2366, %v2386
    %2390 = vxpose.xlu0.b32.start [1/16] %v2388, 128
    %2391 = vxpose.xlu0.b32.cont [2/16] 0.0, 128
    %2392 = vxpose.xlu0.b32.cont [3/16] 0.0, 128
    %2393 = vxpose.xlu0.b32.cont [4/16] 0.0, 128
    %2394 = vxpose.xlu0.b32.cont [5/16] 0.0, 128
    %2395 = vxpose.xlu0.b32.cont [6/16] 0.0, 128
    %2396 = vxpose.xlu0.b32.cont [7/16] 0.0, 128
    %2397 = vxpose.xlu0.b32.cont [8/16] 0.0, 128
    %2398 = vxpose.xlu0.b32.cont [9/16] 0.0, 128
    %2399 = vxpose.xlu0.b32.cont [10/16] 0.0, 128
    %2400 = vxpose.xlu0.b32.cont [11/16] 0.0, 128
    %2401 = vxpose.xlu0.b32.cont [12/16] 0.0, 128
    %2402 = vxpose.xlu0.b32.cont [13/16] 0.0, 128
    %2403 = vxpose.xlu0.b32.cont [14/16] 0.0, 128
    %2404 = vxpose.xlu0.b32.cont [15/16] 0.0, 128
    %2405 = vxpose.xlu0.b32.end [16/16] 0.0, 128
    %v2406 = vpop.trf.xlu0
    %v2407 = vpop.trf.xlu0
    %v2408 = vpop.trf.xlu0
    %v2409 = vpop.trf.xlu0
    %v2410 = vpop.trf.xlu0
    %v2411 = vpop.trf.xlu0
    %v2412 = vpop.trf.xlu0
    %v2413 = vpop.trf.xlu0
    %v2414 = vpop.trf.xlu0
    %v2415 = vpop.trf.xlu0
    %v2416 = vpop.trf.xlu0
    %v2417 = vpop.trf.xlu0
    %v2418 = vpop.trf.xlu0
    %v2419 = vpop.trf.xlu0
    %v2420 = vpop.trf.xlu0
    %v2421 = vpop.trf.xlu0
    %v2422 = vperm.slane %v2406, 0
    %v2423 = vlaneseq
    %v2424 = vshrl.u32 %v2423, 7
    %2426 = vset.pattern.permute.xlu0 %v2424
    %2427 = vperm.xlu0 %2426, %v2422
    %v2428 = vpop.permute.xlu0 %2427
    %v2429 = vperm.slane %v2406, 1
    %v2430 = vlaneseq
    %v2431 = vshrl.u32 %v2430, 7
    %2433 = vset.pattern.permute.xlu0 %v2431
    %2434 = vperm.xlu0 %2433, %v2429
    %v2435 = vpop.permute.xlu0 %2434
    %v2436 = vperm.slane %v2406, 2
    %v2437 = vlaneseq
    %v2438 = vshrl.u32 %v2437, 7
    %2440 = vset.pattern.permute.xlu0 %v2438
    %2441 = vperm.xlu0 %2440, %v2436
    %v2442 = vpop.permute.xlu0 %2441
    %v2443 = vperm.slane %v2406, 3
    %v2444 = vlaneseq
    %v2445 = vshrl.u32 %v2444, 7
    %2447 = vset.pattern.permute.xlu0 %v2445
    %2448 = vperm.xlu0 %2447, %v2443
    %v2449 = vpop.permute.xlu0 %2448
    %v2450 = vperm.slane %v2406, 4
    %v2451 = vlaneseq
    %v2452 = vshrl.u32 %v2451, 7
    %2454 = vset.pattern.permute.xlu0 %v2452
    %2455 = vperm.xlu0 %2454, %v2450
    %v2456 = vpop.permute.xlu0 %2455
    %v2457 = vperm.slane %v2406, 5
    %v2458 = vlaneseq
    %v2459 = vshrl.u32 %v2458, 7
    %2461 = vset.pattern.permute.xlu0 %v2459
    %2462 = vperm.xlu0 %2461, %v2457
    %v2463 = vpop.permute.xlu0 %2462
    %v2464 = vperm.slane %v2406, 6
    %v2465 = vlaneseq
    %v2466 = vshrl.u32 %v2465, 7
    %2468 = vset.pattern.permute.xlu0 %v2466
    %2469 = vperm.xlu0 %2468, %v2464
    %v2470 = vpop.permute.xlu0 %2469
    %v2471 = vperm.slane %v2406, 7
    %v2472 = vlaneseq
    %v2473 = vshrl.u32 %v2472, 7
    %2475 = vset.pattern.permute.xlu0 %v2473
    %2476 = vperm.xlu0 %2475, %v2471
    %v2477 = vpop.permute.xlu0 %2476
    %v2478 = vperm.slane %v2407, 0
    %v2479 = vlaneseq
    %v2480 = vshrl.u32 %v2479, 7
    %2482 = vset.pattern.permute.xlu0 %v2480
    %2483 = vperm.xlu0 %2482, %v2478
    %v2484 = vpop.permute.xlu0 %2483
    %v2485 = vperm.slane %v2407, 1
    %v2486 = vlaneseq
    %v2487 = vshrl.u32 %v2486, 7
    %2489 = vset.pattern.permute.xlu0 %v2487
    %2490 = vperm.xlu0 %2489, %v2485
    %v2491 = vpop.permute.xlu0 %2490
    %v2492 = vperm.slane %v2407, 2
    %v2493 = vlaneseq
    %v2494 = vshrl.u32 %v2493, 7
    %2496 = vset.pattern.permute.xlu0 %v2494
    %2497 = vperm.xlu0 %2496, %v2492
    %v2498 = vpop.permute.xlu0 %2497
    %v2499 = vperm.slane %v2407, 3
    %v2500 = vlaneseq
    %v2501 = vshrl.u32 %v2500, 7
    %2503 = vset.pattern.permute.xlu0 %v2501
    %2504 = vperm.xlu0 %2503, %v2499
    %v2505 = vpop.permute.xlu0 %2504
    %v2506 = vperm.slane %v2407, 4
    %v2507 = vlaneseq
    %v2508 = vshrl.u32 %v2507, 7
    %2510 = vset.pattern.permute.xlu0 %v2508
    %2511 = vperm.xlu0 %2510, %v2506
    %v2512 = vpop.permute.xlu0 %2511
    %v2513 = vperm.slane %v2407, 5
    %v2514 = vlaneseq
    %v2515 = vshrl.u32 %v2514, 7
    %2517 = vset.pattern.permute.xlu0 %v2515
    %2518 = vperm.xlu0 %2517, %v2513
    %v2519 = vpop.permute.xlu0 %2518
    %v2520 = vperm.slane %v2407, 6
    %v2521 = vlaneseq
    %v2522 = vshrl.u32 %v2521, 7
    %2524 = vset.pattern.permute.xlu0 %v2522
    %2525 = vperm.xlu0 %2524, %v2520
    %v2526 = vpop.permute.xlu0 %2525
    %v2527 = vperm.slane %v2407, 7
    %v2528 = vlaneseq
    %v2529 = vshrl.u32 %v2528, 7
    %2531 = vset.pattern.permute.xlu0 %v2529
    %2532 = vperm.xlu0 %2531, %v2527
    %v2533 = vpop.permute.xlu0 %2532
    %v2534 = vperm.slane %v2408, 0
    %v2535 = vlaneseq
    %v2536 = vshrl.u32 %v2535, 7
    %2538 = vset.pattern.permute.xlu0 %v2536
    %2539 = vperm.xlu0 %2538, %v2534
    %v2540 = vpop.permute.xlu0 %2539
    %v2541 = vperm.slane %v2408, 1
    %v2542 = vlaneseq
    %v2543 = vshrl.u32 %v2542, 7
    %2545 = vset.pattern.permute.xlu0 %v2543
    %2546 = vperm.xlu0 %2545, %v2541
    %v2547 = vpop.permute.xlu0 %2546
    %v2548 = vperm.slane %v2408, 2
    %v2549 = vlaneseq
    %v2550 = vshrl.u32 %v2549, 7
    %2552 = vset.pattern.permute.xlu0 %v2550
    %2553 = vperm.xlu0 %2552, %v2548
    %v2554 = vpop.permute.xlu0 %2553
    %v2555 = vperm.slane %v2408, 3
    %v2556 = vlaneseq
    %v2557 = vshrl.u32 %v2556, 7
    %2559 = vset.pattern.permute.xlu0 %v2557
    %2560 = vperm.xlu0 %2559, %v2555
    %v2561 = vpop.permute.xlu0 %2560
    %v2562 = vperm.slane %v2408, 4
    %v2563 = vlaneseq
    %v2564 = vshrl.u32 %v2563, 7
    %2566 = vset.pattern.permute.xlu0 %v2564
    %2567 = vperm.xlu0 %2566, %v2562
    %v2568 = vpop.permute.xlu0 %2567
    %v2569 = vperm.slane %v2408, 5
    %v2570 = vlaneseq
    %v2571 = vshrl.u32 %v2570, 7
    %2573 = vset.pattern.permute.xlu0 %v2571
    %2574 = vperm.xlu0 %2573, %v2569
    %v2575 = vpop.permute.xlu0 %2574
    %v2576 = vperm.slane %v2408, 6
    %v2577 = vlaneseq
    %v2578 = vshrl.u32 %v2577, 7
    %2580 = vset.pattern.permute.xlu0 %v2578
    %2581 = vperm.xlu0 %2580, %v2576
    %v2582 = vpop.permute.xlu0 %2581
    %v2583 = vperm.slane %v2408, 7
    %v2584 = vlaneseq
    %v2585 = vshrl.u32 %v2584, 7
    %2587 = vset.pattern.permute.xlu0 %v2585
    %2588 = vperm.xlu0 %2587, %v2583
    %v2589 = vpop.permute.xlu0 %2588
    %v2590 = vperm.slane %v2409, 0
    %v2591 = vlaneseq
    %v2592 = vshrl.u32 %v2591, 7
    %2594 = vset.pattern.permute.xlu0 %v2592
    %2595 = vperm.xlu0 %2594, %v2590
    %v2596 = vpop.permute.xlu0 %2595
    %v2597 = vperm.slane %v2409, 1
    %v2598 = vlaneseq
    %v2599 = vshrl.u32 %v2598, 7
    %2601 = vset.pattern.permute.xlu0 %v2599
    %2602 = vperm.xlu0 %2601, %v2597
    %v2603 = vpop.permute.xlu0 %2602
    %v2604 = vperm.slane %v2409, 2
    %v2605 = vlaneseq
    %v2606 = vshrl.u32 %v2605, 7
    %2608 = vset.pattern.permute.xlu0 %v2606
    %2609 = vperm.xlu0 %2608, %v2604
    %v2610 = vpop.permute.xlu0 %2609
    %v2611 = vperm.slane %v2409, 3
    %v2612 = vlaneseq
    %v2613 = vshrl.u32 %v2612, 7
    %2615 = vset.pattern.permute.xlu0 %v2613
    %2616 = vperm.xlu0 %2615, %v2611
    %v2617 = vpop.permute.xlu0 %2616
    %v2618 = vperm.slane %v2409, 4
    %v2619 = vlaneseq
    %v2620 = vshrl.u32 %v2619, 7
    %2622 = vset.pattern.permute.xlu0 %v2620
    %2623 = vperm.xlu0 %2622, %v2618
    %v2624 = vpop.permute.xlu0 %2623
    %v2625 = vperm.slane %v2409, 5
    %v2626 = vlaneseq
    %v2627 = vshrl.u32 %v2626, 7
    %2629 = vset.pattern.permute.xlu0 %v2627
    %2630 = vperm.xlu0 %2629, %v2625
    %v2631 = vpop.permute.xlu0 %2630
    %v2632 = vperm.slane %v2409, 6
    %v2633 = vlaneseq
    %v2634 = vshrl.u32 %v2633, 7
    %2636 = vset.pattern.permute.xlu0 %v2634
    %2637 = vperm.xlu0 %2636, %v2632
    %v2638 = vpop.permute.xlu0 %2637
    %v2639 = vperm.slane %v2409, 7
    %v2640 = vlaneseq
    %v2641 = vshrl.u32 %v2640, 7
    %2643 = vset.pattern.permute.xlu0 %v2641
    %2644 = vperm.xlu0 %2643, %v2639
    %v2645 = vpop.permute.xlu0 %2644
    %v2654 = vsel %vm2375, %v2260, %v2253
    %v2655 = vsel %vm2377, %v2267, %v2654
    %v2656 = vsel %vm2379, %v2274, %v2655
    %v2657 = vsel %vm2381, %v2281, %v2656
    %v2658 = vsel %vm2383, %v2288, %v2657
    %v2659 = vsel %vm2385, %v2295, %v2658
    %v2660 = vsel %vm2387, %v2302, %v2659
    %v2662 = vmul.f32 %v2428, %v2660
    %v2663 = vmul.f32 %v2435, %v2660
    %v2664 = vmul.f32 %v2442, %v2660
    %v2665 = vmul.f32 %v2449, %v2660
    %v2666 = vmul.f32 %v2456, %v2660
    %v2667 = vmul.f32 %v2463, %v2660
    %v2668 = vmul.f32 %v2470, %v2660
    %v2669 = vmul.f32 %v2477, %v2660
    %v2670 = vmul.f32 %v2484, %v2660
    %v2671 = vmul.f32 %v2491, %v2660
    %v2672 = vmul.f32 %v2498, %v2660
    %v2673 = vmul.f32 %v2505, %v2660
    %v2674 = vmul.f32 %v2512, %v2660
    %v2675 = vmul.f32 %v2519, %v2660
    %v2676 = vmul.f32 %v2526, %v2660
    %v2677 = vmul.f32 %v2533, %v2660
    %v2678 = vmul.f32 %v2540, %v2660
    %v2679 = vmul.f32 %v2547, %v2660
    %v2680 = vmul.f32 %v2554, %v2660
    %v2681 = vmul.f32 %v2561, %v2660
    %v2682 = vmul.f32 %v2568, %v2660
    %v2683 = vmul.f32 %v2575, %v2660
    %v2684 = vmul.f32 %v2582, %v2660
    %v2685 = vmul.f32 %v2589, %v2660
    %v2686 = vmul.f32 %v2596, %v2660
    %v2687 = vmul.f32 %v2603, %v2660
    %v2688 = vmul.f32 %v2610, %v2660
    %v2689 = vmul.f32 %v2617, %v2660
    %v2690 = vmul.f32 %v2624, %v2660
    %v2691 = vmul.f32 %v2631, %v2660
    %v2692 = vmul.f32 %v2638, %v2660
    %v2693 = vmul.f32 %v2645, %v2660
    %v2694 = vld [vmem:[#allocation7] sm:$0xf]
    %v2695 = vld [vmem:[#allocation7 + $0x4] sm:$0xf]
    %v2696 = vld [vmem:[#allocation7 + $0x8] sm:$0xf]
    %v2697 = vld [vmem:[#allocation7 + $0xc] sm:$0xf]
    %v2698 = vld [vmem:[#allocation7 + $0x10] sm:$0xf]
    %v2699 = vld [vmem:[#allocation7 + $0x14] sm:$0xf]
    %v2700 = vld [vmem:[#allocation7 + $0x18] sm:$0xf]
    %v2701 = vld [vmem:[#allocation7 + $0x1c] sm:$0xf]
    %v2702 = vld [vmem:[#allocation7 + $0x20] sm:$0xf]
    %v2703 = vld [vmem:[#allocation7 + $0x24] sm:$0xf]
    %v2704 = vld [vmem:[#allocation7 + $0x28] sm:$0xf]
    %v2705 = vld [vmem:[#allocation7 + $0x2c] sm:$0xf]
    %v2706 = vld [vmem:[#allocation7 + $0x30] sm:$0xf]
    %v2707 = vld [vmem:[#allocation7 + $0x34] sm:$0xf]
    %v2708 = vld [vmem:[#allocation7 + $0x38] sm:$0xf]
    %v2709 = vld [vmem:[#allocation7 + $0x3c] sm:$0xf]
    %v2710 = vld [vmem:[#allocation7 + $0x40] sm:$0xf]
    %v2711 = vld [vmem:[#allocation7 + $0x44] sm:$0xf]
    %v2712 = vld [vmem:[#allocation7 + $0x48] sm:$0xf]
    %v2713 = vld [vmem:[#allocation7 + $0x4c] sm:$0xf]
    %v2714 = vld [vmem:[#allocation7 + $0x50] sm:$0xf]
    %v2715 = vld [vmem:[#allocation7 + $0x54] sm:$0xf]
    %v2716 = vld [vmem:[#allocation7 + $0x58] sm:$0xf]
    %v2717 = vld [vmem:[#allocation7 + $0x5c] sm:$0xf]
    %v2718 = vld [vmem:[#allocation7 + $0x60] sm:$0xf]
    %v2719 = vld [vmem:[#allocation7 + $0x64] sm:$0xf]
    %v2720 = vld [vmem:[#allocation7 + $0x68] sm:$0xf]
    %v2721 = vld [vmem:[#allocation7 + $0x6c] sm:$0xf]
    %v2722 = vld [vmem:[#allocation7 + $0x70] sm:$0xf]
    %v2723 = vld [vmem:[#allocation7 + $0x74] sm:$0xf]
    %v2724 = vld [vmem:[#allocation7 + $0x78] sm:$0xf]
    %v2725 = vld [vmem:[#allocation7 + $0x7c] sm:$0xf]
    %v2726 = vld [vmem:[#allocation7 + $0x80] sm:$0xf]
    %v2727 = vld [vmem:[#allocation7 + $0x84] sm:$0xf]
    %v2728 = vld [vmem:[#allocation7 + $0x88] sm:$0xf]
    %v2729 = vld [vmem:[#allocation7 + $0x8c] sm:$0xf]
    %v2730 = vld [vmem:[#allocation7 + $0x90] sm:$0xf]
    %v2731 = vld [vmem:[#allocation7 + $0x94] sm:$0xf]
    %v2732 = vld [vmem:[#allocation7 + $0x98] sm:$0xf]
    %v2733 = vld [vmem:[#allocation7 + $0x9c] sm:$0xf]
    %v2734 = vld [vmem:[#allocation7 + $0xa0] sm:$0xf]
    %v2735 = vld [vmem:[#allocation7 + $0xa4] sm:$0xf]
    %v2736 = vld [vmem:[#allocation7 + $0xa8] sm:$0xf]
    %v2737 = vld [vmem:[#allocation7 + $0xac] sm:$0xf]
    %v2738 = vld [vmem:[#allocation7 + $0xb0] sm:$0xf]
    %v2739 = vld [vmem:[#allocation7 + $0xb4] sm:$0xf]
    %v2740 = vld [vmem:[#allocation7 + $0xb8] sm:$0xf]
    %v2741 = vld [vmem:[#allocation7 + $0xbc] sm:$0xf]
    %v2742 = vld [vmem:[#allocation7 + $0xc0] sm:$0xf]
    %v2743 = vld [vmem:[#allocation7 + $0xc4] sm:$0xf]
    %v2744 = vld [vmem:[#allocation7 + $0xc8] sm:$0xf]
    %v2745 = vld [vmem:[#allocation7 + $0xcc] sm:$0xf]
    %v2746 = vld [vmem:[#allocation7 + $0xd0] sm:$0xf]
    %v2747 = vld [vmem:[#allocation7 + $0xd4] sm:$0xf]
    %v2748 = vld [vmem:[#allocation7 + $0xd8] sm:$0xf]
    %v2749 = vld [vmem:[#allocation7 + $0xdc] sm:$0xf]
    %v2750 = vld [vmem:[#allocation7 + $0xe0] sm:$0xf]
    %v2751 = vld [vmem:[#allocation7 + $0xe4] sm:$0xf]
    %v2752 = vld [vmem:[#allocation7 + $0xe8] sm:$0xf]
    %v2753 = vld [vmem:[#allocation7 + $0xec] sm:$0xf]
    %v2754 = vld [vmem:[#allocation7 + $0xf0] sm:$0xf]
    %v2755 = vld [vmem:[#allocation7 + $0xf4] sm:$0xf]
    %v2756 = vld [vmem:[#allocation7 + $0xf8] sm:$0xf]
    %v2757 = vld [vmem:[#allocation7 + $0xfc] sm:$0xf]
    %v2758 = vld [vmem:[#allocation7 + $0x100] sm:$0xf]
    %v2759 = vld [vmem:[#allocation7 + $0x104] sm:$0xf]
    %v2760 = vld [vmem:[#allocation7 + $0x108] sm:$0xf]
    %v2761 = vld [vmem:[#allocation7 + $0x10c] sm:$0xf]
    %v2762 = vld [vmem:[#allocation7 + $0x110] sm:$0xf]
    %v2763 = vld [vmem:[#allocation7 + $0x114] sm:$0xf]
    %v2764 = vld [vmem:[#allocation7 + $0x118] sm:$0xf]
    %v2765 = vld [vmem:[#allocation7 + $0x11c] sm:$0xf]
    %v2766 = vld [vmem:[#allocation7 + $0x120] sm:$0xf]
    %v2767 = vld [vmem:[#allocation7 + $0x124] sm:$0xf]
    %v2768 = vld [vmem:[#allocation7 + $0x128] sm:$0xf]
    %v2769 = vld [vmem:[#allocation7 + $0x12c] sm:$0xf]
    %v2770 = vld [vmem:[#allocation7 + $0x130] sm:$0xf]
    %v2771 = vld [vmem:[#allocation7 + $0x134] sm:$0xf]
    %v2772 = vld [vmem:[#allocation7 + $0x138] sm:$0xf]
    %v2773 = vld [vmem:[#allocation7 + $0x13c] sm:$0xf]
    %v2774 = vld [vmem:[#allocation7 + $0x140] sm:$0xf]
    %v2775 = vld [vmem:[#allocation7 + $0x144] sm:$0xf]
    %v2776 = vld [vmem:[#allocation7 + $0x148] sm:$0xf]
    %v2777 = vld [vmem:[#allocation7 + $0x14c] sm:$0xf]
    %v2778 = vld [vmem:[#allocation7 + $0x150] sm:$0xf]
    %v2779 = vld [vmem:[#allocation7 + $0x154] sm:$0xf]
    %v2780 = vld [vmem:[#allocation7 + $0x158] sm:$0xf]
    %v2781 = vld [vmem:[#allocation7 + $0x15c] sm:$0xf]
    %v2782 = vld [vmem:[#allocation7 + $0x160] sm:$0xf]
    %v2783 = vld [vmem:[#allocation7 + $0x164] sm:$0xf]
    %v2784 = vld [vmem:[#allocation7 + $0x168] sm:$0xf]
    %v2785 = vld [vmem:[#allocation7 + $0x16c] sm:$0xf]
    %v2786 = vld [vmem:[#allocation7 + $0x170] sm:$0xf]
    %v2787 = vld [vmem:[#allocation7 + $0x174] sm:$0xf]
    %v2788 = vld [vmem:[#allocation7 + $0x178] sm:$0xf]
    %v2789 = vld [vmem:[#allocation7 + $0x17c] sm:$0xf]
    %v2790 = vld [vmem:[#allocation7 + $0x180] sm:$0xf]
    %v2791 = vld [vmem:[#allocation7 + $0x184] sm:$0xf]
    %v2792 = vld [vmem:[#allocation7 + $0x188] sm:$0xf]
    %v2793 = vld [vmem:[#allocation7 + $0x18c] sm:$0xf]
    %v2794 = vld [vmem:[#allocation7 + $0x190] sm:$0xf]
    %v2795 = vld [vmem:[#allocation7 + $0x194] sm:$0xf]
    %v2796 = vld [vmem:[#allocation7 + $0x198] sm:$0xf]
    %v2797 = vld [vmem:[#allocation7 + $0x19c] sm:$0xf]
    %v2798 = vld [vmem:[#allocation7 + $0x1a0] sm:$0xf]
    %v2799 = vld [vmem:[#allocation7 + $0x1a4] sm:$0xf]
    %v2800 = vld [vmem:[#allocation7 + $0x1a8] sm:$0xf]
    %v2801 = vld [vmem:[#allocation7 + $0x1ac] sm:$0xf]
    %v2802 = vld [vmem:[#allocation7 + $0x1b0] sm:$0xf]
    %v2803 = vld [vmem:[#allocation7 + $0x1b4] sm:$0xf]
    %v2804 = vld [vmem:[#allocation7 + $0x1b8] sm:$0xf]
    %v2805 = vld [vmem:[#allocation7 + $0x1bc] sm:$0xf]
    %v2806 = vld [vmem:[#allocation7 + $0x1c0] sm:$0xf]
    %v2807 = vld [vmem:[#allocation7 + $0x1c4] sm:$0xf]
    %v2808 = vld [vmem:[#allocation7 + $0x1c8] sm:$0xf]
    %v2809 = vld [vmem:[#allocation7 + $0x1cc] sm:$0xf]
    %v2810 = vld [vmem:[#allocation7 + $0x1d0] sm:$0xf]
    %v2811 = vld [vmem:[#allocation7 + $0x1d4] sm:$0xf]
    %v2812 = vld [vmem:[#allocation7 + $0x1d8] sm:$0xf]
    %v2813 = vld [vmem:[#allocation7 + $0x1dc] sm:$0xf]
    %v2814 = vld [vmem:[#allocation7 + $0x1e0] sm:$0xf]
    %v2815 = vld [vmem:[#allocation7 + $0x1e4] sm:$0xf]
    %v2816 = vld [vmem:[#allocation7 + $0x1e8] sm:$0xf]
    %v2817 = vld [vmem:[#allocation7 + $0x1ec] sm:$0xf]
    %v2818 = vld [vmem:[#allocation7 + $0x1f0] sm:$0xf]
    %v2819 = vld [vmem:[#allocation7 + $0x1f4] sm:$0xf]
    %v2820 = vld [vmem:[#allocation7 + $0x1f8] sm:$0xf]
    %v2821 = vld [vmem:[#allocation7 + $0x1fc] sm:$0xf]
    %v2822 = vpack.c.bf16 %v2662, %v2662
    %v2823 = vpack.c.bf16 %v2663, %v2663
    %v2824 = vpack.c.bf16 %v2664, %v2664
    %v2825 = vpack.c.bf16 %v2665, %v2665
    %v2826 = vpack.c.bf16 %v2666, %v2666
    %v2827 = vpack.c.bf16 %v2667, %v2667
    %v2828 = vpack.c.bf16 %v2668, %v2668
    %v2829 = vpack.c.bf16 %v2669, %v2669
    %v2830 = vpack.c.bf16 %v2670, %v2670
    %v2831 = vpack.c.bf16 %v2671, %v2671
    %v2832 = vpack.c.bf16 %v2672, %v2672
    %v2833 = vpack.c.bf16 %v2673, %v2673
    %v2834 = vpack.c.bf16 %v2674, %v2674
    %v2835 = vpack.c.bf16 %v2675, %v2675
    %v2836 = vpack.c.bf16 %v2676, %v2676
    %v2837 = vpack.c.bf16 %v2677, %v2677
    %v2838 = vpack.c.bf16 %v2678, %v2678
    %v2839 = vpack.c.bf16 %v2679, %v2679
    %v2840 = vpack.c.bf16 %v2680, %v2680
    %v2841 = vpack.c.bf16 %v2681, %v2681
    %v2842 = vpack.c.bf16 %v2682, %v2682
    %v2843 = vpack.c.bf16 %v2683, %v2683
    %v2844 = vpack.c.bf16 %v2684, %v2684
    %v2845 = vpack.c.bf16 %v2685, %v2685
    %v2846 = vpack.c.bf16 %v2686, %v2686
    %v2847 = vpack.c.bf16 %v2687, %v2687
    %v2848 = vpack.c.bf16 %v2688, %v2688
    %v2849 = vpack.c.bf16 %v2689, %v2689
    %v2850 = vpack.c.bf16 %v2690, %v2690
    %v2851 = vpack.c.bf16 %v2691, %v2691
    %v2852 = vpack.c.bf16 %v2692, %v2692
    %v2853 = vpack.c.bf16 %v2693, %v2693
    %v2858 = vunpack.c.l.b16 %v2694
    %v2859 = vunpack.c.l.b16 %v2695
    %v2860 = vunpack.c.l.b16 %v2696
    %v2861 = vunpack.c.l.b16 %v2697
    %v2862 = vpack.c.b16 %v2859, %v2858
    %v2863 = vpack.c.b16 %v2861, %v2860
    %v2867 = vsel %vm151, %v2822, 0
    %2869 = vmatpush.bf16.msra.mxu0 0
    %2870 = vmatpush.bf16.msra.mxu0 0
    %2871 = vmatpush.bf16.msra.mxu0 0
    %2872 = vmatpush.bf16.msra.mxu0 0
    %2873 = vmatpush.bf16.msra.mxu0 0
    %2874 = vmatpush.bf16.msra.mxu0 0
    %2875 = vmatpush.bf16.msra.mxu0 %v2863
    %2876 = vmatpush.bf16.msra.mxu0 %v2862
    %2877 = vmatmul.bf16.gmra.mxu0 %v2867
    %v2878 = vpop.f32.mrf.mxu0
    %v2879 = vadd.f32 0.0, %v2878
    %v2880 = vpop.f32.mrf.mxu0
    %2881 = vdwg.mxu0
    %v2886 = vunpack.c.l.b16 %v2698
    %v2887 = vunpack.c.l.b16 %v2699
    %v2888 = vunpack.c.l.b16 %v2700
    %v2889 = vunpack.c.l.b16 %v2701
    %v2890 = vpack.c.b16 %v2887, %v2886
    %v2891 = vpack.c.b16 %v2889, %v2888
    %v2895 = vsel %vm151, %v2823, 0
    %2897 = vmatpush.bf16.msra.mxu0 0
    %2898 = vmatpush.bf16.msra.mxu0 0
    %2899 = vmatpush.bf16.msra.mxu0 0
    %2900 = vmatpush.bf16.msra.mxu0 0
    %2901 = vmatpush.bf16.msra.mxu0 0
    %2902 = vmatpush.bf16.msra.mxu0 0
    %2903 = vmatpush.bf16.msra.mxu0 %v2891
    %2904 = vmatpush.bf16.msra.mxu0 %v2890
    %2905 = vmatmul.bf16.gmra.mxu0 %v2895
    %v2906 = vpop.f32.mrf.mxu0
    %v2907 = vadd.f32 0.0, %v2906
    %v2908 = vpop.f32.mrf.mxu0
    %2909 = vdwg.mxu0
    %v2914 = vunpack.c.l.b16 %v2702
    %v2915 = vunpack.c.l.b16 %v2703
    %v2916 = vunpack.c.l.b16 %v2704
    %v2917 = vunpack.c.l.b16 %v2705
    %v2918 = vpack.c.b16 %v2915, %v2914
    %v2919 = vpack.c.b16 %v2917, %v2916
    %v2923 = vsel %vm151, %v2824, 0
    %2925 = vmatpush.bf16.msra.mxu0 0
    %2926 = vmatpush.bf16.msra.mxu0 0
    %2927 = vmatpush.bf16.msra.mxu0 0
    %2928 = vmatpush.bf16.msra.mxu0 0
    %2929 = vmatpush.bf16.msra.mxu0 0
    %2930 = vmatpush.bf16.msra.mxu0 0
    %2931 = vmatpush.bf16.msra.mxu0 %v2919
    %2932 = vmatpush.bf16.msra.mxu0 %v2918
    %2933 = vmatmul.bf16.gmra.mxu0 %v2923
    %v2934 = vpop.f32.mrf.mxu0
    %v2935 = vadd.f32 0.0, %v2934
    %v2936 = vpop.f32.mrf.mxu0
    %2937 = vdwg.mxu0
    %v2942 = vunpack.c.l.b16 %v2706
    %v2943 = vunpack.c.l.b16 %v2707
    %v2944 = vunpack.c.l.b16 %v2708
    %v2945 = vunpack.c.l.b16 %v2709
    %v2946 = vpack.c.b16 %v2943, %v2942
    %v2947 = vpack.c.b16 %v2945, %v2944
    %v2951 = vsel %vm151, %v2825, 0
    %2953 = vmatpush.bf16.msra.mxu0 0
    %2954 = vmatpush.bf16.msra.mxu0 0
    %2955 = vmatpush.bf16.msra.mxu0 0
    %2956 = vmatpush.bf16.msra.mxu0 0
    %2957 = vmatpush.bf16.msra.mxu0 0
    %2958 = vmatpush.bf16.msra.mxu0 0
    %2959 = vmatpush.bf16.msra.mxu0 %v2947
    %2960 = vmatpush.bf16.msra.mxu0 %v2946
    %2961 = vmatmul.bf16.gmra.mxu0 %v2951
    %v2962 = vpop.f32.mrf.mxu0
    %v2963 = vadd.f32 0.0, %v2962
    %v2964 = vpop.f32.mrf.mxu0
    %2965 = vdwg.mxu0
    %v2970 = vunpack.c.l.b16 %v2710
    %v2971 = vunpack.c.l.b16 %v2711
    %v2972 = vunpack.c.l.b16 %v2712
    %v2973 = vunpack.c.l.b16 %v2713
    %v2974 = vpack.c.b16 %v2971, %v2970
    %v2975 = vpack.c.b16 %v2973, %v2972
    %v2979 = vsel %vm151, %v2826, 0
    %2981 = vmatpush.bf16.msra.mxu0 0
    %2982 = vmatpush.bf16.msra.mxu0 0
    %2983 = vmatpush.bf16.msra.mxu0 0
    %2984 = vmatpush.bf16.msra.mxu0 0
    %2985 = vmatpush.bf16.msra.mxu0 0
    %2986 = vmatpush.bf16.msra.mxu0 0
    %2987 = vmatpush.bf16.msra.mxu0 %v2975
    %2988 = vmatpush.bf16.msra.mxu0 %v2974
    %2989 = vmatmul.bf16.gmra.mxu0 %v2979
    %v2990 = vpop.f32.mrf.mxu0
    %v2991 = vadd.f32 0.0, %v2990
    %v2992 = vpop.f32.mrf.mxu0
    %2993 = vdwg.mxu0
    %v2998 = vunpack.c.l.b16 %v2714
    %v2999 = vunpack.c.l.b16 %v2715
    %v3000 = vunpack.c.l.b16 %v2716
    %v3001 = vunpack.c.l.b16 %v2717
    %v3002 = vpack.c.b16 %v2999, %v2998
    %v3003 = vpack.c.b16 %v3001, %v3000
    %v3007 = vsel %vm151, %v2827, 0
    %3009 = vmatpush.bf16.msra.mxu0 0
    %3010 = vmatpush.bf16.msra.mxu0 0
    %3011 = vmatpush.bf16.msra.mxu0 0
    %3012 = vmatpush.bf16.msra.mxu0 0
    %3013 = vmatpush.bf16.msra.mxu0 0
    %3014 = vmatpush.bf16.msra.mxu0 0
    %3015 = vmatpush.bf16.msra.mxu0 %v3003
    %3016 = vmatpush.bf16.msra.mxu0 %v3002
    %3017 = vmatmul.bf16.gmra.mxu0 %v3007
    %v3018 = vpop.f32.mrf.mxu0
    %v3019 = vadd.f32 0.0, %v3018
    %v3020 = vpop.f32.mrf.mxu0
    %3021 = vdwg.mxu0
    %v3026 = vunpack.c.l.b16 %v2718
    %v3027 = vunpack.c.l.b16 %v2719
    %v3028 = vunpack.c.l.b16 %v2720
    %v3029 = vunpack.c.l.b16 %v2721
    %v3030 = vpack.c.b16 %v3027, %v3026
    %v3031 = vpack.c.b16 %v3029, %v3028
    %v3035 = vsel %vm151, %v2828, 0
    %3037 = vmatpush.bf16.msra.mxu0 0
    %3038 = vmatpush.bf16.msra.mxu0 0
    %3039 = vmatpush.bf16.msra.mxu0 0
    %3040 = vmatpush.bf16.msra.mxu0 0
    %3041 = vmatpush.bf16.msra.mxu0 0
    %3042 = vmatpush.bf16.msra.mxu0 0
    %3043 = vmatpush.bf16.msra.mxu0 %v3031
    %3044 = vmatpush.bf16.msra.mxu0 %v3030
    %3045 = vmatmul.bf16.gmra.mxu0 %v3035
    %v3046 = vpop.f32.mrf.mxu0
    %v3047 = vadd.f32 0.0, %v3046
    %v3048 = vpop.f32.mrf.mxu0
    %3049 = vdwg.mxu0
    %v3054 = vunpack.c.l.b16 %v2722
    %v3055 = vunpack.c.l.b16 %v2723
    %v3056 = vunpack.c.l.b16 %v2724
    %v3057 = vunpack.c.l.b16 %v2725
    %v3058 = vpack.c.b16 %v3055, %v3054
    %v3059 = vpack.c.b16 %v3057, %v3056
    %v3063 = vsel %vm151, %v2829, 0
    %3065 = vmatpush.bf16.msra.mxu0 0
    %3066 = vmatpush.bf16.msra.mxu0 0
    %3067 = vmatpush.bf16.msra.mxu0 0
    %3068 = vmatpush.bf16.msra.mxu0 0
    %3069 = vmatpush.bf16.msra.mxu0 0
    %3070 = vmatpush.bf16.msra.mxu0 0
    %3071 = vmatpush.bf16.msra.mxu0 %v3059
    %3072 = vmatpush.bf16.msra.mxu0 %v3058
    %3073 = vmatmul.bf16.gmra.mxu0 %v3063
    %v3074 = vpop.f32.mrf.mxu0
    %v3075 = vadd.f32 0.0, %v3074
    %v3076 = vpop.f32.mrf.mxu0
    %3077 = vdwg.mxu0
    %v3082 = vunpack.c.l.b16 %v2726
    %v3083 = vunpack.c.l.b16 %v2727
    %v3084 = vunpack.c.l.b16 %v2728
    %v3085 = vunpack.c.l.b16 %v2729
    %v3086 = vpack.c.b16 %v3083, %v3082
    %v3087 = vpack.c.b16 %v3085, %v3084
    %v3091 = vsel %vm151, %v2830, 0
    %3093 = vmatpush.bf16.msra.mxu0 0
    %3094 = vmatpush.bf16.msra.mxu0 0
    %3095 = vmatpush.bf16.msra.mxu0 0
    %3096 = vmatpush.bf16.msra.mxu0 0
    %3097 = vmatpush.bf16.msra.mxu0 0
    %3098 = vmatpush.bf16.msra.mxu0 0
    %3099 = vmatpush.bf16.msra.mxu0 %v3087
    %3100 = vmatpush.bf16.msra.mxu0 %v3086
    %3101 = vmatmul.bf16.gmra.mxu0 %v3091
    %v3102 = vpop.f32.mrf.mxu0
    %v3103 = vadd.f32 0.0, %v3102
    %v3104 = vpop.f32.mrf.mxu0
    %3105 = vdwg.mxu0
    %v3110 = vunpack.c.l.b16 %v2730
    %v3111 = vunpack.c.l.b16 %v2731
    %v3112 = vunpack.c.l.b16 %v2732
    %v3113 = vunpack.c.l.b16 %v2733
    %v3114 = vpack.c.b16 %v3111, %v3110
    %v3115 = vpack.c.b16 %v3113, %v3112
    %v3119 = vsel %vm151, %v2831, 0
    %3121 = vmatpush.bf16.msra.mxu0 0
    %3122 = vmatpush.bf16.msra.mxu0 0
    %3123 = vmatpush.bf16.msra.mxu0 0
    %3124 = vmatpush.bf16.msra.mxu0 0
    %3125 = vmatpush.bf16.msra.mxu0 0
    %3126 = vmatpush.bf16.msra.mxu0 0
    %3127 = vmatpush.bf16.msra.mxu0 %v3115
    %3128 = vmatpush.bf16.msra.mxu0 %v3114
    %3129 = vmatmul.bf16.gmra.mxu0 %v3119
    %v3130 = vpop.f32.mrf.mxu0
    %v3131 = vadd.f32 0.0, %v3130
    %v3132 = vpop.f32.mrf.mxu0
    %3133 = vdwg.mxu0
    %v3138 = vunpack.c.l.b16 %v2734
    %v3139 = vunpack.c.l.b16 %v2735
    %v3140 = vunpack.c.l.b16 %v2736
    %v3141 = vunpack.c.l.b16 %v2737
    %v3142 = vpack.c.b16 %v3139, %v3138
    %v3143 = vpack.c.b16 %v3141, %v3140
    %v3147 = vsel %vm151, %v2832, 0
    %3149 = vmatpush.bf16.msra.mxu0 0
    %3150 = vmatpush.bf16.msra.mxu0 0
    %3151 = vmatpush.bf16.msra.mxu0 0
    %3152 = vmatpush.bf16.msra.mxu0 0
    %3153 = vmatpush.bf16.msra.mxu0 0
    %3154 = vmatpush.bf16.msra.mxu0 0
    %3155 = vmatpush.bf16.msra.mxu0 %v3143
    %3156 = vmatpush.bf16.msra.mxu0 %v3142
    %3157 = vmatmul.bf16.gmra.mxu0 %v3147
    %v3158 = vpop.f32.mrf.mxu0
    %v3159 = vadd.f32 0.0, %v3158
    %v3160 = vpop.f32.mrf.mxu0
    %3161 = vdwg.mxu0
    %v3166 = vunpack.c.l.b16 %v2738
    %v3167 = vunpack.c.l.b16 %v2739
    %v3168 = vunpack.c.l.b16 %v2740
    %v3169 = vunpack.c.l.b16 %v2741
    %v3170 = vpack.c.b16 %v3167, %v3166
    %v3171 = vpack.c.b16 %v3169, %v3168
    %v3175 = vsel %vm151, %v2833, 0
    %3177 = vmatpush.bf16.msra.mxu0 0
    %3178 = vmatpush.bf16.msra.mxu0 0
    %3179 = vmatpush.bf16.msra.mxu0 0
    %3180 = vmatpush.bf16.msra.mxu0 0
    %3181 = vmatpush.bf16.msra.mxu0 0
    %3182 = vmatpush.bf16.msra.mxu0 0
    %3183 = vmatpush.bf16.msra.mxu0 %v3171
    %3184 = vmatpush.bf16.msra.mxu0 %v3170
    %3185 = vmatmul.bf16.gmra.mxu0 %v3175
    %v3186 = vpop.f32.mrf.mxu0
    %v3187 = vadd.f32 0.0, %v3186
    %v3188 = vpop.f32.mrf.mxu0
    %3189 = vdwg.mxu0
    %v3194 = vunpack.c.l.b16 %v2742
    %v3195 = vunpack.c.l.b16 %v2743
    %v3196 = vunpack.c.l.b16 %v2744
    %v3197 = vunpack.c.l.b16 %v2745
    %v3198 = vpack.c.b16 %v3195, %v3194
    %v3199 = vpack.c.b16 %v3197, %v3196
    %v3203 = vsel %vm151, %v2834, 0
    %3205 = vmatpush.bf16.msra.mxu0 0
    %3206 = vmatpush.bf16.msra.mxu0 0
    %3207 = vmatpush.bf16.msra.mxu0 0
    %3208 = vmatpush.bf16.msra.mxu0 0
    %3209 = vmatpush.bf16.msra.mxu0 0
    %3210 = vmatpush.bf16.msra.mxu0 0
    %3211 = vmatpush.bf16.msra.mxu0 %v3199
    %3212 = vmatpush.bf16.msra.mxu0 %v3198
    %3213 = vmatmul.bf16.gmra.mxu0 %v3203
    %v3214 = vpop.f32.mrf.mxu0
    %v3215 = vadd.f32 0.0, %v3214
    %v3216 = vpop.f32.mrf.mxu0
    %3217 = vdwg.mxu0
    %v3222 = vunpack.c.l.b16 %v2746
    %v3223 = vunpack.c.l.b16 %v2747
    %v3224 = vunpack.c.l.b16 %v2748
    %v3225 = vunpack.c.l.b16 %v2749
    %v3226 = vpack.c.b16 %v3223, %v3222
    %v3227 = vpack.c.b16 %v3225, %v3224
    %v3231 = vsel %vm151, %v2835, 0
    %3233 = vmatpush.bf16.msra.mxu0 0
    %3234 = vmatpush.bf16.msra.mxu0 0
    %3235 = vmatpush.bf16.msra.mxu0 0
    %3236 = vmatpush.bf16.msra.mxu0 0
    %3237 = vmatpush.bf16.msra.mxu0 0
    %3238 = vmatpush.bf16.msra.mxu0 0
    %3239 = vmatpush.bf16.msra.mxu0 %v3227
    %3240 = vmatpush.bf16.msra.mxu0 %v3226
    %3241 = vmatmul.bf16.gmra.mxu0 %v3231
    %v3242 = vpop.f32.mrf.mxu0
    %v3243 = vadd.f32 0.0, %v3242
    %v3244 = vpop.f32.mrf.mxu0
    %3245 = vdwg.mxu0
    %v3250 = vunpack.c.l.b16 %v2750
    %v3251 = vunpack.c.l.b16 %v2751
    %v3252 = vunpack.c.l.b16 %v2752
    %v3253 = vunpack.c.l.b16 %v2753
    %v3254 = vpack.c.b16 %v3251, %v3250
    %v3255 = vpack.c.b16 %v3253, %v3252
    %v3259 = vsel %vm151, %v2836, 0
    %3261 = vmatpush.bf16.msra.mxu0 0
    %3262 = vmatpush.bf16.msra.mxu0 0
    %3263 = vmatpush.bf16.msra.mxu0 0
    %3264 = vmatpush.bf16.msra.mxu0 0
    %3265 = vmatpush.bf16.msra.mxu0 0
    %3266 = vmatpush.bf16.msra.mxu0 0
    %3267 = vmatpush.bf16.msra.mxu0 %v3255
    %3268 = vmatpush.bf16.msra.mxu0 %v3254
    %3269 = vmatmul.bf16.gmra.mxu0 %v3259
    %v3270 = vpop.f32.mrf.mxu0
    %v3271 = vadd.f32 0.0, %v3270
    %v3272 = vpop.f32.mrf.mxu0
    %3273 = vdwg.mxu0
    %v3278 = vunpack.c.l.b16 %v2754
    %v3279 = vunpack.c.l.b16 %v2755
    %v3280 = vunpack.c.l.b16 %v2756
    %v3281 = vunpack.c.l.b16 %v2757
    %v3282 = vpack.c.b16 %v3279, %v3278
    %v3283 = vpack.c.b16 %v3281, %v3280
    %v3287 = vsel %vm151, %v2837, 0
    %3289 = vmatpush.bf16.msra.mxu0 0
    %3290 = vmatpush.bf16.msra.mxu0 0
    %3291 = vmatpush.bf16.msra.mxu0 0
    %3292 = vmatpush.bf16.msra.mxu0 0
    %3293 = vmatpush.bf16.msra.mxu0 0
    %3294 = vmatpush.bf16.msra.mxu0 0
    %3295 = vmatpush.bf16.msra.mxu0 %v3283
    %3296 = vmatpush.bf16.msra.mxu0 %v3282
    %3297 = vmatmul.bf16.gmra.mxu0 %v3287
    %v3298 = vpop.f32.mrf.mxu0
    %v3299 = vadd.f32 0.0, %v3298
    %v3300 = vpop.f32.mrf.mxu0
    %3301 = vdwg.mxu0
    %v3306 = vunpack.c.l.b16 %v2758
    %v3307 = vunpack.c.l.b16 %v2759
    %v3308 = vunpack.c.l.b16 %v2760
    %v3309 = vunpack.c.l.b16 %v2761
    %v3310 = vpack.c.b16 %v3307, %v3306
    %v3311 = vpack.c.b16 %v3309, %v3308
    %v3315 = vsel %vm151, %v2838, 0
    %3317 = vmatpush.bf16.msra.mxu0 0
    %3318 = vmatpush.bf16.msra.mxu0 0
    %3319 = vmatpush.bf16.msra.mxu0 0
    %3320 = vmatpush.bf16.msra.mxu0 0
    %3321 = vmatpush.bf16.msra.mxu0 0
    %3322 = vmatpush.bf16.msra.mxu0 0
    %3323 = vmatpush.bf16.msra.mxu0 %v3311
    %3324 = vmatpush.bf16.msra.mxu0 %v3310
    %3325 = vmatmul.bf16.gmra.mxu0 %v3315
    %v3326 = vpop.f32.mrf.mxu0
    %v3327 = vadd.f32 0.0, %v3326
    %v3328 = vpop.f32.mrf.mxu0
    %3329 = vdwg.mxu0
    %v3334 = vunpack.c.l.b16 %v2762
    %v3335 = vunpack.c.l.b16 %v2763
    %v3336 = vunpack.c.l.b16 %v2764
    %v3337 = vunpack.c.l.b16 %v2765
    %v3338 = vpack.c.b16 %v3335, %v3334
    %v3339 = vpack.c.b16 %v3337, %v3336
    %v3343 = vsel %vm151, %v2839, 0
    %3345 = vmatpush.bf16.msra.mxu0 0
    %3346 = vmatpush.bf16.msra.mxu0 0
    %3347 = vmatpush.bf16.msra.mxu0 0
    %3348 = vmatpush.bf16.msra.mxu0 0
    %3349 = vmatpush.bf16.msra.mxu0 0
    %3350 = vmatpush.bf16.msra.mxu0 0
    %3351 = vmatpush.bf16.msra.mxu0 %v3339
    %3352 = vmatpush.bf16.msra.mxu0 %v3338
    %3353 = vmatmul.bf16.gmra.mxu0 %v3343
    %v3354 = vpop.f32.mrf.mxu0
    %v3355 = vadd.f32 0.0, %v3354
    %v3356 = vpop.f32.mrf.mxu0
    %3357 = vdwg.mxu0
    %v3362 = vunpack.c.l.b16 %v2766
    %v3363 = vunpack.c.l.b16 %v2767
    %v3364 = vunpack.c.l.b16 %v2768
    %v3365 = vunpack.c.l.b16 %v2769
    %v3366 = vpack.c.b16 %v3363, %v3362
    %v3367 = vpack.c.b16 %v3365, %v3364
    %v3371 = vsel %vm151, %v2840, 0
    %3373 = vmatpush.bf16.msra.mxu0 0
    %3374 = vmatpush.bf16.msra.mxu0 0
    %3375 = vmatpush.bf16.msra.mxu0 0
    %3376 = vmatpush.bf16.msra.mxu0 0
    %3377 = vmatpush.bf16.msra.mxu0 0
    %3378 = vmatpush.bf16.msra.mxu0 0
    %3379 = vmatpush.bf16.msra.mxu0 %v3367
    %3380 = vmatpush.bf16.msra.mxu0 %v3366
    %3381 = vmatmul.bf16.gmra.mxu0 %v3371
    %v3382 = vpop.f32.mrf.mxu0
    %v3383 = vadd.f32 0.0, %v3382
    %v3384 = vpop.f32.mrf.mxu0
    %3385 = vdwg.mxu0
    %v3390 = vunpack.c.l.b16 %v2770
    %v3391 = vunpack.c.l.b16 %v2771
    %v3392 = vunpack.c.l.b16 %v2772
    %v3393 = vunpack.c.l.b16 %v2773
    %v3394 = vpack.c.b16 %v3391, %v3390
    %v3395 = vpack.c.b16 %v3393, %v3392
    %v3399 = vsel %vm151, %v2841, 0
    %3401 = vmatpush.bf16.msra.mxu0 0
    %3402 = vmatpush.bf16.msra.mxu0 0
    %3403 = vmatpush.bf16.msra.mxu0 0
    %3404 = vmatpush.bf16.msra.mxu0 0
    %3405 = vmatpush.bf16.msra.mxu0 0
    %3406 = vmatpush.bf16.msra.mxu0 0
    %3407 = vmatpush.bf16.msra.mxu0 %v3395
    %3408 = vmatpush.bf16.msra.mxu0 %v3394
    %3409 = vmatmul.bf16.gmra.mxu0 %v3399
    %v3410 = vpop.f32.mrf.mxu0
    %v3411 = vadd.f32 0.0, %v3410
    %v3412 = vpop.f32.mrf.mxu0
    %3413 = vdwg.mxu0
    %v3418 = vunpack.c.l.b16 %v2774
    %v3419 = vunpack.c.l.b16 %v2775
    %v3420 = vunpack.c.l.b16 %v2776
    %v3421 = vunpack.c.l.b16 %v2777
    %v3422 = vpack.c.b16 %v3419, %v3418
    %v3423 = vpack.c.b16 %v3421, %v3420
    %v3427 = vsel %vm151, %v2842, 0
    %3429 = vmatpush.bf16.msra.mxu0 0
    %3430 = vmatpush.bf16.msra.mxu0 0
    %3431 = vmatpush.bf16.msra.mxu0 0
    %3432 = vmatpush.bf16.msra.mxu0 0
    %3433 = vmatpush.bf16.msra.mxu0 0
    %3434 = vmatpush.bf16.msra.mxu0 0
    %3435 = vmatpush.bf16.msra.mxu0 %v3423
    %3436 = vmatpush.bf16.msra.mxu0 %v3422
    %3437 = vmatmul.bf16.gmra.mxu0 %v3427
    %v3438 = vpop.f32.mrf.mxu0
    %v3439 = vadd.f32 0.0, %v3438
    %v3440 = vpop.f32.mrf.mxu0
    %3441 = vdwg.mxu0
    %v3446 = vunpack.c.l.b16 %v2778
    %v3447 = vunpack.c.l.b16 %v2779
    %v3448 = vunpack.c.l.b16 %v2780
    %v3449 = vunpack.c.l.b16 %v2781
    %v3450 = vpack.c.b16 %v3447, %v3446
    %v3451 = vpack.c.b16 %v3449, %v3448
    %v3455 = vsel %vm151, %v2843, 0
    %3457 = vmatpush.bf16.msra.mxu0 0
    %3458 = vmatpush.bf16.msra.mxu0 0
    %3459 = vmatpush.bf16.msra.mxu0 0
    %3460 = vmatpush.bf16.msra.mxu0 0
    %3461 = vmatpush.bf16.msra.mxu0 0
    %3462 = vmatpush.bf16.msra.mxu0 0
    %3463 = vmatpush.bf16.msra.mxu0 %v3451
    %3464 = vmatpush.bf16.msra.mxu0 %v3450
    %3465 = vmatmul.bf16.gmra.mxu0 %v3455
    %v3466 = vpop.f32.mrf.mxu0
    %v3467 = vadd.f32 0.0, %v3466
    %v3468 = vpop.f32.mrf.mxu0
    %3469 = vdwg.mxu0
    %v3474 = vunpack.c.l.b16 %v2782
    %v3475 = vunpack.c.l.b16 %v2783
    %v3476 = vunpack.c.l.b16 %v2784
    %v3477 = vunpack.c.l.b16 %v2785
    %v3478 = vpack.c.b16 %v3475, %v3474
    %v3479 = vpack.c.b16 %v3477, %v3476
    %v3483 = vsel %vm151, %v2844, 0
    %3485 = vmatpush.bf16.msra.mxu0 0
    %3486 = vmatpush.bf16.msra.mxu0 0
    %3487 = vmatpush.bf16.msra.mxu0 0
    %3488 = vmatpush.bf16.msra.mxu0 0
    %3489 = vmatpush.bf16.msra.mxu0 0
    %3490 = vmatpush.bf16.msra.mxu0 0
    %3491 = vmatpush.bf16.msra.mxu0 %v3479
    %3492 = vmatpush.bf16.msra.mxu0 %v3478
    %3493 = vmatmul.bf16.gmra.mxu0 %v3483
    %v3494 = vpop.f32.mrf.mxu0
    %v3495 = vadd.f32 0.0, %v3494
    %v3496 = vpop.f32.mrf.mxu0
    %3497 = vdwg.mxu0
    %v3502 = vunpack.c.l.b16 %v2786
    %v3503 = vunpack.c.l.b16 %v2787
    %v3504 = vunpack.c.l.b16 %v2788
    %v3505 = vunpack.c.l.b16 %v2789
    %v3506 = vpack.c.b16 %v3503, %v3502
    %v3507 = vpack.c.b16 %v3505, %v3504
    %v3511 = vsel %vm151, %v2845, 0
    %3513 = vmatpush.bf16.msra.mxu0 0
    %3514 = vmatpush.bf16.msra.mxu0 0
    %3515 = vmatpush.bf16.msra.mxu0 0
    %3516 = vmatpush.bf16.msra.mxu0 0
    %3517 = vmatpush.bf16.msra.mxu0 0
    %3518 = vmatpush.bf16.msra.mxu0 0
    %3519 = vmatpush.bf16.msra.mxu0 %v3507
    %3520 = vmatpush.bf16.msra.mxu0 %v3506
    %3521 = vmatmul.bf16.gmra.mxu0 %v3511
    %v3522 = vpop.f32.mrf.mxu0
    %v3523 = vadd.f32 0.0, %v3522
    %v3524 = vpop.f32.mrf.mxu0
    %3525 = vdwg.mxu0
    %v3530 = vunpack.c.l.b16 %v2790
    %v3531 = vunpack.c.l.b16 %v2791
    %v3532 = vunpack.c.l.b16 %v2792
    %v3533 = vunpack.c.l.b16 %v2793
    %v3534 = vpack.c.b16 %v3531, %v3530
    %v3535 = vpack.c.b16 %v3533, %v3532
    %v3539 = vsel %vm151, %v2846, 0
    %3541 = vmatpush.bf16.msra.mxu0 0
    %3542 = vmatpush.bf16.msra.mxu0 0
    %3543 = vmatpush.bf16.msra.mxu0 0
    %3544 = vmatpush.bf16.msra.mxu0 0
    %3545 = vmatpush.bf16.msra.mxu0 0
    %3546 = vmatpush.bf16.msra.mxu0 0
    %3547 = vmatpush.bf16.msra.mxu0 %v3535
    %3548 = vmatpush.bf16.msra.mxu0 %v3534
    %3549 = vmatmul.bf16.gmra.mxu0 %v3539
    %v3550 = vpop.f32.mrf.mxu0
    %v3551 = vadd.f32 0.0, %v3550
    %v3552 = vpop.f32.mrf.mxu0
    %3553 = vdwg.mxu0
    %v3558 = vunpack.c.l.b16 %v2794
    %v3559 = vunpack.c.l.b16 %v2795
    %v3560 = vunpack.c.l.b16 %v2796
    %v3561 = vunpack.c.l.b16 %v2797
    %v3562 = vpack.c.b16 %v3559, %v3558
    %v3563 = vpack.c.b16 %v3561, %v3560
    %v3567 = vsel %vm151, %v2847, 0
    %3569 = vmatpush.bf16.msra.mxu0 0
    %3570 = vmatpush.bf16.msra.mxu0 0
    %3571 = vmatpush.bf16.msra.mxu0 0
    %3572 = vmatpush.bf16.msra.mxu0 0
    %3573 = vmatpush.bf16.msra.mxu0 0
    %3574 = vmatpush.bf16.msra.mxu0 0
    %3575 = vmatpush.bf16.msra.mxu0 %v3563
    %3576 = vmatpush.bf16.msra.mxu0 %v3562
    %3577 = vmatmul.bf16.gmra.mxu0 %v3567
    %v3578 = vpop.f32.mrf.mxu0
    %v3579 = vadd.f32 0.0, %v3578
    %v3580 = vpop.f32.mrf.mxu0
    %3581 = vdwg.mxu0
    %v3586 = vunpack.c.l.b16 %v2798
    %v3587 = vunpack.c.l.b16 %v2799
    %v3588 = vunpack.c.l.b16 %v2800
    %v3589 = vunpack.c.l.b16 %v2801
    %v3590 = vpack.c.b16 %v3587, %v3586
    %v3591 = vpack.c.b16 %v3589, %v3588
    %v3595 = vsel %vm151, %v2848, 0
    %3597 = vmatpush.bf16.msra.mxu0 0
    %3598 = vmatpush.bf16.msra.mxu0 0
    %3599 = vmatpush.bf16.msra.mxu0 0
    %3600 = vmatpush.bf16.msra.mxu0 0
    %3601 = vmatpush.bf16.msra.mxu0 0
    %3602 = vmatpush.bf16.msra.mxu0 0
    %3603 = vmatpush.bf16.msra.mxu0 %v3591
    %3604 = vmatpush.bf16.msra.mxu0 %v3590
    %3605 = vmatmul.bf16.gmra.mxu0 %v3595
    %v3606 = vpop.f32.mrf.mxu0
    %v3607 = vadd.f32 0.0, %v3606
    %v3608 = vpop.f32.mrf.mxu0
    %3609 = vdwg.mxu0
    %v3614 = vunpack.c.l.b16 %v2802
    %v3615 = vunpack.c.l.b16 %v2803
    %v3616 = vunpack.c.l.b16 %v2804
    %v3617 = vunpack.c.l.b16 %v2805
    %v3618 = vpack.c.b16 %v3615, %v3614
    %v3619 = vpack.c.b16 %v3617, %v3616
    %v3623 = vsel %vm151, %v2849, 0
    %3625 = vmatpush.bf16.msra.mxu0 0
    %3626 = vmatpush.bf16.msra.mxu0 0
    %3627 = vmatpush.bf16.msra.mxu0 0
    %3628 = vmatpush.bf16.msra.mxu0 0
    %3629 = vmatpush.bf16.msra.mxu0 0
    %3630 = vmatpush.bf16.msra.mxu0 0
    %3631 = vmatpush.bf16.msra.mxu0 %v3619
    %3632 = vmatpush.bf16.msra.mxu0 %v3618
    %3633 = vmatmul.bf16.gmra.mxu0 %v3623
    %v3634 = vpop.f32.mrf.mxu0
    %v3635 = vadd.f32 0.0, %v3634
    %v3636 = vpop.f32.mrf.mxu0
    %3637 = vdwg.mxu0
    %v3642 = vunpack.c.l.b16 %v2806
    %v3643 = vunpack.c.l.b16 %v2807
    %v3644 = vunpack.c.l.b16 %v2808
    %v3645 = vunpack.c.l.b16 %v2809
    %v3646 = vpack.c.b16 %v3643, %v3642
    %v3647 = vpack.c.b16 %v3645, %v3644
    %v3651 = vsel %vm151, %v2850, 0
    %3653 = vmatpush.bf16.msra.mxu0 0
    %3654 = vmatpush.bf16.msra.mxu0 0
    %3655 = vmatpush.bf16.msra.mxu0 0
    %3656 = vmatpush.bf16.msra.mxu0 0
    %3657 = vmatpush.bf16.msra.mxu0 0
    %3658 = vmatpush.bf16.msra.mxu0 0
    %3659 = vmatpush.bf16.msra.mxu0 %v3647
    %3660 = vmatpush.bf16.msra.mxu0 %v3646
    %3661 = vmatmul.bf16.gmra.mxu0 %v3651
    %v3662 = vpop.f32.mrf.mxu0
    %v3663 = vadd.f32 0.0, %v3662
    %v3664 = vpop.f32.mrf.mxu0
    %3665 = vdwg.mxu0
    %v3670 = vunpack.c.l.b16 %v2810
    %v3671 = vunpack.c.l.b16 %v2811
    %v3672 = vunpack.c.l.b16 %v2812
    %v3673 = vunpack.c.l.b16 %v2813
    %v3674 = vpack.c.b16 %v3671, %v3670
    %v3675 = vpack.c.b16 %v3673, %v3672
    %v3679 = vsel %vm151, %v2851, 0
    %3681 = vmatpush.bf16.msra.mxu0 0
    %3682 = vmatpush.bf16.msra.mxu0 0
    %3683 = vmatpush.bf16.msra.mxu0 0
    %3684 = vmatpush.bf16.msra.mxu0 0
    %3685 = vmatpush.bf16.msra.mxu0 0
    %3686 = vmatpush.bf16.msra.mxu0 0
    %3687 = vmatpush.bf16.msra.mxu0 %v3675
    %3688 = vmatpush.bf16.msra.mxu0 %v3674
    %3689 = vmatmul.bf16.gmra.mxu0 %v3679
    %v3690 = vpop.f32.mrf.mxu0
    %v3691 = vadd.f32 0.0, %v3690
    %v3692 = vpop.f32.mrf.mxu0
    %3693 = vdwg.mxu0
    %v3698 = vunpack.c.l.b16 %v2814
    %v3699 = vunpack.c.l.b16 %v2815
    %v3700 = vunpack.c.l.b16 %v2816
    %v3701 = vunpack.c.l.b16 %v2817
    %v3702 = vpack.c.b16 %v3699, %v3698
    %v3703 = vpack.c.b16 %v3701, %v3700
    %v3707 = vsel %vm151, %v2852, 0
    %3709 = vmatpush.bf16.msra.mxu0 0
    %3710 = vmatpush.bf16.msra.mxu0 0
    %3711 = vmatpush.bf16.msra.mxu0 0
    %3712 = vmatpush.bf16.msra.mxu0 0
    %3713 = vmatpush.bf16.msra.mxu0 0
    %3714 = vmatpush.bf16.msra.mxu0 0
    %3715 = vmatpush.bf16.msra.mxu0 %v3703
    %3716 = vmatpush.bf16.msra.mxu0 %v3702
    %3717 = vmatmul.bf16.gmra.mxu0 %v3707
    %v3718 = vpop.f32.mrf.mxu0
    %v3719 = vadd.f32 0.0, %v3718
    %v3720 = vpop.f32.mrf.mxu0
    %3721 = vdwg.mxu0
    %v3726 = vunpack.c.l.b16 %v2818
    %v3727 = vunpack.c.l.b16 %v2819
    %v3728 = vunpack.c.l.b16 %v2820
    %v3729 = vunpack.c.l.b16 %v2821
    %v3730 = vpack.c.b16 %v3727, %v3726
    %v3731 = vpack.c.b16 %v3729, %v3728
    %v3735 = vsel %vm151, %v2853, 0
    %3737 = vmatpush.bf16.msra.mxu0 0
    %3738 = vmatpush.bf16.msra.mxu0 0
    %3739 = vmatpush.bf16.msra.mxu0 0
    %3740 = vmatpush.bf16.msra.mxu0 0
    %3741 = vmatpush.bf16.msra.mxu0 0
    %3742 = vmatpush.bf16.msra.mxu0 0
    %3743 = vmatpush.bf16.msra.mxu0 %v3731
    %3744 = vmatpush.bf16.msra.mxu0 %v3730
    %3745 = vmatmul.bf16.gmra.mxu0 %v3735
    %v3746 = vpop.f32.mrf.mxu0
    %v3747 = vadd.f32 0.0, %v3746
    %v3748 = vpop.f32.mrf.mxu0
    %3749 = vdwg.mxu0
    %v3750 = vsel %vm151, %v2879, 0.0
    %v3751 = vsel %vm151, %v2907, 0.0
    %v3752 = vadd.f32 %v3750, %v3751
    %v3753 = vsel %vm151, %v2935, 0.0
    %v3754 = vadd.f32 %v3752, %v3753
    %v3755 = vsel %vm151, %v2963, 0.0
    %v3756 = vadd.f32 %v3754, %v3755
    %v3757 = vsel %vm151, %v2991, 0.0
    %v3758 = vadd.f32 %v3756, %v3757
    %v3759 = vsel %vm151, %v3019, 0.0
    %v3760 = vadd.f32 %v3758, %v3759
    %v3761 = vsel %vm151, %v3047, 0.0
    %v3762 = vadd.f32 %v3760, %v3761
    %v3763 = vsel %vm151, %v3075, 0.0
    %v3764 = vadd.f32 %v3762, %v3763
    %v3765 = vsel %vm151, %v3103, 0.0
    %v3766 = vadd.f32 %v3764, %v3765
    %v3767 = vsel %vm151, %v3131, 0.0
    %v3768 = vadd.f32 %v3766, %v3767
    %v3769 = vsel %vm151, %v3159, 0.0
    %v3770 = vadd.f32 %v3768, %v3769
    %v3771 = vsel %vm151, %v3187, 0.0
    %v3772 = vadd.f32 %v3770, %v3771
    %v3773 = vsel %vm151, %v3215, 0.0
    %v3774 = vadd.f32 %v3772, %v3773
    %v3775 = vsel %vm151, %v3243, 0.0
    %v3776 = vadd.f32 %v3774, %v3775
    %v3777 = vsel %vm151, %v3271, 0.0
    %v3778 = vadd.f32 %v3776, %v3777
    %v3779 = vsel %vm151, %v3299, 0.0
    %v3780 = vadd.f32 %v3778, %v3779
    %v3781 = vsel %vm151, %v3327, 0.0
    %v3782 = vadd.f32 %v3780, %v3781
    %v3783 = vsel %vm151, %v3355, 0.0
    %v3784 = vadd.f32 %v3782, %v3783
    %v3785 = vsel %vm151, %v3383, 0.0
    %v3786 = vadd.f32 %v3784, %v3785
    %v3787 = vsel %vm151, %v3411, 0.0
    %v3788 = vadd.f32 %v3786, %v3787
    %v3789 = vsel %vm151, %v3439, 0.0
    %v3790 = vadd.f32 %v3788, %v3789
    %v3791 = vsel %vm151, %v3467, 0.0
    %v3792 = vadd.f32 %v3790, %v3791
    %v3793 = vsel %vm151, %v3495, 0.0
    %v3794 = vadd.f32 %v3792, %v3793
    %v3795 = vsel %vm151, %v3523, 0.0
    %v3796 = vadd.f32 %v3794, %v3795
    %v3797 = vsel %vm151, %v3551, 0.0
    %v3798 = vadd.f32 %v3796, %v3797
    %v3799 = vsel %vm151, %v3579, 0.0
    %v3800 = vadd.f32 %v3798, %v3799
    %v3801 = vsel %vm151, %v3607, 0.0
    %v3802 = vadd.f32 %v3800, %v3801
    %v3803 = vsel %vm151, %v3635, 0.0
    %v3804 = vadd.f32 %v3802, %v3803
    %v3805 = vsel %vm151, %v3663, 0.0
    %v3806 = vadd.f32 %v3804, %v3805
    %v3807 = vsel %vm151, %v3691, 0.0
    %v3808 = vadd.f32 %v3806, %v3807
    %v3809 = vsel %vm151, %v3719, 0.0
    %v3810 = vadd.f32 %v3808, %v3809
    %v3811 = vsel %vm151, %v3747, 0.0
    %v3812 = vadd.f32 %v3810, %v3811
    %s3813 = scalar_lea.vmem %s3, 48
    %v3814 = vld [vmem:[%s3813] sm:$0xf]
    %v3815 = vld [vmem:[%s3813 + $0x4] sm:$0xf]
    %v3816 = vld [vmem:[%s3813 + $0x8] sm:$0xf]
    %v3817 = vld [vmem:[%s3813 + $0xc] sm:$0xf]
    %v3818 = vpack.c.bf16 %v2253, %v2253
    %v3819 = vpack.c.bf16 %v2260, %v2260
    %v3820 = vpack.c.bf16 %v2267, %v2267
    %v3821 = vpack.c.bf16 %v2274, %v2274
    %v3822 = vpack.c.bf16 %v2281, %v2281
    %v3823 = vpack.c.bf16 %v2288, %v2288
    %v3824 = vpack.c.bf16 %v2295, %v2295
    %v3825 = vpack.c.bf16 %v2302, %v2302
    %v3834 = vunpack.c.l.b16 %v3818
    %v3835 = vunpack.c.l.b16 %v3819
    %v3836 = vunpack.c.l.b16 %v3820
    %v3837 = vunpack.c.l.b16 %v3821
    %v3838 = vunpack.c.l.b16 %v3822
    %v3839 = vunpack.c.l.b16 %v3823
    %v3840 = vunpack.c.l.b16 %v3824
    %v3841 = vunpack.c.l.b16 %v3825
    %v3842 = vsel %vm2375, %v3835, %v3834
    %v3843 = vsel %vm2377, %v3836, %v3842
    %v3844 = vsel %vm2379, %v3837, %v3843
    %v3845 = vsel %vm2381, %v3838, %v3844
    %v3846 = vsel %vm2383, %v3839, %v3845
    %v3847 = vsel %vm2385, %v3840, %v3846
    %v3848 = vsel %vm2387, %v3841, %v3847
    %v3849 = vpack.c.b16 %v3848, %v3848
    %v3854 = vunpack.c.l.b16 %v3814
    %v3855 = vunpack.c.l.b16 %v3815
    %v3856 = vunpack.c.l.b16 %v3816
    %v3857 = vunpack.c.l.b16 %v3817
    %v3858 = vpack.c.b16 %v3855, %v3854
    %v3859 = vpack.c.b16 %v3857, %v3856
    %v3863 = vsel %vm151, %v3849, 0
    %3865 = vmatpush.bf16.msra.mxu0 0
    %3866 = vmatpush.bf16.msra.mxu0 0
    %3867 = vmatpush.bf16.msra.mxu0 0
    %3868 = vmatpush.bf16.msra.mxu0 0
    %3869 = vmatpush.bf16.msra.mxu0 0
    %3870 = vmatpush.bf16.msra.mxu0 0
    %3871 = vmatpush.bf16.msra.mxu0 %v3859
    %3872 = vmatpush.bf16.msra.mxu0 %v3858
    %3873 = vmatmul.bf16.gmra.mxu0 %v3863
    %v3874 = vpop.f32.mrf.mxu0
    %v3875 = vadd.f32 0.0, %v3874
    %v3876 = vpop.f32.mrf.mxu0
    %3877 = vdwg.mxu0
    %v3878 = vadd.f32 %v3812, %v3875
    %s3879 = scalar_lea.vmem %s3, 80
    %v3880 = vld [vmem:[%s3879] sm:$0xf]
    %v3881 = vld [vmem:[%s3879 + $0x4] sm:$0xf]
    %v3882 = vld [vmem:[%s3879 + $0x8] sm:$0xf]
    %v3883 = vld [vmem:[%s3879 + $0xc] sm:$0xf]
    %v3884 = vpack.c.bf16 %v2317, %v2317
    %v3885 = vpack.c.bf16 %v2324, %v2324
    %v3886 = vpack.c.bf16 %v2331, %v2331
    %v3887 = vpack.c.bf16 %v2338, %v2338
    %v3888 = vpack.c.bf16 %v2345, %v2345
    %v3889 = vpack.c.bf16 %v2352, %v2352
    %v3890 = vpack.c.bf16 %v2359, %v2359
    %v3891 = vpack.c.bf16 %v2366, %v2366
    %v3900 = vunpack.c.l.b16 %v3884
    %v3901 = vunpack.c.l.b16 %v3885
    %v3902 = vunpack.c.l.b16 %v3886
    %v3903 = vunpack.c.l.b16 %v3887
    %v3904 = vunpack.c.l.b16 %v3888
    %v3905 = vunpack.c.l.b16 %v3889
    %v3906 = vunpack.c.l.b16 %v3890
    %v3907 = vunpack.c.l.b16 %v3891
    %v3908 = vsel %vm2375, %v3901, %v3900
    %v3909 = vsel %vm2377, %v3902, %v3908
    %v3910 = vsel %vm2379, %v3903, %v3909
    %v3911 = vsel %vm2381, %v3904, %v3910
    %v3912 = vsel %vm2383, %v3905, %v3911
    %v3913 = vsel %vm2385, %v3906, %v3912
    %v3914 = vsel %vm2387, %v3907, %v3913
    %v3915 = vpack.c.b16 %v3914, %v3914
    %v3920 = vunpack.c.l.b16 %v3880
    %v3921 = vunpack.c.l.b16 %v3881
    %v3922 = vunpack.c.l.b16 %v3882
    %v3923 = vunpack.c.l.b16 %v3883
    %v3924 = vpack.c.b16 %v3921, %v3920
    %v3925 = vpack.c.b16 %v3923, %v3922
    %v3929 = vsel %vm151, %v3915, 0
    %3931 = vmatpush.bf16.msra.mxu0 0
    %3932 = vmatpush.bf16.msra.mxu0 0
    %3933 = vmatpush.bf16.msra.mxu0 0
    %3934 = vmatpush.bf16.msra.mxu0 0
    %3935 = vmatpush.bf16.msra.mxu0 0
    %3936 = vmatpush.bf16.msra.mxu0 0
    %3937 = vmatpush.bf16.msra.mxu0 %v3925
    %3938 = vmatpush.bf16.msra.mxu0 %v3924
    %3939 = vmatmul.bf16.gmra.mxu0 %v3929
    %v3940 = vpop.f32.mrf.mxu0
    %v3941 = vadd.f32 0.0, %v3940
    %v3942 = vpop.f32.mrf.mxu0
    %3943 = vdwg.mxu0
    %v3944 = vadd.f32 %v3878, %v3941
    %s3945 = scalar_lea.vmem [#allocation4], 9
    %v3946 = vld [vmem:[%s3945] sm:$0x1]
    %v3948 = vperm.slane %v3946, 0
    %v3950 = vadd.f32 %v3944, %v3948
    %v3951 = vtanh.pop %v3950
    %v3952 = vmul.f32 %v2428, %v3951
    %v3953 = vmul.f32 %v2435, %v3951
    %v3954 = vmul.f32 %v2442, %v3951
    %v3955 = vmul.f32 %v2449, %v3951
    %v3956 = vmul.f32 %v2456, %v3951
    %v3957 = vmul.f32 %v2463, %v3951
    %v3958 = vmul.f32 %v2470, %v3951
    %v3959 = vmul.f32 %v2477, %v3951
    %v3960 = vmul.f32 %v2484, %v3951
    %v3961 = vmul.f32 %v2491, %v3951
    %v3962 = vmul.f32 %v2498, %v3951
    %v3963 = vmul.f32 %v2505, %v3951
    %v3964 = vmul.f32 %v2512, %v3951
    %v3965 = vmul.f32 %v2519, %v3951
    %v3966 = vmul.f32 %v2526, %v3951
    %v3967 = vmul.f32 %v2533, %v3951
    %v3968 = vmul.f32 %v2540, %v3951
    %v3969 = vmul.f32 %v2547, %v3951
    %v3970 = vmul.f32 %v2554, %v3951
    %v3971 = vmul.f32 %v2561, %v3951
    %v3972 = vmul.f32 %v2568, %v3951
    %v3973 = vmul.f32 %v2575, %v3951
    %v3974 = vmul.f32 %v2582, %v3951
    %v3975 = vmul.f32 %v2589, %v3951
    %v3976 = vmul.f32 %v2596, %v3951
    %v3977 = vmul.f32 %v2603, %v3951
    %v3978 = vmul.f32 %v2610, %v3951
    %v3979 = vmul.f32 %v2617, %v3951
    %v3980 = vmul.f32 %v2624, %v3951
    %v3981 = vmul.f32 %v2631, %v3951
    %v3982 = vmul.f32 %v2638, %v3951
    %v3983 = vmul.f32 %v2645, %v3951
    %s3984 = scalar_lea.vmem [#allocation7], 512
    %v3985 = vld [vmem:[%s3984] sm:$0xf]
    %v3986 = vld [vmem:[%s3984 + $0x4] sm:$0xf]
    %v3987 = vld [vmem:[%s3984 + $0x8] sm:$0xf]
    %v3988 = vld [vmem:[%s3984 + $0xc] sm:$0xf]
    %v3989 = vld [vmem:[%s3984 + $0x10] sm:$0xf]
    %v3990 = vld [vmem:[%s3984 + $0x14] sm:$0xf]
    %v3991 = vld [vmem:[%s3984 + $0x18] sm:$0xf]
    %v3992 = vld [vmem:[%s3984 + $0x1c] sm:$0xf]
    %v3993 = vld [vmem:[%s3984 + $0x20] sm:$0xf]
    %v3994 = vld [vmem:[%s3984 + $0x24] sm:$0xf]
    %v3995 = vld [vmem:[%s3984 + $0x28] sm:$0xf]
    %v3996 = vld [vmem:[%s3984 + $0x2c] sm:$0xf]
    %v3997 = vld [vmem:[%s3984 + $0x30] sm:$0xf]
    %v3998 = vld [vmem:[%s3984 + $0x34] sm:$0xf]
    %v3999 = vld [vmem:[%s3984 + $0x38] sm:$0xf]
    %v4000 = vld [vmem:[%s3984 + $0x3c] sm:$0xf]
    %v4001 = vld [vmem:[%s3984 + $0x40] sm:$0xf]
    %v4002 = vld [vmem:[%s3984 + $0x44] sm:$0xf]
    %v4003 = vld [vmem:[%s3984 + $0x48] sm:$0xf]
    %v4004 = vld [vmem:[%s3984 + $0x4c] sm:$0xf]
    %v4005 = vld [vmem:[%s3984 + $0x50] sm:$0xf]
    %v4006 = vld [vmem:[%s3984 + $0x54] sm:$0xf]
    %v4007 = vld [vmem:[%s3984 + $0x58] sm:$0xf]
    %v4008 = vld [vmem:[%s3984 + $0x5c] sm:$0xf]
    %v4009 = vld [vmem:[%s3984 + $0x60] sm:$0xf]
    %v4010 = vld [vmem:[%s3984 + $0x64] sm:$0xf]
    %v4011 = vld [vmem:[%s3984 + $0x68] sm:$0xf]
    %v4012 = vld [vmem:[%s3984 + $0x6c] sm:$0xf]
    %v4013 = vld [vmem:[%s3984 + $0x70] sm:$0xf]
    %v4014 = vld [vmem:[%s3984 + $0x74] sm:$0xf]
    %v4015 = vld [vmem:[%s3984 + $0x78] sm:$0xf]
    %v4016 = vld [vmem:[%s3984 + $0x7c] sm:$0xf]
    %v4017 = vld [vmem:[%s3984 + $0x80] sm:$0xf]
    %v4018 = vld [vmem:[%s3984 + $0x84] sm:$0xf]
    %v4019 = vld [vmem:[%s3984 + $0x88] sm:$0xf]
    %v4020 = vld [vmem:[%s3984 + $0x8c] sm:$0xf]
    %v4021 = vld [vmem:[%s3984 + $0x90] sm:$0xf]
    %v4022 = vld [vmem:[%s3984 + $0x94] sm:$0xf]
    %v4023 = vld [vmem:[%s3984 + $0x98] sm:$0xf]
    %v4024 = vld [vmem:[%s3984 + $0x9c] sm:$0xf]
    %v4025 = vld [vmem:[%s3984 + $0xa0] sm:$0xf]
    %v4026 = vld [vmem:[%s3984 + $0xa4] sm:$0xf]
    %v4027 = vld [vmem:[%s3984 + $0xa8] sm:$0xf]
    %v4028 = vld [vmem:[%s3984 + $0xac] sm:$0xf]
    %v4029 = vld [vmem:[%s3984 + $0xb0] sm:$0xf]
    %v4030 = vld [vmem:[%s3984 + $0xb4] sm:$0xf]
    %v4031 = vld [vmem:[%s3984 + $0xb8] sm:$0xf]
    %v4032 = vld [vmem:[%s3984 + $0xbc] sm:$0xf]
    %v4033 = vld [vmem:[%s3984 + $0xc0] sm:$0xf]
    %v4034 = vld [vmem:[%s3984 + $0xc4] sm:$0xf]
    %v4035 = vld [vmem:[%s3984 + $0xc8] sm:$0xf]
    %v4036 = vld [vmem:[%s3984 + $0xcc] sm:$0xf]
    %v4037 = vld [vmem:[%s3984 + $0xd0] sm:$0xf]
    %v4038 = vld [vmem:[%s3984 + $0xd4] sm:$0xf]
    %v4039 = vld [vmem:[%s3984 + $0xd8] sm:$0xf]
    %v4040 = vld [vmem:[%s3984 + $0xdc] sm:$0xf]
    %v4041 = vld [vmem:[%s3984 + $0xe0] sm:$0xf]
    %v4042 = vld [vmem:[%s3984 + $0xe4] sm:$0xf]
    %v4043 = vld [vmem:[%s3984 + $0xe8] sm:$0xf]
    %v4044 = vld [vmem:[%s3984 + $0xec] sm:$0xf]
    %v4045 = vld [vmem:[%s3984 + $0xf0] sm:$0xf]
    %v4046 = vld [vmem:[%s3984 + $0xf4] sm:$0xf]
    %v4047 = vld [vmem:[%s3984 + $0xf8] sm:$0xf]
    %v4048 = vld [vmem:[%s3984 + $0xfc] sm:$0xf]
    %v4049 = vld [vmem:[%s3984 + $0x100] sm:$0xf]
    %v4050 = vld [vmem:[%s3984 + $0x104] sm:$0xf]
    %v4051 = vld [vmem:[%s3984 + $0x108] sm:$0xf]
    %v4052 = vld [vmem:[%s3984 + $0x10c] sm:$0xf]
    %v4053 = vld [vmem:[%s3984 + $0x110] sm:$0xf]
    %v4054 = vld [vmem:[%s3984 + $0x114] sm:$0xf]
    %v4055 = vld [vmem:[%s3984 + $0x118] sm:$0xf]
    %v4056 = vld [vmem:[%s3984 + $0x11c] sm:$0xf]
    %v4057 = vld [vmem:[%s3984 + $0x120] sm:$0xf]
    %v4058 = vld [vmem:[%s3984 + $0x124] sm:$0xf]
    %v4059 = vld [vmem:[%s3984 + $0x128] sm:$0xf]
    %v4060 = vld [vmem:[%s3984 + $0x12c] sm:$0xf]
    %v4061 = vld [vmem:[%s3984 + $0x130] sm:$0xf]
    %v4062 = vld [vmem:[%s3984 + $0x134] sm:$0xf]
    %v4063 = vld [vmem:[%s3984 + $0x138] sm:$0xf]
    %v4064 = vld [vmem:[%s3984 + $0x13c] sm:$0xf]
    %v4065 = vld [vmem:[%s3984 + $0x140] sm:$0xf]
    %v4066 = vld [vmem:[%s3984 + $0x144] sm:$0xf]
    %v4067 = vld [vmem:[%s3984 + $0x148] sm:$0xf]
    %v4068 = vld [vmem:[%s3984 + $0x14c] sm:$0xf]
    %v4069 = vld [vmem:[%s3984 + $0x150] sm:$0xf]
    %v4070 = vld [vmem:[%s3984 + $0x154] sm:$0xf]
    %v4071 = vld [vmem:[%s3984 + $0x158] sm:$0xf]
    %v4072 = vld [vmem:[%s3984 + $0x15c] sm:$0xf]
    %v4073 = vld [vmem:[%s3984 + $0x160] sm:$0xf]
    %v4074 = vld [vmem:[%s3984 + $0x164] sm:$0xf]
    %v4075 = vld [vmem:[%s3984 + $0x168] sm:$0xf]
    %v4076 = vld [vmem:[%s3984 + $0x16c] sm:$0xf]
    %v4077 = vld [vmem:[%s3984 + $0x170] sm:$0xf]
    %v4078 = vld [vmem:[%s3984 + $0x174] sm:$0xf]
    %v4079 = vld [vmem:[%s3984 + $0x178] sm:$0xf]
    %v4080 = vld [vmem:[%s3984 + $0x17c] sm:$0xf]
    %v4081 = vld [vmem:[%s3984 + $0x180] sm:$0xf]
    %v4082 = vld [vmem:[%s3984 + $0x184] sm:$0xf]
    %v4083 = vld [vmem:[%s3984 + $0x188] sm:$0xf]
    %v4084 = vld [vmem:[%s3984 + $0x18c] sm:$0xf]
    %v4085 = vld [vmem:[%s3984 + $0x190] sm:$0xf]
    %v4086 = vld [vmem:[%s3984 + $0x194] sm:$0xf]
    %v4087 = vld [vmem:[%s3984 + $0x198] sm:$0xf]
    %v4088 = vld [vmem:[%s3984 + $0x19c] sm:$0xf]
    %v4089 = vld [vmem:[%s3984 + $0x1a0] sm:$0xf]
    %v4090 = vld [vmem:[%s3984 + $0x1a4] sm:$0xf]
    %v4091 = vld [vmem:[%s3984 + $0x1a8] sm:$0xf]
    %v4092 = vld [vmem:[%s3984 + $0x1ac] sm:$0xf]
    %v4093 = vld [vmem:[%s3984 + $0x1b0] sm:$0xf]
    %v4094 = vld [vmem:[%s3984 + $0x1b4] sm:$0xf]
    %v4095 = vld [vmem:[%s3984 + $0x1b8] sm:$0xf]
    %v4096 = vld [vmem:[%s3984 + $0x1bc] sm:$0xf]
    %v4097 = vld [vmem:[%s3984 + $0x1c0] sm:$0xf]
    %v4098 = vld [vmem:[%s3984 + $0x1c4] sm:$0xf]
    %v4099 = vld [vmem:[%s3984 + $0x1c8] sm:$0xf]
    %v4100 = vld [vmem:[%s3984 + $0x1cc] sm:$0xf]
    %v4101 = vld [vmem:[%s3984 + $0x1d0] sm:$0xf]
    %v4102 = vld [vmem:[%s3984 + $0x1d4] sm:$0xf]
    %v4103 = vld [vmem:[%s3984 + $0x1d8] sm:$0xf]
    %v4104 = vld [vmem:[%s3984 + $0x1dc] sm:$0xf]
    %v4105 = vld [vmem:[%s3984 + $0x1e0] sm:$0xf]
    %v4106 = vld [vmem:[%s3984 + $0x1e4] sm:$0xf]
    %v4107 = vld [vmem:[%s3984 + $0x1e8] sm:$0xf]
    %v4108 = vld [vmem:[%s3984 + $0x1ec] sm:$0xf]
    %v4109 = vld [vmem:[%s3984 + $0x1f0] sm:$0xf]
    %v4110 = vld [vmem:[%s3984 + $0x1f4] sm:$0xf]
    %v4111 = vld [vmem:[%s3984 + $0x1f8] sm:$0xf]
    %v4112 = vld [vmem:[%s3984 + $0x1fc] sm:$0xf]
    %v4113 = vpack.c.bf16 %v3952, %v3952
    %v4114 = vpack.c.bf16 %v3953, %v3953
    %v4115 = vpack.c.bf16 %v3954, %v3954
    %v4116 = vpack.c.bf16 %v3955, %v3955
    %v4117 = vpack.c.bf16 %v3956, %v3956
    %v4118 = vpack.c.bf16 %v3957, %v3957
    %v4119 = vpack.c.bf16 %v3958, %v3958
    %v4120 = vpack.c.bf16 %v3959, %v3959
    %v4121 = vpack.c.bf16 %v3960, %v3960
    %v4122 = vpack.c.bf16 %v3961, %v3961
    %v4123 = vpack.c.bf16 %v3962, %v3962
    %v4124 = vpack.c.bf16 %v3963, %v3963
    %v4125 = vpack.c.bf16 %v3964, %v3964
    %v4126 = vpack.c.bf16 %v3965, %v3965
    %v4127 = vpack.c.bf16 %v3966, %v3966
    %v4128 = vpack.c.bf16 %v3967, %v3967
    %v4129 = vpack.c.bf16 %v3968, %v3968
    %v4130 = vpack.c.bf16 %v3969, %v3969
    %v4131 = vpack.c.bf16 %v3970, %v3970
    %v4132 = vpack.c.bf16 %v3971, %v3971
    %v4133 = vpack.c.bf16 %v3972, %v3972
    %v4134 = vpack.c.bf16 %v3973, %v3973
    %v4135 = vpack.c.bf16 %v3974, %v3974
    %v4136 = vpack.c.bf16 %v3975, %v3975
    %v4137 = vpack.c.bf16 %v3976, %v3976
    %v4138 = vpack.c.bf16 %v3977, %v3977
    %v4139 = vpack.c.bf16 %v3978, %v3978
    %v4140 = vpack.c.bf16 %v3979, %v3979
    %v4141 = vpack.c.bf16 %v3980, %v3980
    %v4142 = vpack.c.bf16 %v3981, %v3981
    %v4143 = vpack.c.bf16 %v3982, %v3982
    %v4144 = vpack.c.bf16 %v3983, %v3983
    %v4149 = vunpack.c.l.b16 %v3985
    %v4150 = vunpack.c.l.b16 %v3986
    %v4151 = vunpack.c.l.b16 %v3987
    %v4152 = vunpack.c.l.b16 %v3988
    %v4153 = vpack.c.b16 %v4150, %v4149
    %v4154 = vpack.c.b16 %v4152, %v4151
    %v4158 = vsel %vm151, %v4113, 0
    %4160 = vmatpush.bf16.msra.mxu0 0
    %4161 = vmatpush.bf16.msra.mxu0 0
    %4162 = vmatpush.bf16.msra.mxu0 0
    %4163 = vmatpush.bf16.msra.mxu0 0
    %4164 = vmatpush.bf16.msra.mxu0 0
    %4165 = vmatpush.bf16.msra.mxu0 0
    %4166 = vmatpush.bf16.msra.mxu0 %v4154
    %4167 = vmatpush.bf16.msra.mxu0 %v4153
    %4168 = vmatmul.bf16.gmra.mxu0 %v4158
    %v4169 = vpop.f32.mrf.mxu0
    %v4170 = vadd.f32 0.0, %v4169
    %v4171 = vpop.f32.mrf.mxu0
    %4172 = vdwg.mxu0
    %v4177 = vunpack.c.l.b16 %v3989
    %v4178 = vunpack.c.l.b16 %v3990
    %v4179 = vunpack.c.l.b16 %v3991
    %v4180 = vunpack.c.l.b16 %v3992
    %v4181 = vpack.c.b16 %v4178, %v4177
    %v4182 = vpack.c.b16 %v4180, %v4179
    %v4186 = vsel %vm151, %v4114, 0
    %4188 = vmatpush.bf16.msra.mxu0 0
    %4189 = vmatpush.bf16.msra.mxu0 0
    %4190 = vmatpush.bf16.msra.mxu0 0
    %4191 = vmatpush.bf16.msra.mxu0 0
    %4192 = vmatpush.bf16.msra.mxu0 0
    %4193 = vmatpush.bf16.msra.mxu0 0
    %4194 = vmatpush.bf16.msra.mxu0 %v4182
    %4195 = vmatpush.bf16.msra.mxu0 %v4181
    %4196 = vmatmul.bf16.gmra.mxu0 %v4186
    %v4197 = vpop.f32.mrf.mxu0
    %v4198 = vadd.f32 0.0, %v4197
    %v4199 = vpop.f32.mrf.mxu0
    %4200 = vdwg.mxu0
    %v4205 = vunpack.c.l.b16 %v3993
    %v4206 = vunpack.c.l.b16 %v3994
    %v4207 = vunpack.c.l.b16 %v3995
    %v4208 = vunpack.c.l.b16 %v3996
    %v4209 = vpack.c.b16 %v4206, %v4205
    %v4210 = vpack.c.b16 %v4208, %v4207
    %v4214 = vsel %vm151, %v4115, 0
    %4216 = vmatpush.bf16.msra.mxu0 0
    %4217 = vmatpush.bf16.msra.mxu0 0
    %4218 = vmatpush.bf16.msra.mxu0 0
    %4219 = vmatpush.bf16.msra.mxu0 0
    %4220 = vmatpush.bf16.msra.mxu0 0
    %4221 = vmatpush.bf16.msra.mxu0 0
    %4222 = vmatpush.bf16.msra.mxu0 %v4210
    %4223 = vmatpush.bf16.msra.mxu0 %v4209
    %4224 = vmatmul.bf16.gmra.mxu0 %v4214
    %v4225 = vpop.f32.mrf.mxu0
    %v4226 = vadd.f32 0.0, %v4225
    %v4227 = vpop.f32.mrf.mxu0
    %4228 = vdwg.mxu0
    %v4233 = vunpack.c.l.b16 %v3997
    %v4234 = vunpack.c.l.b16 %v3998
    %v4235 = vunpack.c.l.b16 %v3999
    %v4236 = vunpack.c.l.b16 %v4000
    %v4237 = vpack.c.b16 %v4234, %v4233
    %v4238 = vpack.c.b16 %v4236, %v4235
    %v4242 = vsel %vm151, %v4116, 0
    %4244 = vmatpush.bf16.msra.mxu0 0
    %4245 = vmatpush.bf16.msra.mxu0 0
    %4246 = vmatpush.bf16.msra.mxu0 0
    %4247 = vmatpush.bf16.msra.mxu0 0
    %4248 = vmatpush.bf16.msra.mxu0 0
    %4249 = vmatpush.bf16.msra.mxu0 0
    %4250 = vmatpush.bf16.msra.mxu0 %v4238
    %4251 = vmatpush.bf16.msra.mxu0 %v4237
    %4252 = vmatmul.bf16.gmra.mxu0 %v4242
    %v4253 = vpop.f32.mrf.mxu0
    %v4254 = vadd.f32 0.0, %v4253
    %v4255 = vpop.f32.mrf.mxu0
    %4256 = vdwg.mxu0
    %v4261 = vunpack.c.l.b16 %v4001
    %v4262 = vunpack.c.l.b16 %v4002
    %v4263 = vunpack.c.l.b16 %v4003
    %v4264 = vunpack.c.l.b16 %v4004
    %v4265 = vpack.c.b16 %v4262, %v4261
    %v4266 = vpack.c.b16 %v4264, %v4263
    %v4270 = vsel %vm151, %v4117, 0
    %4272 = vmatpush.bf16.msra.mxu0 0
    %4273 = vmatpush.bf16.msra.mxu0 0
    %4274 = vmatpush.bf16.msra.mxu0 0
    %4275 = vmatpush.bf16.msra.mxu0 0
    %4276 = vmatpush.bf16.msra.mxu0 0
    %4277 = vmatpush.bf16.msra.mxu0 0
    %4278 = vmatpush.bf16.msra.mxu0 %v4266
    %4279 = vmatpush.bf16.msra.mxu0 %v4265
    %4280 = vmatmul.bf16.gmra.mxu0 %v4270
    %v4281 = vpop.f32.mrf.mxu0
    %v4282 = vadd.f32 0.0, %v4281
    %v4283 = vpop.f32.mrf.mxu0
    %4284 = vdwg.mxu0
    %v4289 = vunpack.c.l.b16 %v4005
    %v4290 = vunpack.c.l.b16 %v4006
    %v4291 = vunpack.c.l.b16 %v4007
    %v4292 = vunpack.c.l.b16 %v4008
    %v4293 = vpack.c.b16 %v4290, %v4289
    %v4294 = vpack.c.b16 %v4292, %v4291
    %v4298 = vsel %vm151, %v4118, 0
    %4300 = vmatpush.bf16.msra.mxu0 0
    %4301 = vmatpush.bf16.msra.mxu0 0
    %4302 = vmatpush.bf16.msra.mxu0 0
    %4303 = vmatpush.bf16.msra.mxu0 0
    %4304 = vmatpush.bf16.msra.mxu0 0
    %4305 = vmatpush.bf16.msra.mxu0 0
    %4306 = vmatpush.bf16.msra.mxu0 %v4294
    %4307 = vmatpush.bf16.msra.mxu0 %v4293
    %4308 = vmatmul.bf16.gmra.mxu0 %v4298
    %v4309 = vpop.f32.mrf.mxu0
    %v4310 = vadd.f32 0.0, %v4309
    %v4311 = vpop.f32.mrf.mxu0
    %4312 = vdwg.mxu0
    %v4317 = vunpack.c.l.b16 %v4009
    %v4318 = vunpack.c.l.b16 %v4010
    %v4319 = vunpack.c.l.b16 %v4011
    %v4320 = vunpack.c.l.b16 %v4012
    %v4321 = vpack.c.b16 %v4318, %v4317
    %v4322 = vpack.c.b16 %v4320, %v4319
    %v4326 = vsel %vm151, %v4119, 0
    %4328 = vmatpush.bf16.msra.mxu0 0
    %4329 = vmatpush.bf16.msra.mxu0 0
    %4330 = vmatpush.bf16.msra.mxu0 0
    %4331 = vmatpush.bf16.msra.mxu0 0
    %4332 = vmatpush.bf16.msra.mxu0 0
    %4333 = vmatpush.bf16.msra.mxu0 0
    %4334 = vmatpush.bf16.msra.mxu0 %v4322
    %4335 = vmatpush.bf16.msra.mxu0 %v4321
    %4336 = vmatmul.bf16.gmra.mxu0 %v4326
    %v4337 = vpop.f32.mrf.mxu0
    %v4338 = vadd.f32 0.0, %v4337
    %v4339 = vpop.f32.mrf.mxu0
    %4340 = vdwg.mxu0
    %v4345 = vunpack.c.l.b16 %v4013
    %v4346 = vunpack.c.l.b16 %v4014
    %v4347 = vunpack.c.l.b16 %v4015
    %v4348 = vunpack.c.l.b16 %v4016
    %v4349 = vpack.c.b16 %v4346, %v4345
    %v4350 = vpack.c.b16 %v4348, %v4347
    %v4354 = vsel %vm151, %v4120, 0
    %4356 = vmatpush.bf16.msra.mxu0 0
    %4357 = vmatpush.bf16.msra.mxu0 0
    %4358 = vmatpush.bf16.msra.mxu0 0
    %4359 = vmatpush.bf16.msra.mxu0 0
    %4360 = vmatpush.bf16.msra.mxu0 0
    %4361 = vmatpush.bf16.msra.mxu0 0
    %4362 = vmatpush.bf16.msra.mxu0 %v4350
    %4363 = vmatpush.bf16.msra.mxu0 %v4349
    %4364 = vmatmul.bf16.gmra.mxu0 %v4354
    %v4365 = vpop.f32.mrf.mxu0
    %v4366 = vadd.f32 0.0, %v4365
    %v4367 = vpop.f32.mrf.mxu0
    %4368 = vdwg.mxu0
    %v4373 = vunpack.c.l.b16 %v4017
    %v4374 = vunpack.c.l.b16 %v4018
    %v4375 = vunpack.c.l.b16 %v4019
    %v4376 = vunpack.c.l.b16 %v4020
    %v4377 = vpack.c.b16 %v4374, %v4373
    %v4378 = vpack.c.b16 %v4376, %v4375
    %v4382 = vsel %vm151, %v4121, 0
    %4384 = vmatpush.bf16.msra.mxu0 0
    %4385 = vmatpush.bf16.msra.mxu0 0
    %4386 = vmatpush.bf16.msra.mxu0 0
    %4387 = vmatpush.bf16.msra.mxu0 0
    %4388 = vmatpush.bf16.msra.mxu0 0
    %4389 = vmatpush.bf16.msra.mxu0 0
    %4390 = vmatpush.bf16.msra.mxu0 %v4378
    %4391 = vmatpush.bf16.msra.mxu0 %v4377
    %4392 = vmatmul.bf16.gmra.mxu0 %v4382
    %v4393 = vpop.f32.mrf.mxu0
    %v4394 = vadd.f32 0.0, %v4393
    %v4395 = vpop.f32.mrf.mxu0
    %4396 = vdwg.mxu0
    %v4401 = vunpack.c.l.b16 %v4021
    %v4402 = vunpack.c.l.b16 %v4022
    %v4403 = vunpack.c.l.b16 %v4023
    %v4404 = vunpack.c.l.b16 %v4024
    %v4405 = vpack.c.b16 %v4402, %v4401
    %v4406 = vpack.c.b16 %v4404, %v4403
    %v4410 = vsel %vm151, %v4122, 0
    %4412 = vmatpush.bf16.msra.mxu0 0
    %4413 = vmatpush.bf16.msra.mxu0 0
    %4414 = vmatpush.bf16.msra.mxu0 0
    %4415 = vmatpush.bf16.msra.mxu0 0
    %4416 = vmatpush.bf16.msra.mxu0 0
    %4417 = vmatpush.bf16.msra.mxu0 0
    %4418 = vmatpush.bf16.msra.mxu0 %v4406
    %4419 = vmatpush.bf16.msra.mxu0 %v4405
    %4420 = vmatmul.bf16.gmra.mxu0 %v4410
    %v4421 = vpop.f32.mrf.mxu0
    %v4422 = vadd.f32 0.0, %v4421
    %v4423 = vpop.f32.mrf.mxu0
    %4424 = vdwg.mxu0
    %v4429 = vunpack.c.l.b16 %v4025
    %v4430 = vunpack.c.l.b16 %v4026
    %v4431 = vunpack.c.l.b16 %v4027
    %v4432 = vunpack.c.l.b16 %v4028
    %v4433 = vpack.c.b16 %v4430, %v4429
    %v4434 = vpack.c.b16 %v4432, %v4431
    %v4438 = vsel %vm151, %v4123, 0
    %4440 = vmatpush.bf16.msra.mxu0 0
    %4441 = vmatpush.bf16.msra.mxu0 0
    %4442 = vmatpush.bf16.msra.mxu0 0
    %4443 = vmatpush.bf16.msra.mxu0 0
    %4444 = vmatpush.bf16.msra.mxu0 0
    %4445 = vmatpush.bf16.msra.mxu0 0
    %4446 = vmatpush.bf16.msra.mxu0 %v4434
    %4447 = vmatpush.bf16.msra.mxu0 %v4433
    %4448 = vmatmul.bf16.gmra.mxu0 %v4438
    %v4449 = vpop.f32.mrf.mxu0
    %v4450 = vadd.f32 0.0, %v4449
    %v4451 = vpop.f32.mrf.mxu0
    %4452 = vdwg.mxu0
    %v4457 = vunpack.c.l.b16 %v4029
    %v4458 = vunpack.c.l.b16 %v4030
    %v4459 = vunpack.c.l.b16 %v4031
    %v4460 = vunpack.c.l.b16 %v4032
    %v4461 = vpack.c.b16 %v4458, %v4457
    %v4462 = vpack.c.b16 %v4460, %v4459
    %v4466 = vsel %vm151, %v4124, 0
    %4468 = vmatpush.bf16.msra.mxu0 0
    %4469 = vmatpush.bf16.msra.mxu0 0
    %4470 = vmatpush.bf16.msra.mxu0 0
    %4471 = vmatpush.bf16.msra.mxu0 0
    %4472 = vmatpush.bf16.msra.mxu0 0
    %4473 = vmatpush.bf16.msra.mxu0 0
    %4474 = vmatpush.bf16.msra.mxu0 %v4462
    %4475 = vmatpush.bf16.msra.mxu0 %v4461
    %4476 = vmatmul.bf16.gmra.mxu0 %v4466
    %v4477 = vpop.f32.mrf.mxu0
    %v4478 = vadd.f32 0.0, %v4477
    %v4479 = vpop.f32.mrf.mxu0
    %4480 = vdwg.mxu0
    %v4485 = vunpack.c.l.b16 %v4033
    %v4486 = vunpack.c.l.b16 %v4034
    %v4487 = vunpack.c.l.b16 %v4035
    %v4488 = vunpack.c.l.b16 %v4036
    %v4489 = vpack.c.b16 %v4486, %v4485
    %v4490 = vpack.c.b16 %v4488, %v4487
    %v4494 = vsel %vm151, %v4125, 0
    %4496 = vmatpush.bf16.msra.mxu0 0
    %4497 = vmatpush.bf16.msra.mxu0 0
    %4498 = vmatpush.bf16.msra.mxu0 0
    %4499 = vmatpush.bf16.msra.mxu0 0
    %4500 = vmatpush.bf16.msra.mxu0 0
    %4501 = vmatpush.bf16.msra.mxu0 0
    %4502 = vmatpush.bf16.msra.mxu0 %v4490
    %4503 = vmatpush.bf16.msra.mxu0 %v4489
    %4504 = vmatmul.bf16.gmra.mxu0 %v4494
    %v4505 = vpop.f32.mrf.mxu0
    %v4506 = vadd.f32 0.0, %v4505
    %v4507 = vpop.f32.mrf.mxu0
    %4508 = vdwg.mxu0
    %v4513 = vunpack.c.l.b16 %v4037
    %v4514 = vunpack.c.l.b16 %v4038
    %v4515 = vunpack.c.l.b16 %v4039
    %v4516 = vunpack.c.l.b16 %v4040
    %v4517 = vpack.c.b16 %v4514, %v4513
    %v4518 = vpack.c.b16 %v4516, %v4515
    %v4522 = vsel %vm151, %v4126, 0
    %4524 = vmatpush.bf16.msra.mxu0 0
    %4525 = vmatpush.bf16.msra.mxu0 0
    %4526 = vmatpush.bf16.msra.mxu0 0
    %4527 = vmatpush.bf16.msra.mxu0 0
    %4528 = vmatpush.bf16.msra.mxu0 0
    %4529 = vmatpush.bf16.msra.mxu0 0
    %4530 = vmatpush.bf16.msra.mxu0 %v4518
    %4531 = vmatpush.bf16.msra.mxu0 %v4517
    %4532 = vmatmul.bf16.gmra.mxu0 %v4522
    %v4533 = vpop.f32.mrf.mxu0
    %v4534 = vadd.f32 0.0, %v4533
    %v4535 = vpop.f32.mrf.mxu0
    %4536 = vdwg.mxu0
    %v4541 = vunpack.c.l.b16 %v4041
    %v4542 = vunpack.c.l.b16 %v4042
    %v4543 = vunpack.c.l.b16 %v4043
    %v4544 = vunpack.c.l.b16 %v4044
    %v4545 = vpack.c.b16 %v4542, %v4541
    %v4546 = vpack.c.b16 %v4544, %v4543
    %v4550 = vsel %vm151, %v4127, 0
    %4552 = vmatpush.bf16.msra.mxu0 0
    %4553 = vmatpush.bf16.msra.mxu0 0
    %4554 = vmatpush.bf16.msra.mxu0 0
    %4555 = vmatpush.bf16.msra.mxu0 0
    %4556 = vmatpush.bf16.msra.mxu0 0
    %4557 = vmatpush.bf16.msra.mxu0 0
    %4558 = vmatpush.bf16.msra.mxu0 %v4546
    %4559 = vmatpush.bf16.msra.mxu0 %v4545
    %4560 = vmatmul.bf16.gmra.mxu0 %v4550
    %v4561 = vpop.f32.mrf.mxu0
    %v4562 = vadd.f32 0.0, %v4561
    %v4563 = vpop.f32.mrf.mxu0
    %4564 = vdwg.mxu0
    %v4569 = vunpack.c.l.b16 %v4045
    %v4570 = vunpack.c.l.b16 %v4046
    %v4571 = vunpack.c.l.b16 %v4047
    %v4572 = vunpack.c.l.b16 %v4048
    %v4573 = vpack.c.b16 %v4570, %v4569
    %v4574 = vpack.c.b16 %v4572, %v4571
    %v4578 = vsel %vm151, %v4128, 0
    %4580 = vmatpush.bf16.msra.mxu0 0
    %4581 = vmatpush.bf16.msra.mxu0 0
    %4582 = vmatpush.bf16.msra.mxu0 0
    %4583 = vmatpush.bf16.msra.mxu0 0
    %4584 = vmatpush.bf16.msra.mxu0 0
    %4585 = vmatpush.bf16.msra.mxu0 0
    %4586 = vmatpush.bf16.msra.mxu0 %v4574
    %4587 = vmatpush.bf16.msra.mxu0 %v4573
    %4588 = vmatmul.bf16.gmra.mxu0 %v4578
    %v4589 = vpop.f32.mrf.mxu0
    %v4590 = vadd.f32 0.0, %v4589
    %v4591 = vpop.f32.mrf.mxu0
    %4592 = vdwg.mxu0
    %v4597 = vunpack.c.l.b16 %v4049
    %v4598 = vunpack.c.l.b16 %v4050
    %v4599 = vunpack.c.l.b16 %v4051
    %v4600 = vunpack.c.l.b16 %v4052
    %v4601 = vpack.c.b16 %v4598, %v4597
    %v4602 = vpack.c.b16 %v4600, %v4599
    %v4606 = vsel %vm151, %v4129, 0
    %4608 = vmatpush.bf16.msra.mxu0 0
    %4609 = vmatpush.bf16.msra.mxu0 0
    %4610 = vmatpush.bf16.msra.mxu0 0
    %4611 = vmatpush.bf16.msra.mxu0 0
    %4612 = vmatpush.bf16.msra.mxu0 0
    %4613 = vmatpush.bf16.msra.mxu0 0
    %4614 = vmatpush.bf16.msra.mxu0 %v4602
    %4615 = vmatpush.bf16.msra.mxu0 %v4601
    %4616 = vmatmul.bf16.gmra.mxu0 %v4606
    %v4617 = vpop.f32.mrf.mxu0
    %v4618 = vadd.f32 0.0, %v4617
    %v4619 = vpop.f32.mrf.mxu0
    %4620 = vdwg.mxu0
    %v4625 = vunpack.c.l.b16 %v4053
    %v4626 = vunpack.c.l.b16 %v4054
    %v4627 = vunpack.c.l.b16 %v4055
    %v4628 = vunpack.c.l.b16 %v4056
    %v4629 = vpack.c.b16 %v4626, %v4625
    %v4630 = vpack.c.b16 %v4628, %v4627
    %v4634 = vsel %vm151, %v4130, 0
    %4636 = vmatpush.bf16.msra.mxu0 0
    %4637 = vmatpush.bf16.msra.mxu0 0
    %4638 = vmatpush.bf16.msra.mxu0 0
    %4639 = vmatpush.bf16.msra.mxu0 0
    %4640 = vmatpush.bf16.msra.mxu0 0
    %4641 = vmatpush.bf16.msra.mxu0 0
    %4642 = vmatpush.bf16.msra.mxu0 %v4630
    %4643 = vmatpush.bf16.msra.mxu0 %v4629
    %4644 = vmatmul.bf16.gmra.mxu0 %v4634
    %v4645 = vpop.f32.mrf.mxu0
    %v4646 = vadd.f32 0.0, %v4645
    %v4647 = vpop.f32.mrf.mxu0
    %4648 = vdwg.mxu0
    %v4653 = vunpack.c.l.b16 %v4057
    %v4654 = vunpack.c.l.b16 %v4058
    %v4655 = vunpack.c.l.b16 %v4059
    %v4656 = vunpack.c.l.b16 %v4060
    %v4657 = vpack.c.b16 %v4654, %v4653
    %v4658 = vpack.c.b16 %v4656, %v4655
    %v4662 = vsel %vm151, %v4131, 0
    %4664 = vmatpush.bf16.msra.mxu0 0
    %4665 = vmatpush.bf16.msra.mxu0 0
    %4666 = vmatpush.bf16.msra.mxu0 0
    %4667 = vmatpush.bf16.msra.mxu0 0
    %4668 = vmatpush.bf16.msra.mxu0 0
    %4669 = vmatpush.bf16.msra.mxu0 0
    %4670 = vmatpush.bf16.msra.mxu0 %v4658
    %4671 = vmatpush.bf16.msra.mxu0 %v4657
    %4672 = vmatmul.bf16.gmra.mxu0 %v4662
    %v4673 = vpop.f32.mrf.mxu0
    %v4674 = vadd.f32 0.0, %v4673
    %v4675 = vpop.f32.mrf.mxu0
    %4676 = vdwg.mxu0
    %v4681 = vunpack.c.l.b16 %v4061
    %v4682 = vunpack.c.l.b16 %v4062
    %v4683 = vunpack.c.l.b16 %v4063
    %v4684 = vunpack.c.l.b16 %v4064
    %v4685 = vpack.c.b16 %v4682, %v4681
    %v4686 = vpack.c.b16 %v4684, %v4683
    %v4690 = vsel %vm151, %v4132, 0
    %4692 = vmatpush.bf16.msra.mxu0 0
    %4693 = vmatpush.bf16.msra.mxu0 0
    %4694 = vmatpush.bf16.msra.mxu0 0
    %4695 = vmatpush.bf16.msra.mxu0 0
    %4696 = vmatpush.bf16.msra.mxu0 0
    %4697 = vmatpush.bf16.msra.mxu0 0
    %4698 = vmatpush.bf16.msra.mxu0 %v4686
    %4699 = vmatpush.bf16.msra.mxu0 %v4685
    %4700 = vmatmul.bf16.gmra.mxu0 %v4690
    %v4701 = vpop.f32.mrf.mxu0
    %v4702 = vadd.f32 0.0, %v4701
    %v4703 = vpop.f32.mrf.mxu0
    %4704 = vdwg.mxu0
    %v4709 = vunpack.c.l.b16 %v4065
    %v4710 = vunpack.c.l.b16 %v4066
    %v4711 = vunpack.c.l.b16 %v4067
    %v4712 = vunpack.c.l.b16 %v4068
    %v4713 = vpack.c.b16 %v4710, %v4709
    %v4714 = vpack.c.b16 %v4712, %v4711
    %v4718 = vsel %vm151, %v4133, 0
    %4720 = vmatpush.bf16.msra.mxu0 0
    %4721 = vmatpush.bf16.msra.mxu0 0
    %4722 = vmatpush.bf16.msra.mxu0 0
    %4723 = vmatpush.bf16.msra.mxu0 0
    %4724 = vmatpush.bf16.msra.mxu0 0
    %4725 = vmatpush.bf16.msra.mxu0 0
    %4726 = vmatpush.bf16.msra.mxu0 %v4714
    %4727 = vmatpush.bf16.msra.mxu0 %v4713
    %4728 = vmatmul.bf16.gmra.mxu0 %v4718
    %v4729 = vpop.f32.mrf.mxu0
    %v4730 = vadd.f32 0.0, %v4729
    %v4731 = vpop.f32.mrf.mxu0
    %4732 = vdwg.mxu0
    %v4737 = vunpack.c.l.b16 %v4069
    %v4738 = vunpack.c.l.b16 %v4070
    %v4739 = vunpack.c.l.b16 %v4071
    %v4740 = vunpack.c.l.b16 %v4072
    %v4741 = vpack.c.b16 %v4738, %v4737
    %v4742 = vpack.c.b16 %v4740, %v4739
    %v4746 = vsel %vm151, %v4134, 0
    %4748 = vmatpush.bf16.msra.mxu0 0
    %4749 = vmatpush.bf16.msra.mxu0 0
    %4750 = vmatpush.bf16.msra.mxu0 0
    %4751 = vmatpush.bf16.msra.mxu0 0
    %4752 = vmatpush.bf16.msra.mxu0 0
    %4753 = vmatpush.bf16.msra.mxu0 0
    %4754 = vmatpush.bf16.msra.mxu0 %v4742
    %4755 = vmatpush.bf16.msra.mxu0 %v4741
    %4756 = vmatmul.bf16.gmra.mxu0 %v4746
    %v4757 = vpop.f32.mrf.mxu0
    %v4758 = vadd.f32 0.0, %v4757
    %v4759 = vpop.f32.mrf.mxu0
    %4760 = vdwg.mxu0
    %v4765 = vunpack.c.l.b16 %v4073
    %v4766 = vunpack.c.l.b16 %v4074
    %v4767 = vunpack.c.l.b16 %v4075
    %v4768 = vunpack.c.l.b16 %v4076
    %v4769 = vpack.c.b16 %v4766, %v4765
    %v4770 = vpack.c.b16 %v4768, %v4767
    %v4774 = vsel %vm151, %v4135, 0
    %4776 = vmatpush.bf16.msra.mxu0 0
    %4777 = vmatpush.bf16.msra.mxu0 0
    %4778 = vmatpush.bf16.msra.mxu0 0
    %4779 = vmatpush.bf16.msra.mxu0 0
    %4780 = vmatpush.bf16.msra.mxu0 0
    %4781 = vmatpush.bf16.msra.mxu0 0
    %4782 = vmatpush.bf16.msra.mxu0 %v4770
    %4783 = vmatpush.bf16.msra.mxu0 %v4769
    %4784 = vmatmul.bf16.gmra.mxu0 %v4774
    %v4785 = vpop.f32.mrf.mxu0
    %v4786 = vadd.f32 0.0, %v4785
    %v4787 = vpop.f32.mrf.mxu0
    %4788 = vdwg.mxu0
    %v4793 = vunpack.c.l.b16 %v4077
    %v4794 = vunpack.c.l.b16 %v4078
    %v4795 = vunpack.c.l.b16 %v4079
    %v4796 = vunpack.c.l.b16 %v4080
    %v4797 = vpack.c.b16 %v4794, %v4793
    %v4798 = vpack.c.b16 %v4796, %v4795
    %v4802 = vsel %vm151, %v4136, 0
    %4804 = vmatpush.bf16.msra.mxu0 0
    %4805 = vmatpush.bf16.msra.mxu0 0
    %4806 = vmatpush.bf16.msra.mxu0 0
    %4807 = vmatpush.bf16.msra.mxu0 0
    %4808 = vmatpush.bf16.msra.mxu0 0
    %4809 = vmatpush.bf16.msra.mxu0 0
    %4810 = vmatpush.bf16.msra.mxu0 %v4798
    %4811 = vmatpush.bf16.msra.mxu0 %v4797
    %4812 = vmatmul.bf16.gmra.mxu0 %v4802
    %v4813 = vpop.f32.mrf.mxu0
    %v4814 = vadd.f32 0.0, %v4813
    %v4815 = vpop.f32.mrf.mxu0
    %4816 = vdwg.mxu0
    %v4821 = vunpack.c.l.b16 %v4081
    %v4822 = vunpack.c.l.b16 %v4082
    %v4823 = vunpack.c.l.b16 %v4083
    %v4824 = vunpack.c.l.b16 %v4084
    %v4825 = vpack.c.b16 %v4822, %v4821
    %v4826 = vpack.c.b16 %v4824, %v4823
    %v4830 = vsel %vm151, %v4137, 0
    %4832 = vmatpush.bf16.msra.mxu0 0
    %4833 = vmatpush.bf16.msra.mxu0 0
    %4834 = vmatpush.bf16.msra.mxu0 0
    %4835 = vmatpush.bf16.msra.mxu0 0
    %4836 = vmatpush.bf16.msra.mxu0 0
    %4837 = vmatpush.bf16.msra.mxu0 0
    %4838 = vmatpush.bf16.msra.mxu0 %v4826
    %4839 = vmatpush.bf16.msra.mxu0 %v4825
    %4840 = vmatmul.bf16.gmra.mxu0 %v4830
    %v4841 = vpop.f32.mrf.mxu0
    %v4842 = vadd.f32 0.0, %v4841
    %v4843 = vpop.f32.mrf.mxu0
    %4844 = vdwg.mxu0
    %v4849 = vunpack.c.l.b16 %v4085
    %v4850 = vunpack.c.l.b16 %v4086
    %v4851 = vunpack.c.l.b16 %v4087
    %v4852 = vunpack.c.l.b16 %v4088
    %v4853 = vpack.c.b16 %v4850, %v4849
    %v4854 = vpack.c.b16 %v4852, %v4851
    %v4858 = vsel %vm151, %v4138, 0
    %4860 = vmatpush.bf16.msra.mxu0 0
    %4861 = vmatpush.bf16.msra.mxu0 0
    %4862 = vmatpush.bf16.msra.mxu0 0
    %4863 = vmatpush.bf16.msra.mxu0 0
    %4864 = vmatpush.bf16.msra.mxu0 0
    %4865 = vmatpush.bf16.msra.mxu0 0
    %4866 = vmatpush.bf16.msra.mxu0 %v4854
    %4867 = vmatpush.bf16.msra.mxu0 %v4853
    %4868 = vmatmul.bf16.gmra.mxu0 %v4858
    %v4869 = vpop.f32.mrf.mxu0
    %v4870 = vadd.f32 0.0, %v4869
    %v4871 = vpop.f32.mrf.mxu0
    %4872 = vdwg.mxu0
    %v4877 = vunpack.c.l.b16 %v4089
    %v4878 = vunpack.c.l.b16 %v4090
    %v4879 = vunpack.c.l.b16 %v4091
    %v4880 = vunpack.c.l.b16 %v4092
    %v4881 = vpack.c.b16 %v4878, %v4877
    %v4882 = vpack.c.b16 %v4880, %v4879
    %v4886 = vsel %vm151, %v4139, 0
    %4888 = vmatpush.bf16.msra.mxu0 0
    %4889 = vmatpush.bf16.msra.mxu0 0
    %4890 = vmatpush.bf16.msra.mxu0 0
    %4891 = vmatpush.bf16.msra.mxu0 0
    %4892 = vmatpush.bf16.msra.mxu0 0
    %4893 = vmatpush.bf16.msra.mxu0 0
    %4894 = vmatpush.bf16.msra.mxu0 %v4882
    %4895 = vmatpush.bf16.msra.mxu0 %v4881
    %4896 = vmatmul.bf16.gmra.mxu0 %v4886
    %v4897 = vpop.f32.mrf.mxu0
    %v4898 = vadd.f32 0.0, %v4897
    %v4899 = vpop.f32.mrf.mxu0
    %4900 = vdwg.mxu0
    %v4905 = vunpack.c.l.b16 %v4093
    %v4906 = vunpack.c.l.b16 %v4094
    %v4907 = vunpack.c.l.b16 %v4095
    %v4908 = vunpack.c.l.b16 %v4096
    %v4909 = vpack.c.b16 %v4906, %v4905
    %v4910 = vpack.c.b16 %v4908, %v4907
    %v4914 = vsel %vm151, %v4140, 0
    %4916 = vmatpush.bf16.msra.mxu0 0
    %4917 = vmatpush.bf16.msra.mxu0 0
    %4918 = vmatpush.bf16.msra.mxu0 0
    %4919 = vmatpush.bf16.msra.mxu0 0
    %4920 = vmatpush.bf16.msra.mxu0 0
    %4921 = vmatpush.bf16.msra.mxu0 0
    %4922 = vmatpush.bf16.msra.mxu0 %v4910
    %4923 = vmatpush.bf16.msra.mxu0 %v4909
    %4924 = vmatmul.bf16.gmra.mxu0 %v4914
    %v4925 = vpop.f32.mrf.mxu0
    %v4926 = vadd.f32 0.0, %v4925
    %v4927 = vpop.f32.mrf.mxu0
    %4928 = vdwg.mxu0
    %v4933 = vunpack.c.l.b16 %v4097
    %v4934 = vunpack.c.l.b16 %v4098
    %v4935 = vunpack.c.l.b16 %v4099
    %v4936 = vunpack.c.l.b16 %v4100
    %v4937 = vpack.c.b16 %v4934, %v4933
    %v4938 = vpack.c.b16 %v4936, %v4935
    %v4942 = vsel %vm151, %v4141, 0
    %4944 = vmatpush.bf16.msra.mxu0 0
    %4945 = vmatpush.bf16.msra.mxu0 0
    %4946 = vmatpush.bf16.msra.mxu0 0
    %4947 = vmatpush.bf16.msra.mxu0 0
    %4948 = vmatpush.bf16.msra.mxu0 0
    %4949 = vmatpush.bf16.msra.mxu0 0
    %4950 = vmatpush.bf16.msra.mxu0 %v4938
    %4951 = vmatpush.bf16.msra.mxu0 %v4937
    %4952 = vmatmul.bf16.gmra.mxu0 %v4942
    %v4953 = vpop.f32.mrf.mxu0
    %v4954 = vadd.f32 0.0, %v4953
    %v4955 = vpop.f32.mrf.mxu0
    %4956 = vdwg.mxu0
    %v4961 = vunpack.c.l.b16 %v4101
    %v4962 = vunpack.c.l.b16 %v4102
    %v4963 = vunpack.c.l.b16 %v4103
    %v4964 = vunpack.c.l.b16 %v4104
    %v4965 = vpack.c.b16 %v4962, %v4961
    %v4966 = vpack.c.b16 %v4964, %v4963
    %v4970 = vsel %vm151, %v4142, 0
    %4972 = vmatpush.bf16.msra.mxu0 0
    %4973 = vmatpush.bf16.msra.mxu0 0
    %4974 = vmatpush.bf16.msra.mxu0 0
    %4975 = vmatpush.bf16.msra.mxu0 0
    %4976 = vmatpush.bf16.msra.mxu0 0
    %4977 = vmatpush.bf16.msra.mxu0 0
    %4978 = vmatpush.bf16.msra.mxu0 %v4966
    %4979 = vmatpush.bf16.msra.mxu0 %v4965
    %4980 = vmatmul.bf16.gmra.mxu0 %v4970
    %v4981 = vpop.f32.mrf.mxu0
    %v4982 = vadd.f32 0.0, %v4981
    %v4983 = vpop.f32.mrf.mxu0
    %4984 = vdwg.mxu0
    %v4989 = vunpack.c.l.b16 %v4105
    %v4990 = vunpack.c.l.b16 %v4106
    %v4991 = vunpack.c.l.b16 %v4107
    %v4992 = vunpack.c.l.b16 %v4108
    %v4993 = vpack.c.b16 %v4990, %v4989
    %v4994 = vpack.c.b16 %v4992, %v4991
    %v4998 = vsel %vm151, %v4143, 0
    %5000 = vmatpush.bf16.msra.mxu0 0
    %5001 = vmatpush.bf16.msra.mxu0 0
    %5002 = vmatpush.bf16.msra.mxu0 0
    %5003 = vmatpush.bf16.msra.mxu0 0
    %5004 = vmatpush.bf16.msra.mxu0 0
    %5005 = vmatpush.bf16.msra.mxu0 0
    %5006 = vmatpush.bf16.msra.mxu0 %v4994
    %5007 = vmatpush.bf16.msra.mxu0 %v4993
    %5008 = vmatmul.bf16.gmra.mxu0 %v4998
    %v5009 = vpop.f32.mrf.mxu0
    %v5010 = vadd.f32 0.0, %v5009
    %v5011 = vpop.f32.mrf.mxu0
    %5012 = vdwg.mxu0
    %v5017 = vunpack.c.l.b16 %v4109
    %v5018 = vunpack.c.l.b16 %v4110
    %v5019 = vunpack.c.l.b16 %v4111
    %v5020 = vunpack.c.l.b16 %v4112
    %v5021 = vpack.c.b16 %v5018, %v5017
    %v5022 = vpack.c.b16 %v5020, %v5019
    %v5026 = vsel %vm151, %v4144, 0
    %5028 = vmatpush.bf16.msra.mxu0 0
    %5029 = vmatpush.bf16.msra.mxu0 0
    %5030 = vmatpush.bf16.msra.mxu0 0
    %5031 = vmatpush.bf16.msra.mxu0 0
    %5032 = vmatpush.bf16.msra.mxu0 0
    %5033 = vmatpush.bf16.msra.mxu0 0
    %5034 = vmatpush.bf16.msra.mxu0 %v5022
    %5035 = vmatpush.bf16.msra.mxu0 %v5021
    %5036 = vmatmul.bf16.gmra.mxu0 %v5026
    %v5037 = vpop.f32.mrf.mxu0
    %v5038 = vadd.f32 0.0, %v5037
    %v5039 = vpop.f32.mrf.mxu0
    %5040 = vdwg.mxu0
    %v5041 = vsel %vm151, %v4170, 0.0
    %v5042 = vsel %vm151, %v4198, 0.0
    %v5043 = vadd.f32 %v5041, %v5042
    %v5044 = vsel %vm151, %v4226, 0.0
    %v5045 = vadd.f32 %v5043, %v5044
    %v5046 = vsel %vm151, %v4254, 0.0
    %v5047 = vadd.f32 %v5045, %v5046
    %v5048 = vsel %vm151, %v4282, 0.0
    %v5049 = vadd.f32 %v5047, %v5048
    %v5050 = vsel %vm151, %v4310, 0.0
    %v5051 = vadd.f32 %v5049, %v5050
    %v5052 = vsel %vm151, %v4338, 0.0
    %v5053 = vadd.f32 %v5051, %v5052
    %v5054 = vsel %vm151, %v4366, 0.0
    %v5055 = vadd.f32 %v5053, %v5054
    %v5056 = vsel %vm151, %v4394, 0.0
    %v5057 = vadd.f32 %v5055, %v5056
    %v5058 = vsel %vm151, %v4422, 0.0
    %v5059 = vadd.f32 %v5057, %v5058
    %v5060 = vsel %vm151, %v4450, 0.0
    %v5061 = vadd.f32 %v5059, %v5060
    %v5062 = vsel %vm151, %v4478, 0.0
    %v5063 = vadd.f32 %v5061, %v5062
    %v5064 = vsel %vm151, %v4506, 0.0
    %v5065 = vadd.f32 %v5063, %v5064
    %v5066 = vsel %vm151, %v4534, 0.0
    %v5067 = vadd.f32 %v5065, %v5066
    %v5068 = vsel %vm151, %v4562, 0.0
    %v5069 = vadd.f32 %v5067, %v5068
    %v5070 = vsel %vm151, %v4590, 0.0
    %v5071 = vadd.f32 %v5069, %v5070
    %v5072 = vsel %vm151, %v4618, 0.0
    %v5073 = vadd.f32 %v5071, %v5072
    %v5074 = vsel %vm151, %v4646, 0.0
    %v5075 = vadd.f32 %v5073, %v5074
    %v5076 = vsel %vm151, %v4674, 0.0
    %v5077 = vadd.f32 %v5075, %v5076
    %v5078 = vsel %vm151, %v4702, 0.0
    %v5079 = vadd.f32 %v5077, %v5078
    %v5080 = vsel %vm151, %v4730, 0.0
    %v5081 = vadd.f32 %v5079, %v5080
    %v5082 = vsel %vm151, %v4758, 0.0
    %v5083 = vadd.f32 %v5081, %v5082
    %v5084 = vsel %vm151, %v4786, 0.0
    %v5085 = vadd.f32 %v5083, %v5084
    %v5086 = vsel %vm151, %v4814, 0.0
    %v5087 = vadd.f32 %v5085, %v5086
    %v5088 = vsel %vm151, %v4842, 0.0
    %v5089 = vadd.f32 %v5087, %v5088
    %v5090 = vsel %vm151, %v4870, 0.0
    %v5091 = vadd.f32 %v5089, %v5090
    %v5092 = vsel %vm151, %v4898, 0.0
    %v5093 = vadd.f32 %v5091, %v5092
    %v5094 = vsel %vm151, %v4926, 0.0
    %v5095 = vadd.f32 %v5093, %v5094
    %v5096 = vsel %vm151, %v4954, 0.0
    %v5097 = vadd.f32 %v5095, %v5096
    %v5098 = vsel %vm151, %v4982, 0.0
    %v5099 = vadd.f32 %v5097, %v5098
    %v5100 = vsel %vm151, %v5010, 0.0
    %v5101 = vadd.f32 %v5099, %v5100
    %v5102 = vsel %vm151, %v5038, 0.0
    %v5103 = vadd.f32 %v5101, %v5102
    %s5104 = scalar_lea.vmem %s3, 64
    %v5105 = vld [vmem:[%s5104] sm:$0xf]
    %v5106 = vld [vmem:[%s5104 + $0x4] sm:$0xf]
    %v5107 = vld [vmem:[%s5104 + $0x8] sm:$0xf]
    %v5108 = vld [vmem:[%s5104 + $0xc] sm:$0xf]
    %v5109 = vpack.c.bf16 %v3951, %v3951
    %v5114 = vunpack.c.l.b16 %v5105
    %v5115 = vunpack.c.l.b16 %v5106
    %v5116 = vunpack.c.l.b16 %v5107
    %v5117 = vunpack.c.l.b16 %v5108
    %v5118 = vpack.c.b16 %v5115, %v5114
    %v5119 = vpack.c.b16 %v5117, %v5116
    %v5123 = vsel %vm151, %v5109, 0
    %5125 = vmatpush.bf16.msra.mxu0 0
    %5126 = vmatpush.bf16.msra.mxu0 0
    %5127 = vmatpush.bf16.msra.mxu0 0
    %5128 = vmatpush.bf16.msra.mxu0 0
    %5129 = vmatpush.bf16.msra.mxu0 0
    %5130 = vmatpush.bf16.msra.mxu0 0
    %5131 = vmatpush.bf16.msra.mxu0 %v5119
    %5132 = vmatpush.bf16.msra.mxu0 %v5118
    %5133 = vmatmul.bf16.gmra.mxu0 %v5123
    %v5134 = vpop.f32.mrf.mxu0
    %v5135 = vadd.f32 0.0, %v5134
    %v5136 = vpop.f32.mrf.mxu0
    %5137 = vdwg.mxu0
    %v5138 = vadd.f32 %v5103, %v5135
    %s5139 = scalar_lea.vmem %s3, 96
    %v5140 = vld [vmem:[%s5139] sm:$0xf]
    %v5141 = vld [vmem:[%s5139 + $0x4] sm:$0xf]
    %v5142 = vld [vmem:[%s5139 + $0x8] sm:$0xf]
    %v5143 = vld [vmem:[%s5139 + $0xc] sm:$0xf]
    %v5148 = vunpack.c.l.b16 %v5140
    %v5149 = vunpack.c.l.b16 %v5141
    %v5150 = vunpack.c.l.b16 %v5142
    %v5151 = vunpack.c.l.b16 %v5143
    %v5152 = vpack.c.b16 %v5149, %v5148
    %v5153 = vpack.c.b16 %v5151, %v5150
    %5156 = vmatpush.bf16.msra.mxu0 0
    %5157 = vmatpush.bf16.msra.mxu0 0
    %5158 = vmatpush.bf16.msra.mxu0 0
    %5159 = vmatpush.bf16.msra.mxu0 0
    %5160 = vmatpush.bf16.msra.mxu0 0
    %5161 = vmatpush.bf16.msra.mxu0 0
    %5162 = vmatpush.bf16.msra.mxu0 %v5153
    %5163 = vmatpush.bf16.msra.mxu0 %v5152
    %5164 = vmatmul.bf16.gmra.mxu0 %v3929
    %v5165 = vpop.f32.mrf.mxu0
    %v5166 = vadd.f32 0.0, %v5165
    %v5167 = vpop.f32.mrf.mxu0
    %5168 = vdwg.mxu0
    %v5169 = vadd.f32 %v5138, %v5166
    %s5170 = scalar_lea.vmem [#allocation4], 10
    %v5171 = vld [vmem:[%s5170] sm:$0x1]
    %v5173 = vperm.slane %v5171, 0
    %v5175 = vadd.f32 %v5169, %v5173
    %v5176 = vmul.f32 %v5175, %v277
    %v5177 = vsel %vm151, %v5176, 0.0
    %5178 = vadd.xlane.f32.xlu0 %v5177
    %v5179 = vpop.xlane.xlu0 %5178
    %vm5180 = vcmask 7168
    %5181 = vst.msk [vmem:[%s12] sm:$0xff] %vm5180, %v5179
    // Predicated region
    $region66: #{tpu_custom_call.1} parent=1 // pred_check
      _
    $region67: #{tpu_custom_call.1} parent=1 // pred_check_branch
      %5183 = sbr.rel (0) target = $region69
    $region68: #{tpu_custom_call.1} parent=1 // pred_region
      _
    $region69: #{tpu_custom_call.1} parent=1 // pred_fallthru
      _
    // Predicated region
    $region70: #{tpu_custom_call.1} parent=1 // pred_check
      _
    $region71: #{tpu_custom_call.1} parent=1 // pred_check_branch
      %5185 = sbr.rel (0) target = $region73
    $region72: #{tpu_custom_call.1} parent=1 // pred_region
      _
    $region73: #{tpu_custom_call.1} parent=1 // pred_fallthru
      _
    %5186 = vsyncpa [#allocation3], 1
    %5187 = vsyncpa [#allocation5], 1
    %5188 = vsyncpa [#allocation8], 1

</llo_original>
